<compile_context>
chip_gen: v7x
topology: tpu7x:2x2x1
jax: 0.10.0
libtpu: 0.0.40
codegen_flags: <defaults>
</compile_context>

<pallas_src>
import functools

import jax
import jax.numpy as jnp
from jax import lax
from jax.experimental import pallas as pl
from jax.experimental.pallas import tpu as pltpu


# ------------------------- generation-aware budgets --------------------------

def _vmem_capacity_bytes():
    try:
        cap = int(pltpu.get_tpu_info().vmem_capacity_bytes)
        if cap > 0:
            return cap
    except Exception:
        return None
    return None


_VMEM_CAP = _vmem_capacity_bytes()
if _VMEM_CAP is None:
    # Unknown chip: conservative limit that is valid on every generation.
    _VMEM_LIMIT = 64 * 1024 * 1024
    _ROW_BLOCK = 256
else:
    # v5e/v6e (128 MiB): ~96-112 MiB scoped limit, 512-row tiles to cut FFN/QKV
    # weight re-streaming.  v7x (64 MiB): ~48 MiB limit, 256-row tiles so the
    # pipeline stays double-buffered with headroom for Mosaic scratch.
    _VMEM_LIMIT = min((_VMEM_CAP * 3) // 4, 112 * 1024 * 1024)
    _ROW_BLOCK = 512 if _VMEM_CAP >= 100 * 1024 * 1024 else 256

_COL_BLOCK = 512          # output-column tile target for the row-wise kernels
_Q_BLOCK = 256            # query rows per attention grid step
_GROUP_LANES = 256        # target lanes per head group (full 256-wide MXU)
_NEG_MASK = -1e30         # finite "-inf": no NaN softmax for fully padded rows


def _compiler(dims):
    return pltpu.CompilerParams(dimension_semantics=dims,
                                vmem_limit_bytes=_VMEM_LIMIT)


# ------------------------------ tiling helpers -------------------------------

def _choose_cols(dim, target=_COL_BLOCK):
    """Largest multiple-of-128 divisor of `dim` that is <= target, else full dim."""
    if dim <= target or dim % 128 != 0:
        return dim
    b = (min(target, dim) // 128) * 128
    while b >= 128:
        if dim % b == 0:
            return b
        b -= 128
    return dim


def _row_plan(n, target):
    """Row tile for (rows, C) kernels: prefer a divisor of n (no pad copies)."""
    if n <= target:
        return n, n
    t = max(8, target - target % 8)
    for bm in range(t, 7, -8):
        if n % bm == 0:
            return bm, n
    bm = t
    return bm, pl.cdiv(n, bm) * bm


def _divisor_tile(n, target):
    """Divisor of n (multiple of 8) that is <= target, else n (full)."""
    if n <= target:
        return n
    t = max(8, target - target % 8)
    for bm in range(t, 7, -8):
        if n % bm == 0:
            return bm
    return n


def _pad_rows(a, n_pad):
    n = a.shape[0]
    if n_pad == n:
        return a
    return jnp.pad(a, ((0, n_pad - n),) + ((0, 0),) * (a.ndim - 1))


# --------------------------- fused row-wise kernels --------------------------

def _layernorm_f32(x, gamma, beta, eps):
    xf = x.astype(jnp.float32)
    mu = jnp.mean(xf, axis=-1, keepdims=True)
    var = jnp.mean(jnp.square(xf - mu), axis=-1, keepdims=True)
    xn = (xf - mu) * lax.rsqrt(var + eps)
    return xn * gamma.astype(jnp.float32) + beta.astype(jnp.float32)


def _layernorm_kernel(x_ref, g_ref, b_ref, o_ref, *, eps):
    o_ref[...] = _layernorm_f32(x_ref[...], g_ref[...], b_ref[...],
                                eps).astype(o_ref.dtype)


def layernorm(x2d, gamma, beta, *, eps=1e-5):
    """Standalone LayerNorm (only used on the post-norm path)."""
    N, C = x2d.shape
    bm, Np = _row_plan(N, _ROW_BLOCK)
    out = pl.pallas_call(
        functools.partial(_layernorm_kernel, eps=eps),
        out_shape=jax.ShapeDtypeStruct((Np, C), x2d.dtype),
        grid=(Np // bm,),
        in_specs=[pl.BlockSpec((bm, C), lambda i: (i, 0)),
                  pl.BlockSpec((1, C), lambda i: (0, 0)),
                  pl.BlockSpec((1, C), lambda i: (0, 0))],
        out_specs=pl.BlockSpec((bm, C), lambda i: (i, 0)),
        compiler_params=_compiler(("parallel",)),
    )(_pad_rows(x2d, Np), gamma.reshape(1, C), beta.reshape(1, C))
    return out[:N]


def _ln_matmul_kernel(x_ref, g_ref, b_ref, w_ref, bias_ref, o_ref, xn_ref,
                      *, eps, use_ln):
    # Normalize (or copy) x once per row block (j == 0), reuse per column tile.
    @pl.when(pl.program_id(1) == 0)
    def _():
        if use_ln:
            xn_ref[...] = _layernorm_f32(x_ref[...], g_ref[...], b_ref[...],
                                         eps).astype(xn_ref.dtype)
        else:
            xn_ref[...] = x_ref[...]
    y = jnp.dot(xn_ref[...], w_ref[...], preferred_element_type=jnp.float32)
    y = y + bias_ref[...].astype(jnp.float32)
    o_ref[...] = y.astype(o_ref.dtype)


def ln_matmul(x2d, gamma, beta, w, b, *, use_ln=True, eps=1e-5):
    """Fused (optional LayerNorm) + Linear.  Used for the QKV projection."""
    N, C = x2d.shape
    Cout = w.shape[1]
    bm, Np = _row_plan(N, _ROW_BLOCK)
    bn = _choose_cols(Cout, _COL_BLOCK)
    out = pl.pallas_call(
        functools.partial(_ln_matmul_kernel, eps=eps, use_ln=use_ln),
        out_shape=jax.ShapeDtypeStruct((Np, Cout), x2d.dtype),
        grid=(Np // bm, Cout // bn),
        in_specs=[
            pl.BlockSpec((bm, C), lambda i, j: (i, 0)),
            pl.BlockSpec((1, C), lambda i, j: (0, 0)),
            pl.BlockSpec((1, C), lambda i, j: (0, 0)),
            pl.BlockSpec((C, bn), lambda i, j: (0, j)),
            pl.BlockSpec((1, bn), lambda i, j: (0, j)),
        ],
        out_specs=pl.BlockSpec((bm, bn), lambda i, j: (i, j)),
        scratch_shapes=[pltpu.VMEM((bm, C), x2d.dtype)],
        compiler_params=_compiler(("parallel", "arbitrary")),
    )(_pad_rows(x2d, Np), gamma.reshape(1, C), beta.reshape(1, C),
      w, b.reshape(1, Cout))
    return out[:N]


def _matmul_residual_kernel(x_ref, w_ref, b_ref, r_ref, o_ref):
    y = jnp.dot(x_ref[...], w_ref[...], preferred_element_type=jnp.float32)
    y = y + b_ref[...].astype(jnp.float32) + r_ref[...].astype(jnp.float32)
    o_ref[...] = y.astype(o_ref.dtype)


def matmul_bias_residual(x2d, w, b, residual):
    """Fused Linear + bias + residual.  Used for the attention out-projection."""
    N, Cin = x2d.shape
    Cout = w.shape[1]
    bm, Np = _row_plan(N, _ROW_BLOCK)
    bn = _choose_cols(Cout, _COL_BLOCK)
    out = pl.pallas_call(
        _matmul_residual_kernel,
        out_shape=jax.ShapeDtypeStruct((Np, Cout), x2d.dtype),
        grid=(Np // bm, Cout // bn),
        in_specs=[
            pl.BlockSpec((bm, Cin), lambda i, j: (i, 0)),
            pl.BlockSpec((Cin, bn), lambda i, j: (0, j)),
            pl.BlockSpec((1, bn), lambda i, j: (0, j)),
            pl.BlockSpec((bm, bn), lambda i, j: (i, j)),
        ],
        out_specs=pl.BlockSpec((bm, bn), lambda i, j: (i, j)),
        compiler_params=_compiler(("parallel", "parallel")),
    )(_pad_rows(x2d, Np), w, b.reshape(1, Cout), _pad_rows(residual, Np))
    return out[:N]


def _ffn_kernel(x_ref, g_ref, b_ref, w1_ref, b1_ref, w2_ref, b2_ref, r_ref,
                o_ref, xn_ref, acc_ref, *, eps, use_ln):
    f = pl.program_id(1)

    @pl.when(f == 0)
    def _():
        if use_ln:
            xn_ref[...] = _layernorm_f32(x_ref[...], g_ref[...], b_ref[...],
                                         eps).astype(xn_ref.dtype)
        else:
            xn_ref[...] = x_ref[...]
        acc_ref[...] = jnp.zeros_like(acc_ref)

    h = jnp.dot(xn_ref[...], w1_ref[...], preferred_element_type=jnp.float32)
    h = h + b1_ref[...].astype(jnp.float32)
    # exact (erf) GELU, matching torch.nn.functional.gelu default
    h = 0.5 * h * (1.0 + lax.erf(h * 0.7071067811865476))
    acc_ref[...] += jnp.dot(h.astype(xn_ref.dtype), w2_ref[...],
                            preferred_element_type=jnp.float32)

    @pl.when(f == pl.num_programs(1) - 1)
    def _():
        y = acc_ref[...] + b2_ref[...].astype(jnp.float32) \
            + r_ref[...].astype(jnp.float32)
        o_ref[...] = y.astype(o_ref.dtype)


def ffn_block(x2d, gamma, beta, w1, b1, w2, b2, residual, *, use_ln=True,
              eps=1e-5):
    """Fused (optional LN) + fc1 + GELU + fc2 + bias + residual, tiled over F."""
    # TODO(synk): return_fc / fc_result is not separately materialized (fc2
    # output is fused with the residual add).
    N, C = x2d.shape
    F = w1.shape[1]
    bm, Np = _row_plan(N, _ROW_BLOCK)
    bf = _choose_cols(F, _COL_BLOCK)
    out = pl.pallas_call(
        functools.partial(_ffn_kernel, eps=eps, use_ln=use_ln),
        out_shape=jax.ShapeDtypeStruct((Np, C), x2d.dtype),
        grid=(Np // bm, F // bf),
        in_specs=[
            pl.BlockSpec((bm, C), lambda i, f: (i, 0)),
            pl.BlockSpec((1, C), lambda i, f: (0, 0)),
            pl.BlockSpec((1, C), lambda i, f: (0, 0)),
            pl.BlockSpec((C, bf), lambda i, f: (0, f)),
            pl.BlockSpec((1, bf), lambda i, f: (0, f)),
            pl.BlockSpec((bf, C), lambda i, f: (f, 0)),
            pl.BlockSpec((1, C), lambda i, f: (0, 0)),
            pl.BlockSpec((bm, C), lambda i, f: (i, 0)),
        ],
        out_specs=pl.BlockSpec((bm, C), lambda i, f: (i, 0)),
        scratch_shapes=[pltpu.VMEM((bm, C), x2d.dtype),
                        pltpu.VMEM((bm, C), jnp.float32)],
        compiler_params=_compiler(("parallel", "arbitrary")),
    )(_pad_rows(x2d, Np), gamma.reshape(1, C), beta.reshape(1, C),
      w1, b1.reshape(1, F), w2, b2.reshape(1, C), _pad_rows(residual, Np))
    return out[:N]


# --------------------------------- attention ---------------------------------

def _rotary_tables(T, Dh):
    inv_freq = 1.0 / (10000.0 ** (jnp.arange(0, Dh, 2, dtype=jnp.float32) / Dh))
    t = jnp.arange(T, dtype=jnp.float32)
    freqs = jnp.einsum("t,d->td", t, inv_freq)               # (T, Dh/2)
    emb = jnp.concatenate([freqs, freqs], axis=-1)           # (T, Dh)
    return jnp.cos(emb), jnp.sin(emb)


def _head_group(H, Dh, target_lanes=_GROUP_LANES):
    """Heads per grid step such that group lanes are a multiple of 128."""
    cands = [hg for hg in range(1, H + 1)
             if H % hg == 0 and (hg * Dh) % 128 == 0]
    if not cands:
        return None
    within = [hg for hg in cands if hg * Dh <= target_lanes]
    return max(within) if within else min(cands)


def _attn_kernel(q_ref, k_ref, v_ref, cq_ref, sq_ref, ck_ref, sk_ref, *rest,
                 num_group_heads, head_dim, has_bias, has_kp, mean_probs,
                 inv_heads):
    it = iter(rest)
    bias_ref = next(it) if has_bias else None     # (1, Hg, Tq, T) additive bias
    kp_ref = next(it) if has_kp else None         # (1, 1, T) key-padding bias
    ctx_ref = next(it)                            # (Tq, Hg*Dh) lane-dense
    pair_ref = next(it)                           # (1, Hg, Tq, T)
    probs_ref = next(it)                          # (1, Tq, T) or (1, Hg, Tq, T)

    Dh = head_dim
    d2 = Dh // 2
    cq = cq_ref[...]          # (Tq, Dh) f32
    sq = sq_ref[...]
    ck = ck_ref[...]          # (T, Dh) f32
    sk = sk_ref[...]
    kp = kp_ref[0] if has_kp else None            # (1, T), broadcasts over rows

    def rope(x, cos, sin):
        # rotate_half via lane slice/negate/concat (VPU/XLU; keeps MXU free)
        xf = x.astype(jnp.float32)
        xr = jnp.concatenate([-xf[:, d2:], xf[:, :d2]], axis=1)
        return (xf * cos + xr * sin).astype(x.dtype)

    if mean_probs:
        @pl.when(pl.program_id(2) == 0)
        def _():
            probs_ref[...] = jnp.zeros_like(probs_ref)

    ctx_cols = []
    mean_acc = None
    for h in range(num_group_heads):
        sl = slice(h * Dh, (h + 1) * Dh)
        qh = rope(q_ref[:, sl], cq, sq)           # (Tq, Dh); 1/sqrt(Dh) folded
        kh = rope(k_ref[:, sl], ck, sk)           # (T, Dh)
        # q @ k^T: contract on Dh, no explicit transpose
        s = lax.dot_general(qh, kh, (((1,), (1,)), ((), ())),
                            preferred_element_type=jnp.float32)   # (Tq, T)
        if has_bias:
            s = s + bias_ref[0, h].astype(jnp.float32)
        if has_kp:
            s = s + kp
        # pre-softmax biased/masked scores -> pair_rep
        # TODO(synk): exact pair_rep convention of RotaryMultiheadAttentionWithBias
        # is not public; pre-softmax biased/masked scores are returned per head.
        pair_ref[0, h] = s.astype(pair_ref.dtype)

        m = jnp.max(s, axis=-1, keepdims=True)
        e = jnp.exp(s - m)
        denom = jnp.sum(e, axis=-1, keepdims=True)
        p = e * pl.reciprocal(denom, approx=False)   # one reciprocal per row
        if mean_probs:
            mean_acc = p * inv_heads if mean_acc is None else mean_acc + p * inv_heads
        else:
            probs_ref[0, h] = p
        ctx_cols.append(
            lax.dot_general(p.astype(v_ref.dtype), v_ref[:, sl],
                            (((1,), (0,)), ((), ())),
                            preferred_element_type=jnp.float32))
    if mean_probs:
        probs_ref[0] = probs_ref[0] + mean_acc
    # lane-dense (Tq, Hg*Dh) context write, already in the (T, B*C) layout the
    # output projection consumes (no HBM transpose afterwards)
    ctx_ref[...] = jnp.concatenate(ctx_cols, axis=1).astype(ctx_ref.dtype)


def _attention_core_xla(qkv2d, T, B, H, Dh, cos, sin, attn_bias, kp_bias, *,
                        need_head_weights, pair_rep_dtype):
    # TODO(synk): tiny head configs where no head group reaches a multiple of
    # 128 lanes fall back to plain XLA ops (the Pallas path needs lane-aligned
    # head groups).
    C = H * Dh
    qkv = qkv2d.reshape(T, B, 3, H, Dh).transpose(2, 1, 3, 0, 4)   # (3,B,H,T,Dh)
    q = qkv[0].astype(jnp.float32)
    k = qkv[1].astype(jnp.float32)
    v = qkv[2]
    d2 = Dh // 2

    def rope(x):
        xr = jnp.concatenate([-x[..., d2:], x[..., :d2]], axis=-1)
        return x * cos + xr * sin

    s = jnp.einsum("bhqd,bhkd->bhqk", rope(q), rope(k))
    if attn_bias is not None:
        s = s + attn_bias
    if kp_bias is not None:
        s = s + kp_bias[:, :, None, :]
    pair = s.astype(pair_rep_dtype)
    p = jax.nn.softmax(s, axis=-1)
    ctx = jnp.einsum("bhqk,bhkd->bhqd", p.astype(v.dtype), v)
    ctx_flat = ctx.transpose(2, 0, 1, 3).reshape(T, B * C).astype(qkv2d.dtype)
    probs = p if need_head_weights else jnp.mean(p, axis=1)
    return ctx_flat, pair, probs


def attention_core(qkv2d, T, B, H, Dh, cos, sin, attn_bias, kp_bias, *,
                   need_head_weights, pair_rep_dtype=jnp.float32):
    C = H * Dh
    Hg = _head_group(H, Dh)
    if Hg is None:
        return _attention_core_xla(qkv2d, T, B, H, Dh, cos, sin, attn_bias,
                                   kp_bias, need_head_weights=need_head_weights,
                                   pair_rep_dtype=pair_rep_dtype)
    G = H // Hg
    Tq = _divisor_tile(T, _Q_BLOCK)
    QT = T // Tq
    lanes = Hg * Dh

    # (T*B, 3C) -> (T, B*3C): free reshape.  q/k/v head-group columns are read
    # directly via BlockSpec column indices (no HBM transpose of QKV).
    qkv_flat = qkv2d.reshape(T, B * 3 * C)

    has_bias = attn_bias is not None
    has_kp = kp_bias is not None
    mean_probs = not need_head_weights

    inputs = [qkv_flat, qkv_flat, qkv_flat, cos, sin, cos, sin]
    in_specs = [
        pl.BlockSpec((Tq, lanes), lambda b, qi, g: (qi, b * 3 * G + g)),        # q
        pl.BlockSpec((T, lanes), lambda b, qi, g: (0, b * 3 * G + G + g)),      # k
        pl.BlockSpec((T, lanes), lambda b, qi, g: (0, b * 3 * G + 2 * G + g)),  # v
        pl.BlockSpec((Tq, Dh), lambda b, qi, g: (qi, 0)),                       # cos_q
        pl.BlockSpec((Tq, Dh), lambda b, qi, g: (qi, 0)),                       # sin_q
        pl.BlockSpec((T, Dh), lambda b, qi, g: (0, 0)),                         # cos_k
        pl.BlockSpec((T, Dh), lambda b, qi, g: (0, 0)),                         # sin_k
    ]
    if has_bias:
        inputs.append(attn_bias)
        in_specs.append(pl.BlockSpec((1, Hg, Tq, T),
                                     lambda b, qi, g: (b, g, qi, 0)))
    if has_kp:
        inputs.append(kp_bias)
        in_specs.append(pl.BlockSpec((1, 1, T), lambda b, qi, g: (b, 0, 0)))

    if mean_probs:
        probs_shape = jax.ShapeDtypeStruct((B, T, T), jnp.float32)
        probs_spec = pl.BlockSpec((1, Tq, T), lambda b, qi, g: (b, qi, 0))
        # head-group axis (last) accumulates the head-mean -> "arbitrary"
        dims = ("parallel", "parallel", "arbitrary")
    else:
        probs_shape = jax.ShapeDtypeStruct((B, H, T, T), jnp.float32)
        probs_spec = pl.BlockSpec((1, Hg, Tq, T), lambda b, qi, g: (b, g, qi, 0))
        dims = ("parallel", "parallel", "parallel")

    out_shapes = (
        jax.ShapeDtypeStruct((T, B * C), qkv2d.dtype),       # ctx, (T,B,C) layout
        jax.ShapeDtypeStruct((B, H, T, T), pair_rep_dtype),  # pair_rep
        probs_shape,
    )
    out_specs = (
        pl.BlockSpec((Tq, lanes), lambda b, qi, g: (qi, b * G + g)),
        pl.BlockSpec((1, Hg, Tq, T), lambda b, qi, g: (b, g, qi, 0)),
        probs_spec,
    )
    kern = functools.partial(
        _attn_kernel, num_group_heads=Hg, head_dim=Dh, has_bias=has_bias,
        has_kp=has_kp, mean_probs=mean_probs, inv_heads=1.0 / H)
    return pl.pallas_call(
        kern,
        out_shape=out_shapes,
        grid=(B, QT, G),
        in_specs=in_specs,
        out_specs=out_specs,
        compiler_params=_compiler(dims),
    )(*inputs)


# ------------------------------- encoder layer --------------------------------

def unified_pm_encoder_layer(x, params, encoder_padding_mask=None,
                             attn_mask=None, *, num_heads,
                             normalize_before=True, need_head_weights=False,
                             pair_rep_dtype=jnp.float32):
    # TODO(synk): aa_mask handling inside RotaryMultiheadAttentionWithBias is
    # not public; aa_mask is not supported here.
    T, B, C = x.shape
    H = num_heads
    Dh = C // H
    x2 = x.reshape(T * B, C)

    # ---- self-attention block: LN1 + QKV (+ folded 1/sqrt(Dh) scaling) fused
    residual = x2
    qkv2d = ln_matmul(x2, params["ln1_g"], params["ln1_b"],
                      params["wqkv"], params["bqkv"], use_ln=normalize_before)

    cos, sin = _rotary_tables(T, Dh)
    attn_bias = None
    if attn_mask is not None:
        attn_bias = attn_mask.reshape(B, H, T, T).astype(jnp.float32)
    kp_bias = None
    if encoder_padding_mask is not None:
        kp_bias = jnp.where(encoder_padding_mask, _NEG_MASK, 0.0).astype(
            jnp.float32)[:, None, :]                       # (B, 1, T)

    ctx_flat, pair_rep, probs = attention_core(
        qkv2d, T, B, H, Dh, cos, sin, attn_bias, kp_bias,
        need_head_weights=need_head_weights, pair_rep_dtype=pair_rep_dtype)

    # ctx is already in (T, B, C) layout: free reshape to (T*B, C)
    ctx2d = ctx_flat.reshape(T * B, C)
    x2 = matmul_bias_residual(ctx2d, params["wo"], params["bo"], residual)
    if not normalize_before:
        x2 = layernorm(x2, params["ln1_g"], params["ln1_b"])

    # ---- FFN block: LN2 + fc1 + GELU + fc2 + residual, F-tiled
    residual = x2
    x2 = ffn_block(x2, params["ln2_g"], params["ln2_b"],
                   params["w1"], params["b1"], params["w2"], params["b2"],
                   residual, use_ln=normalize_before)
    if not normalize_before:
        x2 = layernorm(x2, params["ln2_g"], params["ln2_b"])

    x_out = x2.reshape(T, B, C)
    if need_head_weights:
        attn = probs.transpose(1, 0, 2, 3)   # (H, B, T, T), as in fairseq
    else:
        attn = probs                         # (B, T, T), head-mean (in-kernel)
    return x_out, attn, pair_rep


# ---------------------------------- params ------------------------------------

def make_params(key, C, H, F):
    ks = jax.random.split(key, 12)
    n = lambda k, s: (0.02 * jax.random.normal(k, s, dtype=jnp.float32))
    return {
        # attention projections, stored as (in, out) == torch weight.T
        "wq": n(ks[0], (C, C)), "bq": n(ks[1], (C,)),
        "wk": n(ks[2], (C, C)), "bk": n(ks[3], (C,)),
        "wv": n(ks[4], (C, C)), "bv": n(ks[5], (C,)),
        "wo": n(ks[6], (C, C)), "bo": n(ks[7], (C,)),
        # FFN
        "w1": n(ks[8], (C, F)), "b1": n(ks[9], (F,)),
        "w2": n(ks[10], (F, C)), "b2": n(ks[11], (C,)),
        # LayerNorms
        "ln1_g": jnp.ones((C,), jnp.float32), "ln1_b": jnp.zeros((C,), jnp.float32),
        "ln2_g": jnp.ones((C,), jnp.float32), "ln2_b": jnp.zeros((C,), jnp.float32),
    }


def prepare_params(params, num_heads):
    """One-time prep: fold q scaling into wq/bq and stack the QKV projection."""
    C = params["wq"].shape[0]
    scaling = (C // num_heads) ** -0.5
    p = dict(params)
    p["wqkv"] = jnp.concatenate(
        [params["wq"] * scaling, params["wk"], params["wv"]], axis=1)   # (C, 3C)
    p["bqkv"] = jnp.concatenate(
        [params["bq"] * scaling, params["bk"], params["bv"]])           # (3C,)
    return p


# ---------------------------------- demo main ----------------------------------

if __name__ == "__main__":
    # Small but lane-aligned encoder-layer config: seq 16, batch 2, embed 256,
    # 4 heads (head_dim 64 -> head group of 4 = 256 lanes), ffn 512.
    T, B, C, H, F = 16, 2, 256, 4, 512

    key = jax.random.PRNGKey(0)
    k_x, k_p, k_m = jax.random.split(key, 3)

    x = jax.random.normal(k_x, (T, B, C), dtype=jnp.float32)
    params = prepare_params(make_params(k_p, C, H, F), H)

    # padding mask: batch element 1 has its last 2 positions padded
    encoder_padding_mask = jnp.zeros((B, T), dtype=bool).at[1, -2:].set(True)
    # additive attention bias ("bias of attention matrix"), shape (B*H, T, T)
    attn_mask = 0.1 * jax.random.normal(k_m, (B * H, T, T), dtype=jnp.float32)

    layer = jax.jit(functools.partial(unified_pm_encoder_layer,
                                      num_heads=H,
                                      normalize_before=True,
                                      need_head_weights=False))
    x_out, attn, pair_rep = layer(x, params, encoder_padding_mask, attn_mask)

    jax.block_until_ready((x_out, attn, pair_rep))
    assert x_out.shape == (T, B, C)
    assert attn.shape == (B, T, T)
    assert pair_rep.shape == (B, H, T, T)
    assert bool(jnp.all(jnp.isfinite(x_out)))
    assert bool(jnp.all(jnp.isfinite(attn)))
    assert bool(jnp.all(jnp.isfinite(pair_rep)))
    print("KERNEL_OK")
</pallas_src>

<mosaic_0001>
module attributes {stable_mosaic.version = 11 : i64} {
  func.func @_ln_matmul_kernel(%arg0: i32, %arg1: i32, %arg2: memref<32x256xf32, #tpu.memory_space<vmem>>, %arg3: memref<1x256xf32, #tpu.memory_space<vmem>>, %arg4: memref<1x256xf32, #tpu.memory_space<vmem>>, %arg5: memref<256x384xf32, #tpu.memory_space<vmem>>, %arg6: memref<1x384xf32, #tpu.memory_space<vmem>>, %arg7: memref<32x384xf32, #tpu.memory_space<vmem>>, %arg8: memref<32x256xf32, #tpu.memory_space<vmem>>) attributes {dimension_semantics = [#tpu.dimension_semantics<parallel>, #tpu.dimension_semantics<arbitrary>], iteration_bounds = array<i64: 1, 2>, scalar_prefetch = 0 : i64, scratch_operands = 1 : i64, tpu.core_type = #tpu.core_type<tc>, window_params = [{transform_indices = @transform_0, window_bounds = array<i64: 32, 256>}, {pipeline_mode = #tpu.pipeline_mode<synchronous>, transform_indices = @transform_1, window_bounds = array<i64: 1, 256>}, {pipeline_mode = #tpu.pipeline_mode<synchronous>, transform_indices = @transform_2, window_bounds = array<i64: 1, 256>}, {transform_indices = @transform_3, window_bounds = array<i64: 256, 384>}, {transform_indices = @transform_4, window_bounds = array<i64: 1, 384>}, {transform_indices = @transform_5, window_bounds = array<i64: 32, 384>}]} {
    %c0_i32 = arith.constant 0 : i32
    %0 = arith.cmpi eq, %arg1, %c0_i32 : i32
    %1 = arith.extui %0 : i1 to i32
    %c0_i32_0 = arith.constant 0 : i32
    %2 = arith.cmpi ne, %1, %c0_i32_0 : i32
    scf.if %2 {
      %c0_8 = arith.constant 0 : index
      %c0_9 = arith.constant 0 : index
      %10 = vector.load %arg2[%c0_8, %c0_9] : memref<32x256xf32, #tpu.memory_space<vmem>>, vector<32x256xf32>
      %c0_10 = arith.constant 0 : index
      %c0_11 = arith.constant 0 : index
      %11 = vector.load %arg3[%c0_10, %c0_11] : memref<1x256xf32, #tpu.memory_space<vmem>>, vector<1x256xf32>
      %c0_12 = arith.constant 0 : index
      %c0_13 = arith.constant 0 : index
      %12 = vector.load %arg4[%c0_12, %c0_13] : memref<1x256xf32, #tpu.memory_space<vmem>>, vector<1x256xf32>
      %cst_14 = arith.constant dense<0.000000e+00> : vector<32xf32>
      %13 = vector.multi_reduction <add>, %10, %cst_14 [1] : vector<32x256xf32> to vector<32xf32>
      %14 = vector.shape_cast %13 : vector<32xf32> to vector<32x1xf32>
      %cst_15 = arith.constant 2.560000e+02 : f32
      %15 = vector.broadcast %cst_15 : f32 to vector<32x1xf32>
      %16 = arith.divf %14, %15 : vector<32x1xf32>
      %17 = vector.broadcast %16 : vector<32x1xf32> to vector<32x256xf32>
      %18 = arith.subf %10, %17 : vector<32x256xf32>
      %19 = arith.mulf %18, %18 : vector<32x256xf32>
      %cst_16 = arith.constant dense<0.000000e+00> : vector<32xf32>
      %20 = vector.multi_reduction <add>, %19, %cst_16 [1] : vector<32x256xf32> to vector<32xf32>
      %21 = vector.shape_cast %20 : vector<32xf32> to vector<32x1xf32>
      %cst_17 = arith.constant 2.560000e+02 : f32
      %22 = vector.broadcast %cst_17 : f32 to vector<32x1xf32>
      %23 = arith.divf %21, %22 : vector<32x1xf32>
      %24 = vector.broadcast %16 : vector<32x1xf32> to vector<32x256xf32>
      %25 = arith.subf %10, %24 : vector<32x256xf32>
      %cst_18 = arith.constant 9.99999974E-6 : f32
      %26 = vector.broadcast %cst_18 : f32 to vector<32x1xf32>
      %27 = arith.addf %23, %26 : vector<32x1xf32>
      %28 = math.rsqrt %27 : vector<32x1xf32>
      %29 = vector.broadcast %28 : vector<32x1xf32> to vector<32x256xf32>
      %30 = arith.mulf %25, %29 : vector<32x256xf32>
      %31 = vector.broadcast %11 : vector<1x256xf32> to vector<32x256xf32>
      %32 = arith.mulf %30, %31 : vector<32x256xf32>
      %33 = vector.broadcast %12 : vector<1x256xf32> to vector<32x256xf32>
      %34 = arith.addf %32, %33 : vector<32x256xf32>
      %c0_19 = arith.constant 0 : index
      %c0_20 = arith.constant 0 : index
      %35 = vector.load %arg8[%c0_19, %c0_20] : memref<32x256xf32, #tpu.memory_space<vmem>>, vector<32x256xf32>
      tpu.vector_store %arg8[%c0_19, %c0_20], %34 {strides = array<i32>} : memref<32x256xf32, #tpu.memory_space<vmem>>, vector<32x256xf32>,
    } else {
    }
    %c0 = arith.constant 0 : index
    %c0_1 = arith.constant 0 : index
    %3 = vector.load %arg8[%c0, %c0_1] : memref<32x256xf32, #tpu.memory_space<vmem>>, vector<32x256xf32>
    %c0_2 = arith.constant 0 : index
    %c0_3 = arith.constant 0 : index
    %4 = vector.load %arg5[%c0_2, %c0_3] : memref<256x384xf32, #tpu.memory_space<vmem>>, vector<256x384xf32>
    %cst = arith.constant dense<0.000000e+00> : vector<32x384xf32>
    %5 = tpu.matmul %3, %4, %cst {dimension_numbers = #tpu.dot_dimension_numbers<[1], [0], [0], [1], [0, 0, 1, 1], [], []>} : vector<32x256xf32>, vector<256x384xf32>, vector<32x384xf32> -> vector<32x384xf32>
    %c0_4 = arith.constant 0 : index
    %c0_5 = arith.constant 0 : index
    %6 = vector.load %arg6[%c0_4, %c0_5] : memref<1x384xf32, #tpu.memory_space<vmem>>, vector<1x384xf32>
    %7 = vector.broadcast %6 : vector<1x384xf32> to vector<32x384xf32>
    %8 = arith.addf %5, %7 : vector<32x384xf32>
    %c0_6 = arith.constant 0 : index
    %c0_7 = arith.constant 0 : index
    %9 = vector.load %arg7[%c0_6, %c0_7] : memref<32x384xf32, #tpu.memory_space<vmem>>, vector<32x384xf32>
    tpu.vector_store %arg7[%c0_6, %c0_7], %8 {strides = array<i32>} : memref<32x384xf32, #tpu.memory_space<vmem>>, vector<32x384xf32>,
    return
  }
  func.func @transform_0(%arg0: i32, %arg1: i32) -> (i32, i32) {
    %c0_i32 = arith.constant 0 : i32
    %c0_i32_0 = arith.constant 0 : i32
    return %arg0, %c0_i32 : i32, i32
  }
  func.func @transform_1(%arg0: i32, %arg1: i32) -> (i32, i32) {
    %c0_i32 = arith.constant 0 : i32
    %c0_i32_0 = arith.constant 0 : i32
    %c0_i32_1 = arith.constant 0 : i32
    return %c0_i32, %c0_i32_0 : i32, i32
  }
  func.func @transform_2(%arg0: i32, %arg1: i32) -> (i32, i32) {
    %c0_i32 = arith.constant 0 : i32
    %c0_i32_0 = arith.constant 0 : i32
    %c0_i32_1 = arith.constant 0 : i32
    return %c0_i32, %c0_i32_0 : i32, i32
  }
  func.func @transform_3(%arg0: i32, %arg1: i32) -> (i32, i32) {
    %c0_i32 = arith.constant 0 : i32
    %c0_i32_0 = arith.constant 0 : i32
    return %c0_i32, %arg1 : i32, i32
  }
  func.func @transform_4(%arg0: i32, %arg1: i32) -> (i32, i32) {
    %c0_i32 = arith.constant 0 : i32
    %c0_i32_0 = arith.constant 0 : i32
    return %c0_i32, %arg1 : i32, i32
  }
  func.func @transform_5(%arg0: i32, %arg1: i32) -> (i32, i32) {
    %c0_i32 = arith.constant 0 : i32
    return %arg0, %arg1 : i32, i32
  }
}

module attributes {stable_mosaic.version = 11 : i64} {
  func.func @_ffn_kernel(%arg0: i32, %arg1: i32, %arg2: memref<32x256xf32, #tpu.memory_space<vmem>>, %arg3: memref<1x256xf32, #tpu.memory_space<vmem>>, %arg4: memref<1x256xf32, #tpu.memory_space<vmem>>, %arg5: memref<256x512xf32, #tpu.memory_space<vmem>>, %arg6: memref<1x512xf32, #tpu.memory_space<vmem>>, %arg7: memref<512x256xf32, #tpu.memory_space<vmem>>, %arg8: memref<1x256xf32, #tpu.memory_space<vmem>>, %arg9: memref<32x256xf32, #tpu.memory_space<vmem>>, %arg10: memref<32x256xf32, #tpu.memory_space<vmem>>, %arg11: memref<32x256xf32, #tpu.memory_space<vmem>>, %arg12: memref<32x256xf32, #tpu.memory_space<vmem>>) attributes {dimension_semantics = [#tpu.dimension_semantics<parallel>, #tpu.dimension_semantics<arbitrary>], iteration_bounds = array<i64: 1, 1>, scalar_prefetch = 0 : i64, scratch_operands = 2 : i64, tpu.core_type = #tpu.core_type<tc>, window_params = [{transform_indices = @transform_0, window_bounds = array<i64: 32, 256>}, {pipeline_mode = #tpu.pipeline_mode<synchronous>, transform_indices = @transform_1, window_bounds = array<i64: 1, 256>}, {pipeline_mode = #tpu.pipeline_mode<synchronous>, transform_indices = @transform_2, window_bounds = array<i64: 1, 256>}, {transform_indices = @transform_3, window_bounds = array<i64: 256, 512>}, {transform_indices = @transform_4, window_bounds = array<i64: 1, 512>}, {transform_indices = @transform_5, window_bounds = array<i64: 512, 256>}, {pipeline_mode = #tpu.pipeline_mode<synchronous>, transform_indices = @transform_6, window_bounds = array<i64: 1, 256>}, {transform_indices = @transform_7, window_bounds = array<i64: 32, 256>}, {transform_indices = @transform_8, window_bounds = array<i64: 32, 256>}]} {
    %c0_i32 = arith.constant 0 : i32
    %0 = arith.cmpi eq, %arg1, %c0_i32 : i32
    %1 = arith.extui %0 : i1 to i32
    %c0_i32_0 = arith.constant 0 : i32
    %2 = arith.cmpi ne, %1, %c0_i32_0 : i32
    scf.if %2 {
      %c0_18 = arith.constant 0 : index
      %c0_19 = arith.constant 0 : index
      %25 = vector.load %arg2[%c0_18, %c0_19] : memref<32x256xf32, #tpu.memory_space<vmem>>, vector<32x256xf32>
      %c0_20 = arith.constant 0 : index
      %c0_21 = arith.constant 0 : index
      %26 = vector.load %arg3[%c0_20, %c0_21] : memref<1x256xf32, #tpu.memory_space<vmem>>, vector<1x256xf32>
      %c0_22 = arith.constant 0 : index
      %c0_23 = arith.constant 0 : index
      %27 = vector.load %arg4[%c0_22, %c0_23] : memref<1x256xf32, #tpu.memory_space<vmem>>, vector<1x256xf32>
      %cst_24 = arith.constant dense<0.000000e+00> : vector<32xf32>
      %28 = vector.multi_reduction <add>, %25, %cst_24 [1] : vector<32x256xf32> to vector<32xf32>
      %29 = vector.shape_cast %28 : vector<32xf32> to vector<32x1xf32>
      %cst_25 = arith.constant 2.560000e+02 : f32
      %30 = vector.broadcast %cst_25 : f32 to vector<32x1xf32>
      %31 = arith.divf %29, %30 : vector<32x1xf32>
      %32 = vector.broadcast %31 : vector<32x1xf32> to vector<32x256xf32>
      %33 = arith.subf %25, %32 : vector<32x256xf32>
      %34 = arith.mulf %33, %33 : vector<32x256xf32>
      %cst_26 = arith.constant dense<0.000000e+00> : vector<32xf32>
      %35 = vector.multi_reduction <add>, %34, %cst_26 [1] : vector<32x256xf32> to vector<32xf32>
      %36 = vector.shape_cast %35 : vector<32xf32> to vector<32x1xf32>
      %cst_27 = arith.constant 2.560000e+02 : f32
      %37 = vector.broadcast %cst_27 : f32 to vector<32x1xf32>
      %38 = arith.divf %36, %37 : vector<32x1xf32>
      %39 = vector.broadcast %31 : vector<32x1xf32> to vector<32x256xf32>
      %40 = arith.subf %25, %39 : vector<32x256xf32>
      %cst_28 = arith.constant 9.99999974E-6 : f32
      %41 = vector.broadcast %cst_28 : f32 to vector<32x1xf32>
      %42 = arith.addf %38, %41 : vector<32x1xf32>
      %43 = math.rsqrt %42 : vector<32x1xf32>
      %44 = vector.broadcast %43 : vector<32x1xf32> to vector<32x256xf32>
      %45 = arith.mulf %40, %44 : vector<32x256xf32>
      %46 = vector.broadcast %26 : vector<1x256xf32> to vector<32x256xf32>
      %47 = arith.mulf %45, %46 : vector<32x256xf32>
      %48 = vector.broadcast %27 : vector<1x256xf32> to vector<32x256xf32>
      %49 = arith.addf %47, %48 : vector<32x256xf32>
      %c0_29 = arith.constant 0 : index
      %c0_30 = arith.constant 0 : index
      %50 = vector.load %arg11[%c0_29, %c0_30] : memref<32x256xf32, #tpu.memory_space<vmem>>, vector<32x256xf32>
      tpu.vector_store %arg11[%c0_29, %c0_30], %49 {strides = array<i32>} : memref<32x256xf32, #tpu.memory_space<vmem>>, vector<32x256xf32>,
      %cst_31 = arith.constant 0.000000e+00 : f32
      %51 = vector.broadcast %cst_31 : f32 to vector<32x256xf32>
      %c0_32 = arith.constant 0 : index
      %c0_33 = arith.constant 0 : index
      %52 = vector.load %arg12[%c0_32, %c0_33] : memref<32x256xf32, #tpu.memory_space<vmem>>, vector<32x256xf32>
      tpu.vector_store %arg12[%c0_32, %c0_33], %51 {strides = array<i32>} : memref<32x256xf32, #tpu.memory_space<vmem>>, vector<32x256xf32>,
    } else {
    }
    %c0 = arith.constant 0 : index
    %c0_1 = arith.constant 0 : index
    %3 = vector.load %arg11[%c0, %c0_1] : memref<32x256xf32, #tpu.memory_space<vmem>>, vector<32x256xf32>
    %c0_2 = arith.constant 0 : index
    %c0_3 = arith.constant 0 : index
    %4 = vector.load %arg5[%c0_2, %c0_3] : memref<256x512xf32, #tpu.memory_space<vmem>>, vector<256x512xf32>
    %cst = arith.constant dense<0.000000e+00> : vector<32x512xf32>
    %5 = tpu.matmul %3, %4, %cst {dimension_numbers = #tpu.dot_dimension_numbers<[1], [0], [0], [1], [0, 0, 1, 1], [], []>} : vector<32x256xf32>, vector<256x512xf32>, vector<32x512xf32> -> vector<32x512xf32>
    %c0_4 = arith.constant 0 : index
    %c0_5 = arith.constant 0 : index
    %6 = vector.load %arg6[%c0_4, %c0_5] : memref<1x512xf32, #tpu.memory_space<vmem>>, vector<1x512xf32>
    %7 = vector.broadcast %6 : vector<1x512xf32> to vector<32x512xf32>
    %8 = arith.addf %5, %7 : vector<32x512xf32>
    %cst_6 = arith.constant 5.000000e-01 : f32
    %9 = vector.broadcast %cst_6 : f32 to vector<32x512xf32>
    %10 = arith.mulf %9, %8 : vector<32x512xf32>
    %cst_7 = arith.constant 0.707106769 : f32
    %11 = vector.broadcast %cst_7 : f32 to vector<32x512xf32>
    %12 = arith.mulf %8, %11 : vector<32x512xf32>
    %13 = math.erf %12 : vector<32x512xf32>
    %cst_8 = arith.constant 1.000000e+00 : f32
    %14 = vector.broadcast %cst_8 : f32 to vector<32x512xf32>
    %15 = arith.addf %14, %13 : vector<32x512xf32>
    %16 = arith.mulf %10, %15 : vector<32x512xf32>
    %c0_9 = arith.constant 0 : index
    %c0_10 = arith.constant 0 : index
    %17 = vector.load %arg12[%c0_9, %c0_10] : memref<32x256xf32, #tpu.memory_space<vmem>>, vector<32x256xf32>
    %c0_11 = arith.constant 0 : index
    %c0_12 = arith.constant 0 : index
    %18 = vector.load %arg7[%c0_11, %c0_12] : memref<512x256xf32, #tpu.memory_space<vmem>>, vector<512x256xf32>
    %cst_13 = arith.constant dense<0.000000e+00> : vector<32x256xf32>
    %19 = tpu.matmul %16, %18, %cst_13 {dimension_numbers = #tpu.dot_dimension_numbers<[1], [0], [0], [1], [0, 0, 1, 1], [], []>} : vector<32x512xf32>, vector<512x256xf32>, vector<32x256xf32> -> vector<32x256xf32>
    %20 = arith.addf %17, %19 : vector<32x256xf32>
    %c0_14 = arith.constant 0 : index
    %c0_15 = arith.constant 0 : index
    %21 = vector.load %arg12[%c0_14, %c0_15] : memref<32x256xf32, #tpu.memory_space<vmem>>, vector<32x256xf32>
    tpu.vector_store %arg12[%c0_14, %c0_15], %20 {strides = array<i32>} : memref<32x256xf32, #tpu.memory_space<vmem>>, vector<32x256xf32>,
    %c0_i32_16 = arith.constant 0 : i32
    %22 = arith.cmpi eq, %arg1, %c0_i32_16 : i32
    %23 = arith.extui %22 : i1 to i32
    %c0_i32_17 = arith.constant 0 : i32
    %24 = arith.cmpi ne, %23, %c0_i32_17 : i32
    scf.if %24 {
      %c0_18 = arith.constant 0 : index
      %c0_19 = arith.constant 0 : index
      %25 = vector.load %arg12[%c0_18, %c0_19] : memref<32x256xf32, #tpu.memory_space<vmem>>, vector<32x256xf32>
      %c0_20 = arith.constant 0 : index
      %c0_21 = arith.constant 0 : index
      %26 = vector.load %arg8[%c0_20, %c0_21] : memref<1x256xf32, #tpu.memory_space<vmem>>, vector<1x256xf32>
      %27 = vector.broadcast %26 : vector<1x256xf32> to vector<32x256xf32>
      %28 = arith.addf %25, %27 : vector<32x256xf32>
      %c0_22 = arith.constant 0 : index
      %c0_23 = arith.constant 0 : index
      %29 = vector.load %arg9[%c0_22, %c0_23] : memref<32x256xf32, #tpu.memory_space<vmem>>, vector<32x256xf32>
      %30 = arith.addf %28, %29 : vector<32x256xf32>
      %c0_24 = arith.constant 0 : index
      %c0_25 = arith.constant 0 : index
      %31 = vector.load %arg10[%c0_24, %c0_25] : memref<32x256xf32, #tpu.memory_space<vmem>>, vector<32x256xf32>
      tpu.vector_store %arg10[%c0_24, %c0_25], %30 {strides = array<i32>} : memref<32x256xf32, #tpu.memory_space<vmem>>, vector<32x256xf32>,
    } else {
    }
    return
  }
  func.func @transform_0(%arg0: i32, %arg1: i32) -> (i32, i32) {
    %c0_i32 = arith.constant 0 : i32
    %c0_i32_0 = arith.constant 0 : i32
    return %arg0, %c0_i32 : i32, i32
  }
  func.func @transform_1(%arg0: i32, %arg1: i32) -> (i32, i32) {
    %c0_i32 = arith.constant 0 : i32
    %c0_i32_0 = arith.constant 0 : i32
    %c0_i32_1 = arith.constant 0 : i32
    return %c0_i32, %c0_i32_0 : i32, i32
  }
  func.func @transform_2(%arg0: i32, %arg1: i32) -> (i32, i32) {
    %c0_i32 = arith.constant 0 : i32
    %c0_i32_0 = arith.constant 0 : i32
    %c0_i32_1 = arith.constant 0 : i32
    return %c0_i32, %c0_i32_0 : i32, i32
  }
  func.func @transform_3(%arg0: i32, %arg1: i32) -> (i32, i32) {
    %c0_i32 = arith.constant 0 : i32
    %c0_i32_0 = arith.constant 0 : i32
    return %c0_i32, %arg1 : i32, i32
  }
  func.func @transform_4(%arg0: i32, %arg1: i32) -> (i32, i32) {
    %c0_i32 = arith.constant 0 : i32
    %c0_i32_0 = arith.constant 0 : i32
    return %c0_i32, %arg1 : i32, i32
  }
  func.func @transform_5(%arg0: i32, %arg1: i32) -> (i32, i32) {
    %c0_i32 = arith.constant 0 : i32
    %c0_i32_0 = arith.constant 0 : i32
    return %arg1, %c0_i32 : i32, i32
  }
  func.func @transform_6(%arg0: i32, %arg1: i32) -> (i32, i32) {
    %c0_i32 = arith.constant 0 : i32
    %c0_i32_0 = arith.constant 0 : i32
    %c0_i32_1 = arith.constant 0 : i32
    return %c0_i32, %c0_i32_0 : i32, i32
  }
  func.func @transform_7(%arg0: i32, %arg1: i32) -> (i32, i32) {
    %c0_i32 = arith.constant 0 : i32
    %c0_i32_0 = arith.constant 0 : i32
    return %arg0, %c0_i32 : i32, i32
  }
  func.func @transform_8(%arg0: i32, %arg1: i32) -> (i32, i32) {
    %c0_i32 = arith.constant 0 : i32
    %c0_i32_0 = arith.constant 0 : i32
    return %arg0, %c0_i32 : i32, i32
  }
}

module attributes {stable_mosaic.version = 11 : i64} {
  func.func @_attn_kernel(%arg0: i32, %arg1: i32, %arg2: i32, %arg3: memref<16x256xf32, #tpu.memory_space<vmem>>, %arg4: memref<16x256xf32, #tpu.memory_space<vmem>>, %arg5: memref<16x256xf32, #tpu.memory_space<vmem>>, %arg6: memref<16x64xf32, #tpu.memory_space<vmem>>, %arg7: memref<16x64xf32, #tpu.memory_space<vmem>>, %arg8: memref<16x64xf32, #tpu.memory_space<vmem>>, %arg9: memref<16x64xf32, #tpu.memory_space<vmem>>, %arg10: memref<1x4x16x16xf32, #tpu.memory_space<vmem>>, %arg11: memref<1x1x16xf32, #tpu.memory_space<vmem>>, %arg12: memref<16x256xf32, #tpu.memory_space<vmem>>, %arg13: memref<1x4x16x16xf32, #tpu.memory_space<vmem>>, %arg14: memref<1x16x16xf32, #tpu.memory_space<vmem>>) attributes {dimension_semantics = [#tpu.dimension_semantics<parallel>, #tpu.dimension_semantics<parallel>, #tpu.dimension_semantics<arbitrary>], iteration_bounds = array<i64: 2, 1, 1>, scalar_prefetch = 0 : i64, scratch_operands = 0 : i64, tpu.core_type = #tpu.core_type<tc>, window_params = [{transform_indices = @transform_0, window_bounds = array<i64: 16, 256>}, {transform_indices = @transform_1, window_bounds = array<i64: 16, 256>}, {transform_indices = @transform_2, window_bounds = array<i64: 16, 256>}, {transform_indices = @transform_3, window_bounds = array<i64: 16, 64>}, {transform_indices = @transform_4, window_bounds = array<i64: 16, 64>}, {pipeline_mode = #tpu.pipeline_mode<synchronous>, transform_indices = @transform_5, window_bounds = array<i64: 16, 64>}, {pipeline_mode = #tpu.pipeline_mode<synchronous>, transform_indices = @transform_6, window_bounds = array<i64: 16, 64>}, {transform_indices = @transform_7, window_bounds = array<i64: 1, 4, 16, 16>}, {transform_indices = @transform_8, window_bounds = array<i64: 1, 1, 16>}, {transform_indices = @transform_9, window_bounds = array<i64: 16, 256>}, {transform_indices = @transform_10, window_bounds = array<i64: 1, 4, 16, 16>}, {transform_indices = @transform_11, window_bounds = array<i64: 1, 16, 16>}]} {
    %c0 = arith.constant 0 : index
    %c0_0 = arith.constant 0 : index
    %0 = vector.load %arg6[%c0, %c0_0] : memref<16x64xf32, #tpu.memory_space<vmem>>, vector<16x64xf32>
    %c0_1 = arith.constant 0 : index
    %c0_2 = arith.constant 0 : index
    %1 = vector.load %arg7[%c0_1, %c0_2] : memref<16x64xf32, #tpu.memory_space<vmem>>, vector<16x64xf32>
    %c0_3 = arith.constant 0 : index
    %c0_4 = arith.constant 0 : index
    %2 = vector.load %arg8[%c0_3, %c0_4] : memref<16x64xf32, #tpu.memory_space<vmem>>, vector<16x64xf32>
    %c0_5 = arith.constant 0 : index
    %c0_6 = arith.constant 0 : index
    %3 = vector.load %arg9[%c0_5, %c0_6] : memref<16x64xf32, #tpu.memory_space<vmem>>, vector<16x64xf32>
    %c0_7 = arith.constant 0 : index
    %c0_8 = arith.constant 0 : index
    %c0_9 = arith.constant 0 : index
    %4 = vector.load %arg11[%c0_7, %c0_8, %c0_9] : memref<1x1x16xf32, #tpu.memory_space<vmem>>, vector<1x1x16xf32>
    %5 = vector.shape_cast %4 : vector<1x1x16xf32> to vector<1x16xf32>
    %c0_i32 = arith.constant 0 : i32
    %6 = arith.cmpi eq, %arg2, %c0_i32 : i32
    %7 = arith.extui %6 : i1 to i32
    %c0_i32_10 = arith.constant 0 : i32
    %8 = arith.cmpi ne, %7, %c0_i32_10 : i32
    scf.if %8 {
      %cst_96 = arith.constant 0.000000e+00 : f32
      %184 = vector.broadcast %cst_96 : f32 to vector<1x16x16xf32>
      %c0_97 = arith.constant 0 : index
      %c0_98 = arith.constant 0 : index
      %c0_99 = arith.constant 0 : index
      %185 = vector.load %arg14[%c0_97, %c0_98, %c0_99] : memref<1x16x16xf32, #tpu.memory_space<vmem>>, vector<1x16x16xf32>
      tpu.vector_store %arg14[%c0_97, %c0_98, %c0_99], %184 {strides = array<i32>} : memref<1x16x16xf32, #tpu.memory_space<vmem>>, vector<1x16x16xf32>,
    } else {
    }
    %c0_11 = arith.constant 0 : index
    %c0_12 = arith.constant 0 : index
    %9 = vector.load %arg3[%c0_11, %c0_12] : memref<16x256xf32, #tpu.memory_space<vmem>>, vector<16x64xf32>
    %10 = vector.extract_strided_slice %9 {offsets = [0, 32], sizes = [16, 32], strides = [1, 1]} : vector<16x64xf32> to vector<16x32xf32>
    %cst = arith.constant 0.000000e+00 : f32
    %11 = vector.broadcast %cst : f32 to vector<16x32xf32>
    %12 = arith.subf %11, %10 : vector<16x32xf32>
    %13 = vector.extract_strided_slice %9 {offsets = [0, 0], sizes = [16, 32], strides = [1, 1]} : vector<16x64xf32> to vector<16x32xf32>
    %14 = tpu.concatenate %12, %13 in 1 : vector<16x32xf32>, vector<16x32xf32> -> vector<16x64xf32>
    %15 = arith.mulf %9, %0 : vector<16x64xf32>
    %16 = arith.mulf %14, %1 : vector<16x64xf32>
    %17 = arith.addf %15, %16 : vector<16x64xf32>
    %c0_13 = arith.constant 0 : index
    %c0_14 = arith.constant 0 : index
    %18 = vector.load %arg4[%c0_13, %c0_14] : memref<16x256xf32, #tpu.memory_space<vmem>>, vector<16x64xf32>
    %19 = vector.extract_strided_slice %18 {offsets = [0, 32], sizes = [16, 32], strides = [1, 1]} : vector<16x64xf32> to vector<16x32xf32>
    %cst_15 = arith.constant 0.000000e+00 : f32
    %20 = vector.broadcast %cst_15 : f32 to vector<16x32xf32>
    %21 = arith.subf %20, %19 : vector<16x32xf32>
    %22 = vector.extract_strided_slice %18 {offsets = [0, 0], sizes = [16, 32], strides = [1, 1]} : vector<16x64xf32> to vector<16x32xf32>
    %23 = tpu.concatenate %21, %22 in 1 : vector<16x32xf32>, vector<16x32xf32> -> vector<16x64xf32>
    %24 = arith.mulf %18, %2 : vector<16x64xf32>
    %25 = arith.mulf %23, %3 : vector<16x64xf32>
    %26 = arith.addf %24, %25 : vector<16x64xf32>
    %cst_16 = arith.constant dense<0.000000e+00> : vector<16x16xf32>
    %27 = tpu.matmul %17, %26, %cst_16 {dimension_numbers = #tpu.dot_dimension_numbers<[1], [1], [0], [0], [0, 0, 1, 0], [], []>} : vector<16x64xf32>, vector<16x64xf32>, vector<16x16xf32> -> vector<16x16xf32>
    %c0_17 = arith.constant 0 : index
    %c0_18 = arith.constant 0 : index
    %c0_19 = arith.constant 0 : index
    %c0_20 = arith.constant 0 : index
    %28 = vector.load %arg10[%c0_17, %c0_18, %c0_19, %c0_20] : memref<1x4x16x16xf32, #tpu.memory_space<vmem>>, vector<1x1x16x16xf32>
    %29 = vector.shape_cast %28 : vector<1x1x16x16xf32> to vector<16x16xf32>
    %30 = arith.addf %27, %29 : vector<16x16xf32>
    %31 = vector.broadcast %5 : vector<1x16xf32> to vector<16x16xf32>
    %32 = arith.addf %30, %31 : vector<16x16xf32>
    %c0_21 = arith.constant 0 : index
    %c0_22 = arith.constant 0 : index
    %c0_23 = arith.constant 0 : index
    %c0_24 = arith.constant 0 : index
    %33 = vector.load %arg13[%c0_21, %c0_22, %c0_23, %c0_24] : memref<1x4x16x16xf32, #tpu.memory_space<vmem>>, vector<1x1x16x16xf32>
    %34 = vector.shape_cast %33 : vector<1x1x16x16xf32> to vector<16x16xf32>
    %35 = vector.shape_cast %32 : vector<16x16xf32> to vector<1x1x16x16xf32>
    tpu.vector_store %arg13[%c0_21, %c0_22, %c0_23, %c0_24], %35 {strides = array<i32>} : memref<1x4x16x16xf32, #tpu.memory_space<vmem>>, vector<1x1x16x16xf32>,
    %cst_25 = arith.constant dense<0xFF800000> : vector<16xf32>
    %36 = vector.multi_reduction <maximumf>, %32, %cst_25 [1] : vector<16x16xf32> to vector<16xf32>
    %37 = vector.shape_cast %36 : vector<16xf32> to vector<16x1xf32>
    %38 = vector.broadcast %37 : vector<16x1xf32> to vector<16x16xf32>
    %39 = arith.subf %32, %38 : vector<16x16xf32>
    %40 = math.exp %39 : vector<16x16xf32>
    %cst_26 = arith.constant dense<0.000000e+00> : vector<16xf32>
    %41 = vector.multi_reduction <add>, %40, %cst_26 [1] : vector<16x16xf32> to vector<16xf32>
    %42 = vector.shape_cast %41 : vector<16xf32> to vector<16x1xf32>
    %43 = tpu.reciprocal %42 : vector<16x1xf32> -> vector<16x1xf32>
    %44 = vector.broadcast %43 : vector<16x1xf32> to vector<16x16xf32>
    %45 = arith.mulf %40, %44 : vector<16x16xf32>
    %cst_27 = arith.constant 2.500000e-01 : f32
    %46 = vector.broadcast %cst_27 : f32 to vector<16x16xf32>
    %47 = arith.mulf %45, %46 : vector<16x16xf32>
    %c0_28 = arith.constant 0 : index
    %c0_29 = arith.constant 0 : index
    %48 = vector.load %arg5[%c0_28, %c0_29] : memref<16x256xf32, #tpu.memory_space<vmem>>, vector<16x64xf32>
    %cst_30 = arith.constant dense<0.000000e+00> : vector<16x64xf32>
    %49 = tpu.matmul %45, %48, %cst_30 {dimension_numbers = #tpu.dot_dimension_numbers<[1], [0], [0], [1], [0, 0, 1, 1], [], []>} : vector<16x16xf32>, vector<16x64xf32>, vector<16x64xf32> -> vector<16x64xf32>
    %c0_31 = arith.constant 0 : index
    %c64 = arith.constant 64 : index
    %50 = vector.load %arg3[%c0_31, %c64] : memref<16x256xf32, #tpu.memory_space<vmem>>, vector<16x64xf32>
    %51 = vector.extract_strided_slice %50 {offsets = [0, 32], sizes = [16, 32], strides = [1, 1]} : vector<16x64xf32> to vector<16x32xf32>
    %cst_32 = arith.constant 0.000000e+00 : f32
    %52 = vector.broadcast %cst_32 : f32 to vector<16x32xf32>
    %53 = arith.subf %52, %51 : vector<16x32xf32>
    %54 = vector.extract_strided_slice %50 {offsets = [0, 0], sizes = [16, 32], strides = [1, 1]} : vector<16x64xf32> to vector<16x32xf32>
    %55 = tpu.concatenate %53, %54 in 1 : vector<16x32xf32>, vector<16x32xf32> -> vector<16x64xf32>
    %56 = arith.mulf %50, %0 : vector<16x64xf32>
    %57 = arith.mulf %55, %1 : vector<16x64xf32>
    %58 = arith.addf %56, %57 : vector<16x64xf32>
    %c0_33 = arith.constant 0 : index
    %c64_34 = arith.constant 64 : index
    %59 = vector.load %arg4[%c0_33, %c64_34] : memref<16x256xf32, #tpu.memory_space<vmem>>, vector<16x64xf32>
    %60 = vector.extract_strided_slice %59 {offsets = [0, 32], sizes = [16, 32], strides = [1, 1]} : vector<16x64xf32> to vector<16x32xf32>
    %cst_35 = arith.constant 0.000000e+00 : f32
    %61 = vector.broadcast %cst_35 : f32 to vector<16x32xf32>
    %62 = arith.subf %61, %60 : vector<16x32xf32>
    %63 = vector.extract_strided_slice %59 {offsets = [0, 0], sizes = [16, 32], strides = [1, 1]} : vector<16x64xf32> to vector<16x32xf32>
    %64 = tpu.concatenate %62, %63 in 1 : vector<16x32xf32>, vector<16x32xf32> -> vector<16x64xf32>
    %65 = arith.mulf %59, %2 : vector<16x64xf32>
    %66 = arith.mulf %64, %3 : vector<16x64xf32>
    %67 = arith.addf %65, %66 : vector<16x64xf32>
    %cst_36 = arith.constant dense<0.000000e+00> : vector<16x16xf32>
    %68 = tpu.matmul %58, %67, %cst_36 {dimension_numbers = #tpu.dot_dimension_numbers<[1], [1], [0], [0], [0, 0, 1, 0], [], []>} : vector<16x64xf32>, vector<16x64xf32>, vector<16x16xf32> -> vector<16x16xf32>
    %c0_37 = arith.constant 0 : index
    %c1 = arith.constant 1 : index
    %c0_38 = arith.constant 0 : index
    %c0_39 = arith.constant 0 : index
    %69 = vector.load %arg10[%c0_37, %c1, %c0_38, %c0_39] : memref<1x4x16x16xf32, #tpu.memory_space<vmem>>, vector<1x1x16x16xf32>
    %70 = vector.shape_cast %69 : vector<1x1x16x16xf32> to vector<16x16xf32>
    %71 = arith.addf %68, %70 : vector<16x16xf32>
    %72 = vector.broadcast %5 : vector<1x16xf32> to vector<16x16xf32>
    %73 = arith.addf %71, %72 : vector<16x16xf32>
    %c0_40 = arith.constant 0 : index
    %c1_41 = arith.constant 1 : index
    %c0_42 = arith.constant 0 : index
    %c0_43 = arith.constant 0 : index
    %74 = vector.load %arg13[%c0_40, %c1_41, %c0_42, %c0_43] : memref<1x4x16x16xf32, #tpu.memory_space<vmem>>, vector<1x1x16x16xf32>
    %75 = vector.shape_cast %74 : vector<1x1x16x16xf32> to vector<16x16xf32>
    %76 = vector.shape_cast %73 : vector<16x16xf32> to vector<1x1x16x16xf32>
    tpu.vector_store %arg13[%c0_40, %c1_41, %c0_42, %c0_43], %76 {strides = array<i32>} : memref<1x4x16x16xf32, #tpu.memory_space<vmem>>, vector<1x1x16x16xf32>,
    %cst_44 = arith.constant dense<0xFF800000> : vector<16xf32>
    %77 = vector.multi_reduction <maximumf>, %73, %cst_44 [1] : vector<16x16xf32> to vector<16xf32>
    %78 = vector.shape_cast %77 : vector<16xf32> to vector<16x1xf32>
    %79 = vector.broadcast %78 : vector<16x1xf32> to vector<16x16xf32>
    %80 = arith.subf %73, %79 : vector<16x16xf32>
    %81 = math.exp %80 : vector<16x16xf32>
    %cst_45 = arith.constant dense<0.000000e+00> : vector<16xf32>
    %82 = vector.multi_reduction <add>, %81, %cst_45 [1] : vector<16x16xf32> to vector<16xf32>
    %83 = vector.shape_cast %82 : vector<16xf32> to vector<16x1xf32>
    %84 = tpu.reciprocal %83 : vector<16x1xf32> -> vector<16x1xf32>
    %85 = vector.broadcast %84 : vector<16x1xf32> to vector<16x16xf32>
    %86 = arith.mulf %81, %85 : vector<16x16xf32>
    %cst_46 = arith.constant 2.500000e-01 : f32
    %87 = vector.broadcast %cst_46 : f32 to vector<16x16xf32>
    %88 = arith.mulf %86, %87 : vector<16x16xf32>
    %89 = arith.addf %47, %88 : vector<16x16xf32>
    %c0_47 = arith.constant 0 : index
    %c64_48 = arith.constant 64 : index
    %90 = vector.load %arg5[%c0_47, %c64_48] : memref<16x256xf32, #tpu.memory_space<vmem>>, vector<16x64xf32>
    %cst_49 = arith.constant dense<0.000000e+00> : vector<16x64xf32>
    %91 = tpu.matmul %86, %90, %cst_49 {dimension_numbers = #tpu.dot_dimension_numbers<[1], [0], [0], [1], [0, 0, 1, 1], [], []>} : vector<16x16xf32>, vector<16x64xf32>, vector<16x64xf32> -> vector<16x64xf32>
    %c0_50 = arith.constant 0 : index
    %c128 = arith.constant 128 : index
    %92 = vector.load %arg3[%c0_50, %c128] : memref<16x256xf32, #tpu.memory_space<vmem>>, vector<16x64xf32>
    %93 = vector.extract_strided_slice %92 {offsets = [0, 32], sizes = [16, 32], strides = [1, 1]} : vector<16x64xf32> to vector<16x32xf32>
    %cst_51 = arith.constant 0.000000e+00 : f32
    %94 = vector.broadcast %cst_51 : f32 to vector<16x32xf32>
    %95 = arith.subf %94, %93 : vector<16x32xf32>
    %96 = vector.extract_strided_slice %92 {offsets = [0, 0], sizes = [16, 32], strides = [1, 1]} : vector<16x64xf32> to vector<16x32xf32>
    %97 = tpu.concatenate %95, %96 in 1 : vector<16x32xf32>, vector<16x32xf32> -> vector<16x64xf32>
    %98 = arith.mulf %92, %0 : vector<16x64xf32>
    %99 = arith.mulf %97, %1 : vector<16x64xf32>
    %100 = arith.addf %98, %99 : vector<16x64xf32>
    %c0_52 = arith.constant 0 : index
    %c128_53 = arith.constant 128 : index
    %101 = vector.load %arg4[%c0_52, %c128_53] : memref<16x256xf32, #tpu.memory_space<vmem>>, vector<16x64xf32>
    %102 = vector.extract_strided_slice %101 {offsets = [0, 32], sizes = [16, 32], strides = [1, 1]} : vector<16x64xf32> to vector<16x32xf32>
    %cst_54 = arith.constant 0.000000e+00 : f32
    %103 = vector.broadcast %cst_54 : f32 to vector<16x32xf32>
    %104 = arith.subf %103, %102 : vector<16x32xf32>
    %105 = vector.extract_strided_slice %101 {offsets = [0, 0], sizes = [16, 32], strides = [1, 1]} : vector<16x64xf32> to vector<16x32xf32>
    %106 = tpu.concatenate %104, %105 in 1 : vector<16x32xf32>, vector<16x32xf32> -> vector<16x64xf32>
    %107 = arith.mulf %101, %2 : vector<16x64xf32>
    %108 = arith.mulf %106, %3 : vector<16x64xf32>
    %109 = arith.addf %107, %108 : vector<16x64xf32>
    %cst_55 = arith.constant dense<0.000000e+00> : vector<16x16xf32>
    %110 = tpu.matmul %100, %109, %cst_55 {dimension_numbers = #tpu.dot_dimension_numbers<[1], [1], [0], [0], [0, 0, 1, 0], [], []>} : vector<16x64xf32>, vector<16x64xf32>, vector<16x16xf32> -> vector<16x16xf32>
    %c0_56 = arith.constant 0 : index
    %c2 = arith.constant 2 : index
    %c0_57 = arith.constant 0 : index
    %c0_58 = arith.constant 0 : index
    %111 = vector.load %arg10[%c0_56, %c2, %c0_57, %c0_58] : memref<1x4x16x16xf32, #tpu.memory_space<vmem>>, vector<1x1x16x16xf32>
    %112 = vector.shape_cast %111 : vector<1x1x16x16xf32> to vector<16x16xf32>
    %113 = arith.addf %110, %112 : vector<16x16xf32>
    %114 = vector.broadcast %5 : vector<1x16xf32> to vector<16x16xf32>
    %115 = arith.addf %113, %114 : vector<16x16xf32>
    %c0_59 = arith.constant 0 : index
    %c2_60 = arith.constant 2 : index
    %c0_61 = arith.constant 0 : index
    %c0_62 = arith.constant 0 : index
    %116 = vector.load %arg13[%c0_59, %c2_60, %c0_61, %c0_62] : memref<1x4x16x16xf32, #tpu.memory_space<vmem>>, vector<1x1x16x16xf32>
    %117 = vector.shape_cast %116 : vector<1x1x16x16xf32> to vector<16x16xf32>
    %118 = vector.shape_cast %115 : vector<16x16xf32> to vector<1x1x16x16xf32>
    tpu.vector_store %arg13[%c0_59, %c2_60, %c0_61, %c0_62], %118 {strides = array<i32>} : memref<1x4x16x16xf32, #tpu.memory_space<vmem>>, vector<1x1x16x16xf32>,
    %cst_63 = arith.constant dense<0xFF800000> : vector<16xf32>
    %119 = vector.multi_reduction <maximumf>, %115, %cst_63 [1] : vector<16x16xf32> to vector<16xf32>
    %120 = vector.shape_cast %119 : vector<16xf32> to vector<16x1xf32>
    %121 = vector.broadcast %120 : vector<16x1xf32> to vector<16x16xf32>
    %122 = arith.subf %115, %121 : vector<16x16xf32>
    %123 = math.exp %122 : vector<16x16xf32>
    %cst_64 = arith.constant dense<0.000000e+00> : vector<16xf32>
    %124 = vector.multi_reduction <add>, %123, %cst_64 [1] : vector<16x16xf32> to vector<16xf32>
    %125 = vector.shape_cast %124 : vector<16xf32> to vector<16x1xf32>
    %126 = tpu.reciprocal %125 : vector<16x1xf32> -> vector<16x1xf32>
    %127 = vector.broadcast %126 : vector<16x1xf32> to vector<16x16xf32>
    %128 = arith.mulf %123, %127 : vector<16x16xf32>
    %cst_65 = arith.constant 2.500000e-01 : f32
    %129 = vector.broadcast %cst_65 : f32 to vector<16x16xf32>
    %130 = arith.mulf %128, %129 : vector<16x16xf32>
    %131 = arith.addf %89, %130 : vector<16x16xf32>
    %c0_66 = arith.constant 0 : index
    %c128_67 = arith.constant 128 : index
    %132 = vector.load %arg5[%c0_66, %c128_67] : memref<16x256xf32, #tpu.memory_space<vmem>>, vector<16x64xf32>
    %cst_68 = arith.constant dense<0.000000e+00> : vector<16x64xf32>
    %133 = tpu.matmul %128, %132, %cst_68 {dimension_numbers = #tpu.dot_dimension_numbers<[1], [0], [0], [1], [0, 0, 1, 1], [], []>} : vector<16x16xf32>, vector<16x64xf32>, vector<16x64xf32> -> vector<16x64xf32>
    %c0_69 = arith.constant 0 : index
    %c192 = arith.constant 192 : index
    %134 = vector.load %arg3[%c0_69, %c192] : memref<16x256xf32, #tpu.memory_space<vmem>>, vector<16x64xf32>
    %135 = vector.extract_strided_slice %134 {offsets = [0, 32], sizes = [16, 32], strides = [1, 1]} : vector<16x64xf32> to vector<16x32xf32>
    %cst_70 = arith.constant 0.000000e+00 : f32
    %136 = vector.broadcast %cst_70 : f32 to vector<16x32xf32>
    %137 = arith.subf %136, %135 : vector<16x32xf32>
    %138 = vector.extract_strided_slice %134 {offsets = [0, 0], sizes = [16, 32], strides = [1, 1]} : vector<16x64xf32> to vector<16x32xf32>
    %139 = tpu.concatenate %137, %138 in 1 : vector<16x32xf32>, vector<16x32xf32> -> vector<16x64xf32>
    %140 = arith.mulf %134, %0 : vector<16x64xf32>
    %141 = arith.mulf %139, %1 : vector<16x64xf32>
    %142 = arith.addf %140, %141 : vector<16x64xf32>
    %c0_71 = arith.constant 0 : index
    %c192_72 = arith.constant 192 : index
    %143 = vector.load %arg4[%c0_71, %c192_72] : memref<16x256xf32, #tpu.memory_space<vmem>>, vector<16x64xf32>
    %144 = vector.extract_strided_slice %143 {offsets = [0, 32], sizes = [16, 32], strides = [1, 1]} : vector<16x64xf32> to vector<16x32xf32>
    %cst_73 = arith.constant 0.000000e+00 : f32
    %145 = vector.broadcast %cst_73 : f32 to vector<16x32xf32>
    %146 = arith.subf %145, %144 : vector<16x32xf32>
    %147 = vector.extract_strided_slice %143 {offsets = [0, 0], sizes = [16, 32], strides = [1, 1]} : vector<16x64xf32> to vector<16x32xf32>
    %148 = tpu.concatenate %146, %147 in 1 : vector<16x32xf32>, vector<16x32xf32> -> vector<16x64xf32>
    %149 = arith.mulf %143, %2 : vector<16x64xf32>
    %150 = arith.mulf %148, %3 : vector<16x64xf32>
    %151 = arith.addf %149, %150 : vector<16x64xf32>
    %cst_74 = arith.constant dense<0.000000e+00> : vector<16x16xf32>
    %152 = tpu.matmul %142, %151, %cst_74 {dimension_numbers = #tpu.dot_dimension_numbers<[1], [1], [0], [0], [0, 0, 1, 0], [], []>} : vector<16x64xf32>, vector<16x64xf32>, vector<16x16xf32> -> vector<16x16xf32>
    %c0_75 = arith.constant 0 : index
    %c3 = arith.constant 3 : index
    %c0_76 = arith.constant 0 : index
    %c0_77 = arith.constant 0 : index
    %153 = vector.load %arg10[%c0_75, %c3, %c0_76, %c0_77] : memref<1x4x16x16xf32, #tpu.memory_space<vmem>>, vector<1x1x16x16xf32>
    %154 = vector.shape_cast %153 : vector<1x1x16x16xf32> to vector<16x16xf32>
    %155 = arith.addf %152, %154 : vector<16x16xf32>
    %156 = vector.broadcast %5 : vector<1x16xf32> to vector<16x16xf32>
    %157 = arith.addf %155, %156 : vector<16x16xf32>
    %c0_78 = arith.constant 0 : index
    %c3_79 = arith.constant 3 : index
    %c0_80 = arith.constant 0 : index
    %c0_81 = arith.constant 0 : index
    %158 = vector.load %arg13[%c0_78, %c3_79, %c0_80, %c0_81] : memref<1x4x16x16xf32, #tpu.memory_space<vmem>>, vector<1x1x16x16xf32>
    %159 = vector.shape_cast %158 : vector<1x1x16x16xf32> to vector<16x16xf32>
    %160 = vector.shape_cast %157 : vector<16x16xf32> to vector<1x1x16x16xf32>
    tpu.vector_store %arg13[%c0_78, %c3_79, %c0_80, %c0_81], %160 {strides = array<i32>} : memref<1x4x16x16xf32, #tpu.memory_space<vmem>>, vector<1x1x16x16xf32>,
    %cst_82 = arith.constant dense<0xFF800000> : vector<16xf32>
    %161 = vector.multi_reduction <maximumf>, %157, %cst_82 [1] : vector<16x16xf32> to vector<16xf32>
    %162 = vector.shape_cast %161 : vector<16xf32> to vector<16x1xf32>
    %163 = vector.broadcast %162 : vector<16x1xf32> to vector<16x16xf32>
    %164 = arith.subf %157, %163 : vector<16x16xf32>
    %165 = math.exp %164 : vector<16x16xf32>
    %cst_83 = arith.constant dense<0.000000e+00> : vector<16xf32>
    %166 = vector.multi_reduction <add>, %165, %cst_83 [1] : vector<16x16xf32> to vector<16xf32>
    %167 = vector.shape_cast %166 : vector<16xf32> to vector<16x1xf32>
    %168 = tpu.reciprocal %167 : vector<16x1xf32> -> vector<16x1xf32>
    %169 = vector.broadcast %168 : vector<16x1xf32> to vector<16x16xf32>
    %170 = arith.mulf %165, %169 : vector<16x16xf32>
    %cst_84 = arith.constant 2.500000e-01 : f32
    %171 = vector.broadcast %cst_84 : f32 to vector<16x16xf32>
    %172 = arith.mulf %170, %171 : vector<16x16xf32>
    %173 = arith.addf %131, %172 : vector<16x16xf32>
    %c0_85 = arith.constant 0 : index
    %c192_86 = arith.constant 192 : index
    %174 = vector.load %arg5[%c0_85, %c192_86] : memref<16x256xf32, #tpu.memory_space<vmem>>, vector<16x64xf32>
    %cst_87 = arith.constant dense<0.000000e+00> : vector<16x64xf32>
    %175 = tpu.matmul %170, %174, %cst_87 {dimension_numbers = #tpu.dot_dimension_numbers<[1], [0], [0], [1], [0, 0, 1, 1], [], []>} : vector<16x16xf32>, vector<16x64xf32>, vector<16x64xf32> -> vector<16x64xf32>
    %c0_88 = arith.constant 0 : index
    %c0_89 = arith.constant 0 : index
    %c0_90 = arith.constant 0 : index
    %176 = vector.load %arg14[%c0_88, %c0_89, %c0_90] : memref<1x16x16xf32, #tpu.memory_space<vmem>>, vector<1x16x16xf32>
    %177 = vector.shape_cast %176 : vector<1x16x16xf32> to vector<16x16xf32>
    %178 = arith.addf %177, %173 : vector<16x16xf32>
    %c0_91 = arith.constant 0 : index
    %c0_92 = arith.constant 0 : index
    %c0_93 = arith.constant 0 : index
    %179 = vector.load %arg14[%c0_91, %c0_92, %c0_93] : memref<1x16x16xf32, #tpu.memory_space<vmem>>, vector<1x16x16xf32>
    %180 = vector.shape_cast %179 : vector<1x16x16xf32> to vector<16x16xf32>
    %181 = vector.shape_cast %178 : vector<16x16xf32> to vector<1x16x16xf32>
    tpu.vector_store %arg14[%c0_91, %c0_92, %c0_93], %181 {strides = array<i32>} : memref<1x16x16xf32, #tpu.memory_space<vmem>>, vector<1x16x16xf32>,
    %182 = tpu.concatenate %49, %91, %133, %175 in 1 : vector<16x64xf32>, vector<16x64xf32>, vector<16x64xf32>, vector<16x64xf32> -> vector<16x256xf32>
    %c0_94 = arith.constant 0 : index
    %c0_95 = arith.constant 0 : index
    %183 = vector.load %arg12[%c0_94, %c0_95] : memref<16x256xf32, #tpu.memory_space<vmem>>, vector<16x256xf32>
    tpu.vector_store %arg12[%c0_94, %c0_95], %182 {strides = array<i32>} : memref<16x256xf32, #tpu.memory_space<vmem>>, vector<16x256xf32>,
    return
  }
  func.func @transform_0(%arg0: i32, %arg1: i32, %arg2: i32) -> (i32, i32) {
    %c3_i32 = arith.constant 3 : i32
    %0 = arith.muli %arg0, %c3_i32 : i32
    %c1_i32 = arith.constant 1 : i32
    %1 = arith.muli %0, %c1_i32 : i32
    %2 = arith.addi %1, %arg2 : i32
    %c0_i32 = arith.constant 0 : i32
    return %arg1, %2 : i32, i32
  }
  func.func @transform_1(%arg0: i32, %arg1: i32, %arg2: i32) -> (i32, i32) {
    %c3_i32 = arith.constant 3 : i32
    %0 = arith.muli %arg0, %c3_i32 : i32
    %c1_i32 = arith.constant 1 : i32
    %1 = arith.muli %0, %c1_i32 : i32
    %c1_i32_0 = arith.constant 1 : i32
    %2 = arith.addi %1, %c1_i32_0 : i32
    %3 = arith.addi %2, %arg2 : i32
    %c0_i32 = arith.constant 0 : i32
    %c0_i32_1 = arith.constant 0 : i32
    return %c0_i32, %3 : i32, i32
  }
  func.func @transform_2(%arg0: i32, %arg1: i32, %arg2: i32) -> (i32, i32) {
    %c3_i32 = arith.constant 3 : i32
    %0 = arith.muli %arg0, %c3_i32 : i32
    %c1_i32 = arith.constant 1 : i32
    %1 = arith.muli %0, %c1_i32 : i32
    %c2_i32 = arith.constant 2 : i32
    %2 = arith.addi %1, %c2_i32 : i32
    %3 = arith.addi %2, %arg2 : i32
    %c0_i32 = arith.constant 0 : i32
    %c0_i32_0 = arith.constant 0 : i32
    return %c0_i32, %3 : i32, i32
  }
  func.func @transform_3(%arg0: i32, %arg1: i32, %arg2: i32) -> (i32, i32) {
    %c0_i32 = arith.constant 0 : i32
    %c0_i32_0 = arith.constant 0 : i32
    return %arg1, %c0_i32 : i32, i32
  }
  func.func @transform_4(%arg0: i32, %arg1: i32, %arg2: i32) -> (i32, i32) {
    %c0_i32 = arith.constant 0 : i32
    %c0_i32_0 = arith.constant 0 : i32
    return %arg1, %c0_i32 : i32, i32
  }
  func.func @transform_5(%arg0: i32, %arg1: i32, %arg2: i32) -> (i32, i32) {
    %c0_i32 = arith.constant 0 : i32
    %c0_i32_0 = arith.constant 0 : i32
    %c0_i32_1 = arith.constant 0 : i32
    return %c0_i32, %c0_i32_0 : i32, i32
  }
  func.func @transform_6(%arg0: i32, %arg1: i32, %arg2: i32) -> (i32, i32) {
    %c0_i32 = arith.constant 0 : i32
    %c0_i32_0 = arith.constant 0 : i32
    %c0_i32_1 = arith.constant 0 : i32
    return %c0_i32, %c0_i32_0 : i32, i32
  }
  func.func @transform_7(%arg0: i32, %arg1: i32, %arg2: i32) -> (i32, i32, i32, i32) {
    %c0_i32 = arith.constant 0 : i32
    %c0_i32_0 = arith.constant 0 : i32
    return %arg0, %arg2, %arg1, %c0_i32 : i32, i32, i32, i32
  }
  func.func @transform_8(%arg0: i32, %arg1: i32, %arg2: i32) -> (i32, i32, i32) {
    %c0_i32 = arith.constant 0 : i32
    %c0_i32_0 = arith.constant 0 : i32
    %c0_i32_1 = arith.constant 0 : i32
    return %arg0, %c0_i32, %c0_i32_0 : i32, i32, i32
  }
  func.func @transform_9(%arg0: i32, %arg1: i32, %arg2: i32) -> (i32, i32) {
    %c1_i32 = arith.constant 1 : i32
    %0 = arith.muli %arg0, %c1_i32 : i32
    %1 = arith.addi %0, %arg2 : i32
    %c0_i32 = arith.constant 0 : i32
    return %arg1, %1 : i32, i32
  }
  func.func @transform_10(%arg0: i32, %arg1: i32, %arg2: i32) -> (i32, i32, i32, i32) {
    %c0_i32 = arith.constant 0 : i32
    %c0_i32_0 = arith.constant 0 : i32
    return %arg0, %arg2, %arg1, %c0_i32 : i32, i32, i32, i32
  }
  func.func @transform_11(%arg0: i32, %arg1: i32, %arg2: i32) -> (i32, i32, i32) {
    %c0_i32 = arith.constant 0 : i32
    %c0_i32_0 = arith.constant 0 : i32
    return %arg0, %arg1, %c0_i32 : i32, i32, i32
  }
}

module attributes {stable_mosaic.version = 11 : i64} {
  func.func @_matmul_residual_kernel(%arg0: i32, %arg1: i32, %arg2: memref<32x256xf32, #tpu.memory_space<vmem>>, %arg3: memref<256x256xf32, #tpu.memory_space<vmem>>, %arg4: memref<1x256xf32, #tpu.memory_space<vmem>>, %arg5: memref<32x256xf32, #tpu.memory_space<vmem>>, %arg6: memref<32x256xf32, #tpu.memory_space<vmem>>) attributes {dimension_semantics = [#tpu.dimension_semantics<parallel>, #tpu.dimension_semantics<parallel>], iteration_bounds = array<i64: 1, 1>, scalar_prefetch = 0 : i64, scratch_operands = 0 : i64, tpu.core_type = #tpu.core_type<tc>, window_params = [{transform_indices = @transform_0, window_bounds = array<i64: 32, 256>}, {transform_indices = @transform_1, window_bounds = array<i64: 256, 256>}, {transform_indices = @transform_2, window_bounds = array<i64: 1, 256>}, {transform_indices = @transform_3, window_bounds = array<i64: 32, 256>}, {transform_indices = @transform_4, window_bounds = array<i64: 32, 256>}]} {
    %c0 = arith.constant 0 : index
    %c0_0 = arith.constant 0 : index
    %0 = vector.load %arg2[%c0, %c0_0] : memref<32x256xf32, #tpu.memory_space<vmem>>, vector<32x256xf32>
    %c0_1 = arith.constant 0 : index
    %c0_2 = arith.constant 0 : index
    %1 = vector.load %arg3[%c0_1, %c0_2] : memref<256x256xf32, #tpu.memory_space<vmem>>, vector<256x256xf32>
    %cst = arith.constant dense<0.000000e+00> : vector<32x256xf32>
    %2 = tpu.matmul %0, %1, %cst {dimension_numbers = #tpu.dot_dimension_numbers<[1], [0], [0], [1], [0, 0, 1, 1], [], []>} : vector<32x256xf32>, vector<256x256xf32>, vector<32x256xf32> -> vector<32x256xf32>
    %c0_3 = arith.constant 0 : index
    %c0_4 = arith.constant 0 : index
    %3 = vector.load %arg4[%c0_3, %c0_4] : memref<1x256xf32, #tpu.memory_space<vmem>>, vector<1x256xf32>
    %4 = vector.broadcast %3 : vector<1x256xf32> to vector<32x256xf32>
    %5 = arith.addf %2, %4 : vector<32x256xf32>
    %c0_5 = arith.constant 0 : index
    %c0_6 = arith.constant 0 : index
    %6 = vector.load %arg5[%c0_5, %c0_6] : memref<32x256xf32, #tpu.memory_space<vmem>>, vector<32x256xf32>
    %7 = arith.addf %5, %6 : vector<32x256xf32>
    %c0_7 = arith.constant 0 : index
    %c0_8 = arith.constant 0 : index
    %8 = vector.load %arg6[%c0_7, %c0_8] : memref<32x256xf32, #tpu.memory_space<vmem>>, vector<32x256xf32>
    tpu.vector_store %arg6[%c0_7, %c0_8], %7 {strides = array<i32>} : memref<32x256xf32, #tpu.memory_space<vmem>>, vector<32x256xf32>,
    return
  }
  func.func @transform_0(%arg0: i32, %arg1: i32) -> (i32, i32) {
    %c0_i32 = arith.constant 0 : i32
    %c0_i32_0 = arith.constant 0 : i32
    return %arg0, %c0_i32 : i32, i32
  }
  func.func @transform_1(%arg0: i32, %arg1: i32) -> (i32, i32) {
    %c0_i32 = arith.constant 0 : i32
    %c0_i32_0 = arith.constant 0 : i32
    return %c0_i32, %arg1 : i32, i32
  }
  func.func @transform_2(%arg0: i32, %arg1: i32) -> (i32, i32) {
    %c0_i32 = arith.constant 0 : i32
    %c0_i32_0 = arith.constant 0 : i32
    return %c0_i32, %arg1 : i32, i32
  }
  func.func @transform_3(%arg0: i32, %arg1: i32) -> (i32, i32) {
    %c0_i32 = arith.constant 0 : i32
    return %arg0, %arg1 : i32, i32
  }
  func.func @transform_4(%arg0: i32, %arg1: i32) -> (i32, i32) {
    %c0_i32 = arith.constant 0 : i32
    return %arg0, %arg1 : i32, i32
  }
}

</mosaic_0001>

<llo_original>
// kernel: unified_pm_encoder_layer.6
$region0: #{unified_pm_encoder_layer.6}
  #allocation0 [shape = 'u32[]', space=smem, size = 0x4, offset = 0x4, fixed_abs, tag = 'smem constant byte address 0x4 - core index']
  #allocation1 [shape = 'u32[144,128]{1,0:T(1,128)}', space=vmem, size = 0x12000, scoped, tag = 'internal scratch']
  %s0 = inlined_call_operand.hbm [shape: f32[32,256], index: 0, kind: input, shape index: {}]
  %s1 = inlined_call_operand.hbm [shape: f32[256,256], index: 1, kind: input, shape index: {}]
  %s2 = inlined_call_operand.hbm [shape: f32[1,256], index: 2, kind: input, shape index: {}]
  %s3 = inlined_call_operand.hbm [shape: f32[32,256], index: 3, kind: input, shape index: {}]
  %s4 = inlined_call_operand.hbm [shape: f32[32,256], index: 4, kind: output, shape index: {}]
  %s5 = sld [smem:[#allocation0]]
  $region42: #{unified_pm_encoder_layer.6} parent=0
    _
  %s7 = ssub.s32 1, %s5
  %s8 = scalar_select 0, %s7, %s5
  $region1: #{unified_pm_encoder_layer.6} parent=0
    #allocation2 [shape = 'u8[32768]{0}', space=vmem, size = 0x8000, scoped, tag = 'input window, operand 0, single buffered']
    #allocation3 [shape = 's32[1]{0}', space=sflag, size = 0x4, scoped, tag = 'scoped memory for unified_pm_encoder_layer.6']
    #allocation4 [shape = 's32[1]{0}', space=sflag, size = 0x4, scoped, tag = 'scoped memory for unified_pm_encoder_layer.6']
    #allocation5 [shape = 'u8[262144]{0}', space=vmem, size = 0x40000, scoped, tag = 'input window, operand 1, single buffered']
    #allocation6 [shape = 's32[1]{0}', space=sflag, size = 0x4, scoped, tag = 'scoped memory for unified_pm_encoder_layer.6']
    #allocation7 [shape = 'u8[1024]{0}', space=vmem, size = 0x400, scoped, tag = 'input window, operand 2, single buffered']
    #allocation8 [shape = 'u8[32768]{0}', space=vmem, size = 0x8000, scoped, tag = 'input window, operand 3, single buffered']
    #allocation9 [shape = 's32[1]{0}', space=sflag, size = 0x4, scoped, tag = 'scoped memory for unified_pm_encoder_layer.6']
    #allocation10 [shape = 'u8[32768]{0}', space=vmem, size = 0x8000, scoped, tag = 'output window, operand 0, single buffered']
    %9 = vsyncpa [#allocation3], 0
    %10 = vsyncpa [#allocation6], 0
    %11 = vsyncpa [#allocation9], 0
    %12 = vsyncpa [#allocation4], 0
    // Predicated region
    $region2: #{unified_pm_encoder_layer.6} parent=1 // pred_check
      _
    $region3: #{unified_pm_encoder_layer.6} parent=1 // pred_check_branch
      %14 = sbr.rel (0) target = $region5
    $region4: #{unified_pm_encoder_layer.6} parent=1 // pred_region
      %s16 = ssub.s32 1024, 1024
      %17 = vsyncadd [#allocation3], %s16
      %s18 = sshll.u32 [#allocation2], 4
      %s19 = int_to_ptr.vmem [resolvable:$true] %s18
      %24 = dma.hbm_to_vmem [thread:$0]  %s0, 1024, %s19, [#allocation3], 256, 256, 16
    $region5: #{unified_pm_encoder_layer.6} parent=1 // pred_fallthru
      _
    // Predicated region
    $region6: #{unified_pm_encoder_layer.6} parent=1 // pred_check
      _
    $region7: #{unified_pm_encoder_layer.6} parent=1 // pred_check_branch
      %26 = sbr.rel (0) target = $region9
    $region8: #{unified_pm_encoder_layer.6} parent=1 // pred_region
      %s28 = ssub.s32 8192, 8192
      %29 = vsyncadd [#allocation6], %s28
      %s30 = sshll.u32 [#allocation5], 4
      %s31 = int_to_ptr.vmem [resolvable:$true] %s30
      %36 = dma.hbm_to_vmem [thread:$0]  %s1, 8192, %s31, [#allocation6], 256, 256, 16
    $region9: #{unified_pm_encoder_layer.6} parent=1 // pred_fallthru
      _
    // Predicated region
    $region10: #{unified_pm_encoder_layer.6} parent=1 // pred_check
      _
    $region11: #{unified_pm_encoder_layer.6} parent=1 // pred_check_branch
      %38 = sbr.rel (0) target = $region13
    $region12: #{unified_pm_encoder_layer.6} parent=1 // pred_region
      %s40 = ssub.s32 32, 32
      %41 = vsyncadd [#allocation6], %s40
      %s43 = sshll.u32 [#allocation7], 4
      %s44 = int_to_ptr.vmem [resolvable:$true] %s43
      %46 = dma.hbm_to_vmem [thread:$0]  %s2, 32, %s44, [#allocation6]
    $region13: #{unified_pm_encoder_layer.6} parent=1 // pred_fallthru
      _
    // Predicated region
    $region14: #{unified_pm_encoder_layer.6} parent=1 // pred_check
      _
    $region15: #{unified_pm_encoder_layer.6} parent=1 // pred_check_branch
      %48 = sbr.rel (0) target = $region17
    $region16: #{unified_pm_encoder_layer.6} parent=1 // pred_region
      %s50 = ssub.s32 1024, 1024
      %51 = vsyncadd [#allocation9], %s50
      %s52 = sshll.u32 [#allocation8], 4
      %s53 = int_to_ptr.vmem [resolvable:$true] %s52
      %58 = dma.hbm_to_vmem [thread:$0]  %s3, 1024, %s53, [#allocation9], 256, 256, 16
    $region17: #{unified_pm_encoder_layer.6} parent=1 // pred_fallthru
      _
    // Predicated region
    $region18: #{unified_pm_encoder_layer.6} parent=1 // pred_check
      _
    $region19: #{unified_pm_encoder_layer.6} parent=1 // pred_check_branch
      %60 = sbr.rel (0) target = $region21
    $region20: #{unified_pm_encoder_layer.6} parent=1 // pred_region
      %61 = dma.done [#allocation3], 1024
    $region21: #{unified_pm_encoder_layer.6} parent=1 // pred_fallthru
      _
    // Predicated region
    $region22: #{unified_pm_encoder_layer.6} parent=1 // pred_check
      _
    $region23: #{unified_pm_encoder_layer.6} parent=1 // pred_check_branch
      %63 = sbr.rel (0) target = $region25
    $region24: #{unified_pm_encoder_layer.6} parent=1 // pred_region
      %64 = dma.done [#allocation6], 8192
    $region25: #{unified_pm_encoder_layer.6} parent=1 // pred_fallthru
      _
    // Predicated region
    $region26: #{unified_pm_encoder_layer.6} parent=1 // pred_check
      _
    $region27: #{unified_pm_encoder_layer.6} parent=1 // pred_check_branch
      %66 = sbr.rel (0) target = $region29
    $region28: #{unified_pm_encoder_layer.6} parent=1 // pred_region
      %67 = dma.done [#allocation6], 32
    $region29: #{unified_pm_encoder_layer.6} parent=1 // pred_fallthru
      _
    // Predicated region
    $region30: #{unified_pm_encoder_layer.6} parent=1 // pred_check
      _
    $region31: #{unified_pm_encoder_layer.6} parent=1 // pred_check_branch
      %69 = sbr.rel (0) target = $region33
    $region32: #{unified_pm_encoder_layer.6} parent=1 // pred_region
      %70 = dma.done [#allocation9], 1024
    $region33: #{unified_pm_encoder_layer.6} parent=1 // pred_fallthru
      _
    %v71 = vld [vmem:[#allocation2] sm:$0xff]
    %v72 = vld [vmem:[#allocation2 + $0x8] sm:$0xff]
    %v73 = vld [vmem:[#allocation2 + $0x10] sm:$0xff]
    %v74 = vld [vmem:[#allocation2 + $0x18] sm:$0xff]
    %v75 = vld [vmem:[#allocation2 + $0x20] sm:$0xff]
    %v76 = vld [vmem:[#allocation2 + $0x28] sm:$0xff]
    %v77 = vld [vmem:[#allocation2 + $0x30] sm:$0xff]
    %v78 = vld [vmem:[#allocation2 + $0x38] sm:$0xff]
    %v79 = vld [vmem:[#allocation5] sm:$0xff]
    %v80 = vld [vmem:[#allocation5 + $0x8] sm:$0xff]
    %v81 = vld [vmem:[#allocation5 + $0x10] sm:$0xff]
    %v82 = vld [vmem:[#allocation5 + $0x18] sm:$0xff]
    %v83 = vld [vmem:[#allocation5 + $0x20] sm:$0xff]
    %v84 = vld [vmem:[#allocation5 + $0x28] sm:$0xff]
    %v85 = vld [vmem:[#allocation5 + $0x30] sm:$0xff]
    %v86 = vld [vmem:[#allocation5 + $0x38] sm:$0xff]
    %v87 = vld [vmem:[#allocation5 + $0x40] sm:$0xff]
    %v88 = vld [vmem:[#allocation5 + $0x48] sm:$0xff]
    %v89 = vld [vmem:[#allocation5 + $0x50] sm:$0xff]
    %v90 = vld [vmem:[#allocation5 + $0x58] sm:$0xff]
    %v91 = vld [vmem:[#allocation5 + $0x60] sm:$0xff]
    %v92 = vld [vmem:[#allocation5 + $0x68] sm:$0xff]
    %v93 = vld [vmem:[#allocation5 + $0x70] sm:$0xff]
    %v94 = vld [vmem:[#allocation5 + $0x78] sm:$0xff]
    %v95 = vld [vmem:[#allocation5 + $0x80] sm:$0xff]
    %v96 = vld [vmem:[#allocation5 + $0x88] sm:$0xff]
    %v97 = vld [vmem:[#allocation5 + $0x90] sm:$0xff]
    %v98 = vld [vmem:[#allocation5 + $0x98] sm:$0xff]
    %v99 = vld [vmem:[#allocation5 + $0xa0] sm:$0xff]
    %v100 = vld [vmem:[#allocation5 + $0xa8] sm:$0xff]
    %v101 = vld [vmem:[#allocation5 + $0xb0] sm:$0xff]
    %v102 = vld [vmem:[#allocation5 + $0xb8] sm:$0xff]
    %v103 = vld [vmem:[#allocation5 + $0xc0] sm:$0xff]
    %v104 = vld [vmem:[#allocation5 + $0xc8] sm:$0xff]
    %v105 = vld [vmem:[#allocation5 + $0xd0] sm:$0xff]
    %v106 = vld [vmem:[#allocation5 + $0xd8] sm:$0xff]
    %v107 = vld [vmem:[#allocation5 + $0xe0] sm:$0xff]
    %v108 = vld [vmem:[#allocation5 + $0xe8] sm:$0xff]
    %v109 = vld [vmem:[#allocation5 + $0xf0] sm:$0xff]
    %v110 = vld [vmem:[#allocation5 + $0xf8] sm:$0xff]
    %v111 = vld [vmem:[#allocation5 + $0x100] sm:$0xff]
    %v112 = vld [vmem:[#allocation5 + $0x108] sm:$0xff]
    %v113 = vld [vmem:[#allocation5 + $0x110] sm:$0xff]
    %v114 = vld [vmem:[#allocation5 + $0x118] sm:$0xff]
    %v115 = vld [vmem:[#allocation5 + $0x120] sm:$0xff]
    %v116 = vld [vmem:[#allocation5 + $0x128] sm:$0xff]
    %v117 = vld [vmem:[#allocation5 + $0x130] sm:$0xff]
    %v118 = vld [vmem:[#allocation5 + $0x138] sm:$0xff]
    %v119 = vld [vmem:[#allocation5 + $0x140] sm:$0xff]
    %v120 = vld [vmem:[#allocation5 + $0x148] sm:$0xff]
    %v121 = vld [vmem:[#allocation5 + $0x150] sm:$0xff]
    %v122 = vld [vmem:[#allocation5 + $0x158] sm:$0xff]
    %v123 = vld [vmem:[#allocation5 + $0x160] sm:$0xff]
    %v124 = vld [vmem:[#allocation5 + $0x168] sm:$0xff]
    %v125 = vld [vmem:[#allocation5 + $0x170] sm:$0xff]
    %v126 = vld [vmem:[#allocation5 + $0x178] sm:$0xff]
    %v127 = vld [vmem:[#allocation5 + $0x180] sm:$0xff]
    %v128 = vld [vmem:[#allocation5 + $0x188] sm:$0xff]
    %v129 = vld [vmem:[#allocation5 + $0x190] sm:$0xff]
    %v130 = vld [vmem:[#allocation5 + $0x198] sm:$0xff]
    %v131 = vld [vmem:[#allocation5 + $0x1a0] sm:$0xff]
    %v132 = vld [vmem:[#allocation5 + $0x1a8] sm:$0xff]
    %v133 = vld [vmem:[#allocation5 + $0x1b0] sm:$0xff]
    %v134 = vld [vmem:[#allocation5 + $0x1b8] sm:$0xff]
    %v135 = vld [vmem:[#allocation5 + $0x1c0] sm:$0xff]
    %v136 = vld [vmem:[#allocation5 + $0x1c8] sm:$0xff]
    %v137 = vld [vmem:[#allocation5 + $0x1d0] sm:$0xff]
    %v138 = vld [vmem:[#allocation5 + $0x1d8] sm:$0xff]
    %v139 = vld [vmem:[#allocation5 + $0x1e0] sm:$0xff]
    %v140 = vld [vmem:[#allocation5 + $0x1e8] sm:$0xff]
    %v141 = vld [vmem:[#allocation5 + $0x1f0] sm:$0xff]
    %v142 = vld [vmem:[#allocation5 + $0x1f8] sm:$0xff]
    %v143 = vld [vmem:[#allocation7] sm:$0x3]
    %v145 = vlaneseq
    %v146 = vshrl.u32 %v145, 7
    %v147 = vsub.s32 0, %v146
    %v148 = vrot.slane %v143, %v147
    %v149 = vlaneseq
    %v150 = vshrl.u32 %v149, 7
    %v151 = vsub.s32 1, %v150
    %v152 = vrot.slane %v143, %v151
    %155 = vmatprep.subr.mxu0 %v80
    %156 = vmatpush1.msra.mxu0 %v79
    %157 = vmatprep.subr.mxu0 %v82
    %158 = vmatpush1.msra.mxu0 %v81
    %159 = vmatprep.subr.mxu0 %v84
    %160 = vmatpush1.msra.mxu0 %v83
    %161 = vmatprep.subr.mxu0 %v86
    %162 = vmatpush1.msra.mxu0 %v85
    %163 = vmatprep.subr.mxu0 %v88
    %164 = vmatpush1.msra.mxu0 %v87
    %165 = vmatprep.subr.mxu0 %v90
    %166 = vmatpush1.msra.mxu0 %v89
    %167 = vmatprep.subr.mxu0 %v92
    %168 = vmatpush1.msra.mxu0 %v91
    %169 = vmatprep.subr.mxu0 %v94
    %170 = vmatpush1.msra.mxu0 %v93
    %171 = vmatprep.subr.mxu0 %v96
    %172 = vmatpush1.msra.mxu0 %v95
    %173 = vmatprep.subr.mxu0 %v98
    %174 = vmatpush1.msra.mxu0 %v97
    %175 = vmatprep.subr.mxu0 %v100
    %176 = vmatpush1.msra.mxu0 %v99
    %177 = vmatprep.subr.mxu0 %v102
    %178 = vmatpush1.msra.mxu0 %v101
    %179 = vmatprep.subr.mxu0 %v104
    %180 = vmatpush1.msra.mxu0 %v103
    %181 = vmatprep.subr.mxu0 %v106
    %182 = vmatpush1.msra.mxu0 %v105
    %183 = vmatprep.subr.mxu0 %v108
    %184 = vmatpush1.msra.mxu0 %v107
    %185 = vmatprep.subr.mxu0 %v110
    %186 = vmatpush1.msra.mxu0 %v109
    %187 = vmatprep.subr.mxu0 %v112
    %188 = vmatpush1.msra.mxu0 %v111
    %189 = vmatprep.subr.mxu0 %v114
    %190 = vmatpush1.msra.mxu0 %v113
    %191 = vmatprep.subr.mxu0 %v116
    %192 = vmatpush1.msra.mxu0 %v115
    %193 = vmatprep.subr.mxu0 %v118
    %194 = vmatpush1.msra.mxu0 %v117
    %195 = vmatprep.subr.mxu0 %v120
    %196 = vmatpush1.msra.mxu0 %v119
    %197 = vmatprep.subr.mxu0 %v122
    %198 = vmatpush1.msra.mxu0 %v121
    %199 = vmatprep.subr.mxu0 %v124
    %200 = vmatpush1.msra.mxu0 %v123
    %201 = vmatprep.subr.mxu0 %v126
    %202 = vmatpush1.msra.mxu0 %v125
    %203 = vmatprep.subr.mxu0 %v128
    %204 = vmatpush1.msra.mxu0 %v127
    %205 = vmatprep.subr.mxu0 %v130
    %206 = vmatpush1.msra.mxu0 %v129
    %207 = vmatprep.subr.mxu0 %v132
    %208 = vmatpush1.msra.mxu0 %v131
    %209 = vmatprep.subr.mxu0 %v134
    %210 = vmatpush1.msra.mxu0 %v133
    %211 = vmatprep.subr.mxu0 %v136
    %212 = vmatpush1.msra.mxu0 %v135
    %213 = vmatprep.subr.mxu0 %v138
    %214 = vmatpush1.msra.mxu0 %v137
    %215 = vmatprep.subr.mxu0 %v140
    %216 = vmatpush1.msra.mxu0 %v139
    %217 = vmatprep.subr.mxu0 %v142
    %218 = vmatpush1.msra.mxu0 %v141
    %219 = vmatprep.mubr.f32.mxu0 %v72
    %220 = vmatmul.mubr.f32.gmra.mrb[0].mxu0 %v71
    %v221 = vpop.f32.mrb[0].mxu0
    %v222 = vadd.f32 %v148, %v221
    %v223 = vpop.f32.mrb[0].mxu0
    %v224 = vadd.f32 %v152, %v223
    %225 = vmatprep.mubr.f32.mxu0 %v74
    %226 = vmatmul.mubr.f32.gmra.mrb[0].mxu0 %v73
    %v227 = vpop.f32.mrb[0].mxu0
    %v228 = vadd.f32 %v148, %v227
    %v229 = vpop.f32.mrb[0].mxu0
    %v230 = vadd.f32 %v152, %v229
    %231 = vmatprep.mubr.f32.mxu0 %v76
    %232 = vmatmul.mubr.f32.gmra.mrb[0].mxu0 %v75
    %v233 = vpop.f32.mrb[0].mxu0
    %v234 = vadd.f32 %v148, %v233
    %v235 = vpop.f32.mrb[0].mxu0
    %v236 = vadd.f32 %v152, %v235
    %237 = vmatprep.mubr.f32.mxu0 %v78
    %238 = vmatmul.mubr.f32.gmra.mrb[0].mxu0 %v77
    %v239 = vpop.f32.mrb[0].mxu0
    %v240 = vadd.f32 %v148, %v239
    %v241 = vpop.f32.mrb[0].mxu0
    %v242 = vadd.f32 %v152, %v241
    %243 = vdwg.mxu0
    %v244 = vld [vmem:[#allocation8] sm:$0xff]
    %v245 = vld [vmem:[#allocation8 + $0x8] sm:$0xff]
    %v246 = vld [vmem:[#allocation8 + $0x10] sm:$0xff]
    %v247 = vld [vmem:[#allocation8 + $0x18] sm:$0xff]
    %v248 = vld [vmem:[#allocation8 + $0x20] sm:$0xff]
    %v249 = vld [vmem:[#allocation8 + $0x28] sm:$0xff]
    %v250 = vld [vmem:[#allocation8 + $0x30] sm:$0xff]
    %v251 = vld [vmem:[#allocation8 + $0x38] sm:$0xff]
    %v252 = vadd.f32 %v222, %v244
    %v253 = vadd.f32 %v224, %v245
    %v254 = vadd.f32 %v228, %v246
    %v255 = vadd.f32 %v230, %v247
    %v256 = vadd.f32 %v234, %v248
    %v257 = vadd.f32 %v236, %v249
    %v258 = vadd.f32 %v240, %v250
    %v259 = vadd.f32 %v242, %v251
    %260 = vst [vmem:[#allocation10] sm:$0xff] %v252
    %261 = vst [vmem:[#allocation10 + $0x8] sm:$0xff] %v253
    %262 = vst [vmem:[#allocation10 + $0x10] sm:$0xff] %v254
    %263 = vst [vmem:[#allocation10 + $0x18] sm:$0xff] %v255
    %264 = vst [vmem:[#allocation10 + $0x20] sm:$0xff] %v256
    %265 = vst [vmem:[#allocation10 + $0x28] sm:$0xff] %v257
    %266 = vst [vmem:[#allocation10 + $0x30] sm:$0xff] %v258
    %267 = vst [vmem:[#allocation10 + $0x38] sm:$0xff] %v259
    // Predicated region
    $region34: #{unified_pm_encoder_layer.6} parent=1 // pred_check
      _
    $region35: #{unified_pm_encoder_layer.6} parent=1 // pred_check_branch
      %269 = sbr.rel (0) target = $region37
    $region36: #{unified_pm_encoder_layer.6} parent=1 // pred_region
      %s271 = ssub.s32 1024, 1024
      %272 = vsyncadd [#allocation4], %s271
      %s273 = sshll.u32 [#allocation10], 4
      %s274 = int_to_ptr.vmem [resolvable:$true] %s273
      %279 = dma.vmem_to_hbm [thread:$0]  %s274, 1024, %s4, [#allocation4], 256, 256, 16
    $region37: #{unified_pm_encoder_layer.6} parent=1 // pred_fallthru
      _
    // Predicated region
    $region38: #{unified_pm_encoder_layer.6} parent=1 // pred_check
      _
    $region39: #{unified_pm_encoder_layer.6} parent=1 // pred_check_branch
      %281 = sbr.rel (0) target = $region41
    $region40: #{unified_pm_encoder_layer.6} parent=1 // pred_region
      %282 = dma.done [#allocation4], 1024
    $region41: #{unified_pm_encoder_layer.6} parent=1 // pred_fallthru
      _
    %283 = vsyncpa [#allocation3], 1
    %284 = vsyncpa [#allocation6], 1
    %285 = vsyncpa [#allocation9], 1
    %286 = vsyncpa [#allocation4], 1

// kernel: unified_pm_encoder_layer.4
$region0: #{unified_pm_encoder_layer.4}
  #allocation0 [shape = 'u32[]', space=smem, size = 0x4, offset = 0x4, fixed_abs, tag = 'smem constant byte address 0x4 - core index']
  #allocation1 [shape = 'u32[144,128]{1,0:T(1,128)}', space=vmem, size = 0x12000, scoped, tag = 'internal scratch']
  #allocation2 [shape = 'f32[32,256]{1,0:T(8,128)}', space=vmem, size = 0x8000, scoped, tag = 'scratch operand']
  %s0 = inlined_call_operand.hbm [shape: f32[32,256], index: 0, kind: input, shape index: {}]
  %s1 = inlined_call_operand.hbm [shape: f32[1,256], index: 1, kind: input, shape index: {}]
  %s2 = inlined_call_operand.hbm [shape: f32[1,256], index: 2, kind: input, shape index: {}]
  %s3 = inlined_call_operand.hbm [shape: f32[256,768], index: 3, kind: input, shape index: {}]
  %s4 = inlined_call_operand.hbm [shape: f32[1,768], index: 4, kind: input, shape index: {}]
  %s5 = inlined_call_operand.hbm [shape: f32[32,768], index: 5, kind: output, shape index: {}]
  %s6 = sld [smem:[#allocation0]]
  $region77: #{unified_pm_encoder_layer.4} parent=0
    _
  %s8 = ssub.s32 1, %s6
  %s9 = scalar_select 0, %s8, %s6
  $region1: #{unified_pm_encoder_layer.4} parent=0
    #allocation3 [shape = 'u8[32768]{0}', space=vmem, size = 0x8000, scoped, tag = 'input window, operand 0, single buffered']
    #allocation4 [shape = 's32[2]{0}', space=sflag, size = 0x8, scoped, tag = 'scoped memory for unified_pm_encoder_layer.4']
    #allocation5 [shape = 's32[2]{0}', space=sflag, size = 0x8, scoped, tag = 'scoped memory for unified_pm_encoder_layer.4']
    #allocation6 [shape = 'u8[1024]{0}', space=vmem, size = 0x400, scoped, tag = 'input window, operand 1, single buffered']
    #allocation7 [shape = 's32[1]{0}', space=sflag, size = 0x4, scoped, tag = 'scoped memory for unified_pm_encoder_layer.4']
    #allocation8 [shape = 'u8[1024]{0}', space=vmem, size = 0x400, scoped, tag = 'input window, operand 2, single buffered']
    #allocation9 [shape = 'u8[786432]{0}', space=vmem, size = 0xc0000, scoped, tag = 'input window, operand 3']
    #allocation10 [shape = 's32[2]{0}', space=sflag, size = 0x8, scoped, tag = 'scoped memory for unified_pm_encoder_layer.4']
    #allocation11 [shape = 'u8[3072]{0}', space=vmem, size = 0xc00, scoped, tag = 'input window, operand 4']
    #allocation12 [shape = 'u8[98304]{0}', space=vmem, size = 0x18000, scoped, tag = 'output window, operand 0']
    %10 = vsyncpa [#allocation4], 0
    %11 = vsyncpa [#allocation7], 0
    %12 = vsyncpa [#allocation10], 0
    %s13 = scalar_lea.sflag [#allocation10], 1
    %14 = vsyncpa %s13, 0
    %15 = vsyncpa [#allocation5], 0
    %s16 = scalar_lea.sflag [#allocation5], 1
    %17 = vsyncpa %s16, 0
    loop: start=0, step=1, limit=4
    $region2: #{unified_pm_encoder_layer.4} parent=1 // loop_pre_header
      _
    $region3: #{unified_pm_encoder_layer.4} parent=1 // loop_header
      %s19 = sphi 0, %s23
      %p20 = scmp.ge.s32.totalorder %s19, 4
      %s26 = sphi 0, %s38
      %s27 = sphi 0, %s34
      %s28 = sphi 0, %s26
      %s29 = sphi 0, %s27
      %s30 = sphi 0, %s28
      %s31 = sphi 0, %s29
      %s41 = sphi 0, %s43
      %s44 = sphi 0, %s41
      %s45 = sphi 0, %s44
      %s61 = sphi 0, %s45
      %s65 = sphi 0, %s65
      %s67 = sphi 0, %s65
      %s68 = sphi 0, %s67
      %s82 = sphi 0, %s68
      %s86 = sphi 0, %s86
      %s88 = sphi 0, %s86
      %s89 = sphi 0, %s88
      %s103 = sphi 0, %s89
      %s109 = sphi 0, %s111
      %s112 = sphi 0, %s109
      %s113 = sphi 0, %s112
      %s129 = sphi 0, %s113
      %s135 = sphi 0, %s137
      %s138 = sphi 0, %s135
      %s139 = sphi 0, %s138
      %s155 = sphi 0, %s139
      %s163 = sphi 0, %s165
      %s166 = sphi 0, %s163
      %s167 = sphi 0, %s166
      %s183 = sphi 0, %s167
    $region4: #{unified_pm_encoder_layer.4} parent=1 // loop_header_branch
      %22 = sbr.rel (%p20) target = $region8
    $region5: #{unified_pm_encoder_layer.4} parent=1 // loop_body
      %s24 = ssub.s32 %s19, 1
      %s25 = ssub.s32 %s19, 2
      %s32 = sadd.s32 1, %s27
      %p33 = scmp.ge.s32.totalorder %s32, 2
      %s34 = scalar_select %p33, 0, %s32
      %s35 = sadd.s32 1, %s26
      %s36 = scalar_select %p33, %s35, %s26
      %p37 = scmp.ge.s32.totalorder %s36, 1
      %s38 = scalar_select %p37, 0, %s36
      %s39 = ssub.s32 %s26, %s38
      %p40 = scmp.eq.s32.totalorder %s39, 0
      %s42 = sadd.s32 %s41, 1
      %s43 = scalar_select %p40, %s41, %s42
      %p46 = pneg %p40
      %p47 = scmp.eq.s32.totalorder %s19, 1
      %p48 = por %p46, %p47
      %p49 = scmp.ne.s32.totalorder %s41, %s44
      %p50 = scmp.eq.s32.totalorder %s19, 0
      %p51 = por %p49, %p50
      %p52 = scmp.ne.s32.totalorder %s41, %s44
      %p53 = scmp.eq.s32.totalorder %s24, 1
      %p54 = por %p52, %p53
      %p55 = scmp.ne.s32.totalorder %s44, %s45
      %p56 = scmp.eq.s32.totalorder %s24, 0
      %p57 = por %p55, %p56
      %p58 = scmp.ne.s32.totalorder %s44, %s45
      %p59 = scmp.eq.s32.totalorder %s25, 1
      %p60 = por %p58, %p59
      %p62 = scmp.ne.s32.totalorder %s45, %s61
      %p63 = scmp.eq.s32.totalorder %s25, 0
      %p64 = por %p62, %p63
      %s66 = sadd.s32 %s65, 1
      %p69 = scmp.eq.s32.totalorder %s19, 1
      %p70 = scmp.ne.s32.totalorder %s65, %s67
      %p71 = scmp.eq.s32.totalorder %s19, 0
      %p72 = por %p70, %p71
      %p73 = scmp.ne.s32.totalorder %s65, %s67
      %p74 = scmp.eq.s32.totalorder %s24, 1
      %p75 = por %p73, %p74
      %p76 = scmp.ne.s32.totalorder %s67, %s68
      %p77 = scmp.eq.s32.totalorder %s24, 0
      %p78 = por %p76, %p77
      %p79 = scmp.ne.s32.totalorder %s67, %s68
      %p80 = scmp.eq.s32.totalorder %s25, 1
      %p81 = por %p79, %p80
      %p83 = scmp.ne.s32.totalorder %s68, %s82
      %p84 = scmp.eq.s32.totalorder %s25, 0
      %p85 = por %p83, %p84
      %s87 = sadd.s32 %s86, 1
      %p90 = scmp.eq.s32.totalorder %s19, 1
      %p91 = scmp.ne.s32.totalorder %s86, %s88
      %p92 = scmp.eq.s32.totalorder %s19, 0
      %p93 = por %p91, %p92
      %p94 = scmp.ne.s32.totalorder %s86, %s88
      %p95 = scmp.eq.s32.totalorder %s24, 1
      %p96 = por %p94, %p95
      %p97 = scmp.ne.s32.totalorder %s88, %s89
      %p98 = scmp.eq.s32.totalorder %s24, 0
      %p99 = por %p97, %p98
      %p100 = scmp.ne.s32.totalorder %s88, %s89
      %p101 = scmp.eq.s32.totalorder %s25, 1
      %p102 = por %p100, %p101
      %p104 = scmp.ne.s32.totalorder %s89, %s103
      %p105 = scmp.eq.s32.totalorder %s25, 0
      %p106 = por %p104, %p105
      %s107 = ssub.s32 %s27, %s34
      %p108 = scmp.eq.s32.totalorder %s107, 0
      %s110 = sadd.s32 %s109, 1
      %s111 = scalar_select %p108, %s109, %s110
      %p114 = pneg %p108
      %p115 = scmp.eq.s32.totalorder %s19, 1
      %p116 = por %p114, %p115
      %p117 = scmp.ne.s32.totalorder %s109, %s112
      %p118 = scmp.eq.s32.totalorder %s19, 0
      %p119 = por %p117, %p118
      %p120 = scmp.ne.s32.totalorder %s109, %s112
      %p121 = scmp.eq.s32.totalorder %s24, 1
      %p122 = por %p120, %p121
      %p123 = scmp.ne.s32.totalorder %s112, %s113
      %p124 = scmp.eq.s32.totalorder %s24, 0
      %p125 = por %p123, %p124
      %p126 = scmp.ne.s32.totalorder %s112, %s113
      %p127 = scmp.eq.s32.totalorder %s25, 1
      %p128 = por %p126, %p127
      %p130 = scmp.ne.s32.totalorder %s113, %s129
      %p131 = scmp.eq.s32.totalorder %s25, 0
      %p132 = por %p130, %p131
      %s133 = ssub.s32 %s27, %s34
      %p134 = scmp.eq.s32.totalorder %s133, 0
      %s136 = sadd.s32 %s135, 1
      %s137 = scalar_select %p134, %s135, %s136
      %p140 = pneg %p134
      %p141 = scmp.eq.s32.totalorder %s19, 1
      %p142 = por %p140, %p141
      %p143 = scmp.ne.s32.totalorder %s135, %s138
      %p144 = scmp.eq.s32.totalorder %s19, 0
      %p145 = por %p143, %p144
      %p146 = scmp.ne.s32.totalorder %s135, %s138
      %p147 = scmp.eq.s32.totalorder %s24, 1
      %p148 = por %p146, %p147
      %p149 = scmp.ne.s32.totalorder %s138, %s139
      %p150 = scmp.eq.s32.totalorder %s24, 0
      %p151 = por %p149, %p150
      %p152 = scmp.ne.s32.totalorder %s138, %s139
      %p153 = scmp.eq.s32.totalorder %s25, 1
      %p154 = por %p152, %p153
      %p156 = scmp.ne.s32.totalorder %s139, %s155
      %p157 = scmp.eq.s32.totalorder %s25, 0
      %p158 = por %p156, %p157
      %s159 = ssub.s32 %s26, %s38
      %s160 = ssub.s32 %s27, %s34
      %s161 = sor.u32 %s159, %s160
      %p162 = scmp.eq.s32.totalorder %s161, 0
      %s164 = sadd.s32 %s163, 1
      %s165 = scalar_select %p162, %s163, %s164
      %p168 = pneg %p162
      %p169 = scmp.eq.s32.totalorder %s19, 1
      %p170 = por %p168, %p169
      %p171 = scmp.ne.s32.totalorder %s163, %s166
      %p172 = scmp.eq.s32.totalorder %s19, 0
      %p173 = por %p171, %p172
      %p174 = scmp.ne.s32.totalorder %s163, %s166
      %p175 = scmp.eq.s32.totalorder %s24, 1
      %p176 = por %p174, %p175
      %p177 = scmp.ne.s32.totalorder %s166, %s167
      %p178 = scmp.eq.s32.totalorder %s24, 0
      %p179 = por %p177, %p178
      %p180 = scmp.ne.s32.totalorder %s166, %s167
      %p181 = scmp.eq.s32.totalorder %s25, 1
      %p182 = por %p180, %p181
      %p184 = scmp.ne.s32.totalorder %s167, %s183
      %p185 = scmp.eq.s32.totalorder %s25, 0
      %p186 = por %p184, %p185
      %p187 = scmp.le.s32.totalorder 1, %s19
      %p188 = scmp.lt.s32.totalorder %s19, 3
      %p189 = pnand %p187, %p188
      %p190 = pneg %p189
      // Predicated region
      $region9: #{unified_pm_encoder_layer.4} parent=5 // pred_check
        _
      $region10: #{unified_pm_encoder_layer.4} parent=5 // pred_check_branch
        %192 = sbr.rel (%p189) target = $region12
      $region11: #{unified_pm_encoder_layer.4} parent=5 // pred_region
        %s193 = ssub.s32 %s19, 1
        // Predicated region
        $region13: #{unified_pm_encoder_layer.4} parent=11 // pred_check
          %p194 = pneg %p57
        $region14: #{unified_pm_encoder_layer.4} parent=11 // pred_check_branch
          %196 = sbr.rel (%p194) target = $region16
        $region15: #{unified_pm_encoder_layer.4} parent=11 // pred_region
          %s197 = smul.u32 4, %s28
          %s199 = ssub.s32 1024, 1024
          %200 = vsyncadd [#allocation4], %s199
          %s201 = smul.addr %s197, 2
          %s202 = smul.addr %s201, 128
          %s203 = scalar_lea.hbm %s0, %s202
          %s204 = sshll.u32 [#allocation3], 4
          %s205 = int_to_ptr.vmem [resolvable:$true] %s204
          %210 = dma.hbm_to_vmem [thread:$0]  %s203, 1024, %s205, [#allocation4], 256, 256, 16
        $region16: #{unified_pm_encoder_layer.4} parent=11 // pred_fallthru
          _
        // Predicated region
        $region17: #{unified_pm_encoder_layer.4} parent=11 // pred_check
          %p211 = pneg %p78
        $region18: #{unified_pm_encoder_layer.4} parent=11 // pred_check_branch
          %213 = sbr.rel (%p211) target = $region20
        $region19: #{unified_pm_encoder_layer.4} parent=11 // pred_region
          %s215 = ssub.s32 32, 32
          %216 = vsyncadd [#allocation7], %s215
          %s218 = sshll.u32 [#allocation6], 4
          %s219 = int_to_ptr.vmem [resolvable:$true] %s218
          %221 = dma.hbm_to_vmem [thread:$0]  %s1, 32, %s219, [#allocation7]
        $region20: #{unified_pm_encoder_layer.4} parent=11 // pred_fallthru
          _
        // Predicated region
        $region21: #{unified_pm_encoder_layer.4} parent=11 // pred_check
          %p222 = pneg %p99
        $region22: #{unified_pm_encoder_layer.4} parent=11 // pred_check_branch
          %224 = sbr.rel (%p222) target = $region24
        $region23: #{unified_pm_encoder_layer.4} parent=11 // pred_region
          %s226 = ssub.s32 32, 32
          %227 = vsyncadd [#allocation7], %s226
          %s229 = sshll.u32 [#allocation8], 4
          %s230 = int_to_ptr.vmem [resolvable:$true] %s229
          %232 = dma.hbm_to_vmem [thread:$0]  %s2, 32, %s230, [#allocation7]
        $region24: #{unified_pm_encoder_layer.4} parent=11 // pred_fallthru
          _
      $region12: #{unified_pm_encoder_layer.4} parent=5 // pred_fallthru
        _
      %p233 = scmp.lt.s32.totalorder %s19, 2
      // Predicated region
      $region25: #{unified_pm_encoder_layer.4} parent=5 // pred_check
        %p234 = pneg %p233
      $region26: #{unified_pm_encoder_layer.4} parent=5 // pred_check_branch
        %236 = sbr.rel (%p234) target = $region28
      $region27: #{unified_pm_encoder_layer.4} parent=5 // pred_region
        // Predicated region
        $region29: #{unified_pm_encoder_layer.4} parent=27 // pred_check
          %p237 = pneg %p119
        $region30: #{unified_pm_encoder_layer.4} parent=27 // pred_check_branch
          %239 = sbr.rel (%p237) target = $region32
        $region31: #{unified_pm_encoder_layer.4} parent=27 // pred_region
          %s240 = sand.u32 %s19, 1
          %s241 = scalar_lea.sflag [#allocation10], %s240
          %s242 = sand.u32 %s109, 1
          %s243 = smul.addr %s242, 768
          %s244 = scalar_lea.vmem [#allocation9], %s243
          %s245 = smul.u32 3, %s27
          %s247 = ssub.s32 12288, 12288
          %248 = vsyncadd %s241, %s247
          %s249 = smul.addr %s245, 128
          %s250 = scalar_lea.hbm %s3, %s249
          %s251 = sshll.u32 %s244, 4
          %s252 = int_to_ptr.vmem [resolvable:$true] %s251
          %257 = dma.hbm_to_vmem [thread:$0]  %s250, 12288, %s252, %s241, 768, 384, 24
        $region32: #{unified_pm_encoder_layer.4} parent=27 // pred_fallthru
          _
        // Predicated region
        $region33: #{unified_pm_encoder_layer.4} parent=27 // pred_check
          %p258 = pneg %p145
        $region34: #{unified_pm_encoder_layer.4} parent=27 // pred_check_branch
          %260 = sbr.rel (%p258) target = $region36
        $region35: #{unified_pm_encoder_layer.4} parent=27 // pred_region
          %s261 = sand.u32 %s19, 1
          %s262 = scalar_lea.sflag [#allocation10], %s261
          %s263 = sand.u32 %s135, 1
          %s264 = smul.addr %s263, 3
          %s265 = scalar_lea.vmem [#allocation11], %s264
          %s266 = smul.u32 3, %s27
          %s268 = ssub.s32 48, 48
          %269 = vsyncadd %s262, %s268
          %s270 = smul.addr %s266, 16
          %s271 = scalar_lea.hbm %s4, %s270
          %s273 = sshll.u32 %s265, 4
          %s274 = int_to_ptr.vmem [resolvable:$true] %s273
          %276 = dma.hbm_to_vmem [thread:$0]  %s271, 48, %s274, %s262
        $region36: #{unified_pm_encoder_layer.4} parent=27 // pred_fallthru
          _
      $region28: #{unified_pm_encoder_layer.4} parent=5 // pred_fallthru
        _
      %p277 = scmp.le.s32.totalorder 1, %s19
      %p278 = scmp.lt.s32.totalorder %s19, 3
      %p279 = pnand %p277, %p278
      %p280 = pneg %p279
      // Predicated region
      $region37: #{unified_pm_encoder_layer.4} parent=5 // pred_check
        _
      $region38: #{unified_pm_encoder_layer.4} parent=5 // pred_check_branch
        %282 = sbr.rel (%p279) target = $region40
      $region39: #{unified_pm_encoder_layer.4} parent=5 // pred_region
        %s283 = ssub.s32 %s19, 1
        // Predicated region
        $region41: #{unified_pm_encoder_layer.4} parent=39 // pred_check
          %p284 = pneg %p57
        $region42: #{unified_pm_encoder_layer.4} parent=39 // pred_check_branch
          %286 = sbr.rel (%p284) target = $region44
        $region43: #{unified_pm_encoder_layer.4} parent=39 // pred_region
          %287 = dma.done [#allocation4], 1024
        $region44: #{unified_pm_encoder_layer.4} parent=39 // pred_fallthru
          _
        // Predicated region
        $region45: #{unified_pm_encoder_layer.4} parent=39 // pred_check
          %p288 = pneg %p78
        $region46: #{unified_pm_encoder_layer.4} parent=39 // pred_check_branch
          %290 = sbr.rel (%p288) target = $region48
        $region47: #{unified_pm_encoder_layer.4} parent=39 // pred_region
          %291 = dma.done [#allocation7], 32
        $region48: #{unified_pm_encoder_layer.4} parent=39 // pred_fallthru
          _
        // Predicated region
        $region49: #{unified_pm_encoder_layer.4} parent=39 // pred_check
          %p292 = pneg %p99
        $region50: #{unified_pm_encoder_layer.4} parent=39 // pred_check_branch
          %294 = sbr.rel (%p292) target = $region52
        $region51: #{unified_pm_encoder_layer.4} parent=39 // pred_region
          %295 = dma.done [#allocation7], 32
        $region52: #{unified_pm_encoder_layer.4} parent=39 // pred_fallthru
          _
        %s296 = sand.u32 %s24, 1
        %s297 = scalar_lea.sflag [#allocation10], %s296
        %s298 = sand.u32 %s112, 1
        %s299 = smul.addr %s298, 768
        %s300 = scalar_lea.vmem [#allocation9], %s299
        // Predicated region
        $region53: #{unified_pm_encoder_layer.4} parent=39 // pred_check
          %p301 = pneg %p125
        $region54: #{unified_pm_encoder_layer.4} parent=39 // pred_check_branch
          %303 = sbr.rel (%p301) target = $region56
        $region55: #{unified_pm_encoder_layer.4} parent=39 // pred_region
          %304 = dma.done %s297, 12288
        $region56: #{unified_pm_encoder_layer.4} parent=39 // pred_fallthru
          _
        %s305 = sand.u32 %s24, 1
        %s306 = scalar_lea.sflag [#allocation10], %s305
        %s307 = sand.u32 %s138, 1
        %s308 = smul.addr %s307, 3
        %s309 = scalar_lea.vmem [#allocation11], %s308
        // Predicated region
        $region57: #{unified_pm_encoder_layer.4} parent=39 // pred_check
          %p310 = pneg %p151
        $region58: #{unified_pm_encoder_layer.4} parent=39 // pred_check_branch
          %312 = sbr.rel (%p310) target = $region60
        $region59: #{unified_pm_encoder_layer.4} parent=39 // pred_region
          %313 = dma.done %s306, 48
        $region60: #{unified_pm_encoder_layer.4} parent=39 // pred_fallthru
          _
        %p314 = pneg %p57
        %p315 = pneg %p54
        %p316 = pneg %p78
        %p317 = pneg %p75
        %p318 = pneg %p99
        %p319 = pneg %p96
        %s320 = sand.u32 %s24, 1
        %s321 = scalar_lea.sflag [#allocation10], %s320
        %s322 = sand.u32 %s112, 1
        %s323 = smul.addr %s322, 768
        %s324 = scalar_lea.vmem [#allocation9], %s323
        %p325 = pneg %p125
        %p326 = pneg %p122
        %s327 = sand.u32 %s24, 1
        %s328 = scalar_lea.sflag [#allocation10], %s327
        %s329 = sand.u32 %s138, 1
        %s330 = smul.addr %s329, 3
        %s331 = scalar_lea.vmem [#allocation11], %s330
        %p332 = pneg %p151
        %p333 = pneg %p148
        %p334 = pneg %p179
        %p335 = pneg %p176
        %s336 = sand.u32 %s166, 1
        %s337 = scalar_lea.sflag [#allocation5], %s336
        %s338 = sand.u32 %s166, 1
        %s339 = smul.addr %s338, 96
        %s340 = scalar_lea.vmem [#allocation12], %s339
        %s341 = smul.u32 4, %s28
        %s342 = smul.u32 3, %s29
        %s343 = smul.u32 3, %s29
        %s344 = smul.u32 4, %s28
        %s345 = smul.u32 3, %s29
        %p346 = scmp.eq.s32.totalorder %s29, 0
        // Predicated region
        $region61: #{unified_pm_encoder_layer.4} parent=39 // pred_check
          %p347 = pneg %p346
        $region62: #{unified_pm_encoder_layer.4} parent=39 // pred_check_branch
          %349 = sbr.rel (%p347) target = $region64
        $region63: #{unified_pm_encoder_layer.4} parent=39 // pred_region
          %v350 = vld [vmem:[#allocation3] sm:$0xff]
          %v351 = vld [vmem:[#allocation3 + $0x8] sm:$0xff]
          %v352 = vld [vmem:[#allocation3 + $0x10] sm:$0xff]
          %v353 = vld [vmem:[#allocation3 + $0x18] sm:$0xff]
          %v354 = vld [vmem:[#allocation3 + $0x20] sm:$0xff]
          %v355 = vld [vmem:[#allocation3 + $0x28] sm:$0xff]
          %v356 = vld [vmem:[#allocation3 + $0x30] sm:$0xff]
          %v357 = vld [vmem:[#allocation3 + $0x38] sm:$0xff]
          %v358 = vld [vmem:[#allocation6] sm:$0x3]
          %v359 = vld [vmem:[#allocation8] sm:$0x3]
          %v360 = vadd.f32 %v350, %v351
          %361 = vadd.xlane.f32.xlu0 %v360
          %v362 = vpop.xlane.xlu0 %361
          %v363 = vadd.f32 %v352, %v353
          %364 = vadd.xlane.f32.xlu0 %v363
          %v365 = vpop.xlane.xlu0 %364
          %v366 = vadd.f32 %v354, %v355
          %367 = vadd.xlane.f32.xlu0 %v366
          %v368 = vpop.xlane.xlu0 %367
          %v369 = vadd.f32 %v356, %v357
          %370 = vadd.xlane.f32.xlu0 %v369
          %v371 = vpop.xlane.xlu0 %370
          %v372 = vrcp.pop 256.0
          %v373 = vmul.f32 %v362, %v372
          %v374 = vmul.f32 %v365, %v372
          %v375 = vmul.f32 %v368, %v372
          %v376 = vmul.f32 %v371, %v372
          %v377 = vsub.f32 %v350, %v373
          %v378 = vsub.f32 %v351, %v373
          %v379 = vsub.f32 %v352, %v374
          %v380 = vsub.f32 %v353, %v374
          %v381 = vsub.f32 %v354, %v375
          %v382 = vsub.f32 %v355, %v375
          %v383 = vsub.f32 %v356, %v376
          %v384 = vsub.f32 %v357, %v376
          %v385 = vmul.f32 %v377, %v377
          %v386 = vmul.f32 %v378, %v378
          %v387 = vmul.f32 %v379, %v379
          %v388 = vmul.f32 %v380, %v380
          %v389 = vmul.f32 %v381, %v381
          %v390 = vmul.f32 %v382, %v382
          %v391 = vmul.f32 %v383, %v383
          %v392 = vmul.f32 %v384, %v384
          %v393 = vadd.f32 %v385, %v386
          %394 = vadd.xlane.f32.xlu0 %v393
          %v395 = vpop.xlane.xlu0 %394
          %v396 = vadd.f32 %v387, %v388
          %397 = vadd.xlane.f32.xlu0 %v396
          %v398 = vpop.xlane.xlu0 %397
          %v399 = vadd.f32 %v389, %v390
          %400 = vadd.xlane.f32.xlu0 %v399
          %v401 = vpop.xlane.xlu0 %400
          %v402 = vadd.f32 %v391, %v392
          %403 = vadd.xlane.f32.xlu0 %v402
          %v404 = vpop.xlane.xlu0 %403
          %v405 = vmul.f32 %v395, %v372
          %v406 = vmul.f32 %v398, %v372
          %v407 = vmul.f32 %v401, %v372
          %v408 = vmul.f32 %v404, %v372
          %v409 = vadd.f32 %v405, 1e-05
          %v410 = vadd.f32 %v406, 1e-05
          %v411 = vadd.f32 %v407, 1e-05
          %v412 = vadd.f32 %v408, 1e-05
          %v413 = vrsqrt.pop %v409
          %v414 = vrsqrt.pop %v410
          %v415 = vrsqrt.pop %v411
          %v416 = vrsqrt.pop %v412
          %v417 = vmul.f32 %v377, %v413
          %v418 = vmul.f32 %v378, %v413
          %v419 = vmul.f32 %v379, %v414
          %v420 = vmul.f32 %v380, %v414
          %v421 = vmul.f32 %v381, %v415
          %v422 = vmul.f32 %v382, %v415
          %v423 = vmul.f32 %v383, %v416
          %v424 = vmul.f32 %v384, %v416
          %v426 = vlaneseq
          %v427 = vshrl.u32 %v426, 7
          %v428 = vsub.s32 0, %v427
          %v429 = vrot.slane %v358, %v428
          %v430 = vlaneseq
          %v431 = vshrl.u32 %v430, 7
          %v432 = vsub.s32 1, %v431
          %v433 = vrot.slane %v358, %v432
          %v436 = vmul.f32 %v417, %v429
          %v437 = vmul.f32 %v418, %v433
          %v438 = vmul.f32 %v419, %v429
          %v439 = vmul.f32 %v420, %v433
          %v440 = vmul.f32 %v421, %v429
          %v441 = vmul.f32 %v422, %v433
          %v442 = vmul.f32 %v423, %v429
          %v443 = vmul.f32 %v424, %v433
          %v445 = vlaneseq
          %v446 = vshrl.u32 %v445, 7
          %v447 = vsub.s32 0, %v446
          %v448 = vrot.slane %v359, %v447
          %v449 = vlaneseq
          %v450 = vshrl.u32 %v449, 7
          %v451 = vsub.s32 1, %v450
          %v452 = vrot.slane %v359, %v451
          %v455 = vadd.f32 %v436, %v448
          %v456 = vadd.f32 %v437, %v452
          %v457 = vadd.f32 %v438, %v448
          %v458 = vadd.f32 %v439, %v452
          %v459 = vadd.f32 %v440, %v448
          %v460 = vadd.f32 %v441, %v452
          %v461 = vadd.f32 %v442, %v448
          %v462 = vadd.f32 %v443, %v452
          %463 = vst [vmem:[#allocation2] sm:$0xff] %v455
          %464 = vst [vmem:[#allocation2 + $0x8] sm:$0xff] %v456
          %465 = vst [vmem:[#allocation2 + $0x10] sm:$0xff] %v457
          %466 = vst [vmem:[#allocation2 + $0x18] sm:$0xff] %v458
          %467 = vst [vmem:[#allocation2 + $0x20] sm:$0xff] %v459
          %468 = vst [vmem:[#allocation2 + $0x28] sm:$0xff] %v460
          %469 = vst [vmem:[#allocation2 + $0x30] sm:$0xff] %v461
          %470 = vst [vmem:[#allocation2 + $0x38] sm:$0xff] %v462
        $region64: #{unified_pm_encoder_layer.4} parent=39 // pred_fallthru
          _
        %v471 = vld [vmem:[#allocation2] sm:$0xff]
        %v472 = vld [vmem:[#allocation2 + $0x8] sm:$0xff]
        %v473 = vld [vmem:[#allocation2 + $0x10] sm:$0xff]
        %v474 = vld [vmem:[#allocation2 + $0x18] sm:$0xff]
        %v475 = vld [vmem:[#allocation2 + $0x20] sm:$0xff]
        %v476 = vld [vmem:[#allocation2 + $0x28] sm:$0xff]
        %v477 = vld [vmem:[#allocation2 + $0x30] sm:$0xff]
        %v478 = vld [vmem:[#allocation2 + $0x38] sm:$0xff]
        %v479 = vld [vmem:[%s300] sm:$0xff]
        %v480 = vld [vmem:[%s300 + $0x8] sm:$0xff]
        %v481 = vld [vmem:[%s300 + $0x10] sm:$0xff]
        %v482 = vld [vmem:[%s300 + $0x18] sm:$0xff]
        %v483 = vld [vmem:[%s300 + $0x20] sm:$0xff]
        %v484 = vld [vmem:[%s300 + $0x28] sm:$0xff]
        %v485 = vld [vmem:[%s300 + $0x30] sm:$0xff]
        %v486 = vld [vmem:[%s300 + $0x38] sm:$0xff]
        %v487 = vld [vmem:[%s300 + $0x40] sm:$0xff]
        %v488 = vld [vmem:[%s300 + $0x48] sm:$0xff]
        %v489 = vld [vmem:[%s300 + $0x50] sm:$0xff]
        %v490 = vld [vmem:[%s300 + $0x58] sm:$0xff]
        %v491 = vld [vmem:[%s300 + $0x60] sm:$0xff]
        %v492 = vld [vmem:[%s300 + $0x68] sm:$0xff]
        %v493 = vld [vmem:[%s300 + $0x70] sm:$0xff]
        %v494 = vld [vmem:[%s300 + $0x78] sm:$0xff]
        %v495 = vld [vmem:[%s300 + $0x80] sm:$0xff]
        %v496 = vld [vmem:[%s300 + $0x88] sm:$0xff]
        %v497 = vld [vmem:[%s300 + $0x90] sm:$0xff]
        %v498 = vld [vmem:[%s300 + $0x98] sm:$0xff]
        %v499 = vld [vmem:[%s300 + $0xa0] sm:$0xff]
        %v500 = vld [vmem:[%s300 + $0xa8] sm:$0xff]
        %v501 = vld [vmem:[%s300 + $0xb0] sm:$0xff]
        %v502 = vld [vmem:[%s300 + $0xb8] sm:$0xff]
        %v503 = vld [vmem:[%s300 + $0xc0] sm:$0xff]
        %v504 = vld [vmem:[%s300 + $0xc8] sm:$0xff]
        %v505 = vld [vmem:[%s300 + $0xd0] sm:$0xff]
        %v506 = vld [vmem:[%s300 + $0xd8] sm:$0xff]
        %v507 = vld [vmem:[%s300 + $0xe0] sm:$0xff]
        %v508 = vld [vmem:[%s300 + $0xe8] sm:$0xff]
        %v509 = vld [vmem:[%s300 + $0xf0] sm:$0xff]
        %v510 = vld [vmem:[%s300 + $0xf8] sm:$0xff]
        %v511 = vld [vmem:[%s300 + $0x100] sm:$0xff]
        %v512 = vld [vmem:[%s300 + $0x108] sm:$0xff]
        %v513 = vld [vmem:[%s300 + $0x110] sm:$0xff]
        %v514 = vld [vmem:[%s300 + $0x118] sm:$0xff]
        %v515 = vld [vmem:[%s300 + $0x120] sm:$0xff]
        %v516 = vld [vmem:[%s300 + $0x128] sm:$0xff]
        %v517 = vld [vmem:[%s300 + $0x130] sm:$0xff]
        %v518 = vld [vmem:[%s300 + $0x138] sm:$0xff]
        %v519 = vld [vmem:[%s300 + $0x140] sm:$0xff]
        %v520 = vld [vmem:[%s300 + $0x148] sm:$0xff]
        %v521 = vld [vmem:[%s300 + $0x150] sm:$0xff]
        %v522 = vld [vmem:[%s300 + $0x158] sm:$0xff]
        %v523 = vld [vmem:[%s300 + $0x160] sm:$0xff]
        %v524 = vld [vmem:[%s300 + $0x168] sm:$0xff]
        %v525 = vld [vmem:[%s300 + $0x170] sm:$0xff]
        %v526 = vld [vmem:[%s300 + $0x178] sm:$0xff]
        %v527 = vld [vmem:[%s300 + $0x180] sm:$0xff]
        %v528 = vld [vmem:[%s300 + $0x188] sm:$0xff]
        %v529 = vld [vmem:[%s300 + $0x190] sm:$0xff]
        %v530 = vld [vmem:[%s300 + $0x198] sm:$0xff]
        %v531 = vld [vmem:[%s300 + $0x1a0] sm:$0xff]
        %v532 = vld [vmem:[%s300 + $0x1a8] sm:$0xff]
        %v533 = vld [vmem:[%s300 + $0x1b0] sm:$0xff]
        %v534 = vld [vmem:[%s300 + $0x1b8] sm:$0xff]
        %v535 = vld [vmem:[%s300 + $0x1c0] sm:$0xff]
        %v536 = vld [vmem:[%s300 + $0x1c8] sm:$0xff]
        %v537 = vld [vmem:[%s300 + $0x1d0] sm:$0xff]
        %v538 = vld [vmem:[%s300 + $0x1d8] sm:$0xff]
        %v539 = vld [vmem:[%s300 + $0x1e0] sm:$0xff]
        %v540 = vld [vmem:[%s300 + $0x1e8] sm:$0xff]
        %v541 = vld [vmem:[%s300 + $0x1f0] sm:$0xff]
        %v542 = vld [vmem:[%s300 + $0x1f8] sm:$0xff]
        %v543 = vld [vmem:[%s300 + $0x200] sm:$0xff]
        %v544 = vld [vmem:[%s300 + $0x208] sm:$0xff]
        %v545 = vld [vmem:[%s300 + $0x210] sm:$0xff]
        %v546 = vld [vmem:[%s300 + $0x218] sm:$0xff]
        %v547 = vld [vmem:[%s300 + $0x220] sm:$0xff]
        %v548 = vld [vmem:[%s300 + $0x228] sm:$0xff]
        %v549 = vld [vmem:[%s300 + $0x230] sm:$0xff]
        %v550 = vld [vmem:[%s300 + $0x238] sm:$0xff]
        %v551 = vld [vmem:[%s300 + $0x240] sm:$0xff]
        %v552 = vld [vmem:[%s300 + $0x248] sm:$0xff]
        %v553 = vld [vmem:[%s300 + $0x250] sm:$0xff]
        %v554 = vld [vmem:[%s300 + $0x258] sm:$0xff]
        %v555 = vld [vmem:[%s300 + $0x260] sm:$0xff]
        %v556 = vld [vmem:[%s300 + $0x268] sm:$0xff]
        %v557 = vld [vmem:[%s300 + $0x270] sm:$0xff]
        %v558 = vld [vmem:[%s300 + $0x278] sm:$0xff]
        %v559 = vld [vmem:[%s300 + $0x280] sm:$0xff]
        %v560 = vld [vmem:[%s300 + $0x288] sm:$0xff]
        %v561 = vld [vmem:[%s300 + $0x290] sm:$0xff]
        %v562 = vld [vmem:[%s300 + $0x298] sm:$0xff]
        %v563 = vld [vmem:[%s300 + $0x2a0] sm:$0xff]
        %v564 = vld [vmem:[%s300 + $0x2a8] sm:$0xff]
        %v565 = vld [vmem:[%s300 + $0x2b0] sm:$0xff]
        %v566 = vld [vmem:[%s300 + $0x2b8] sm:$0xff]
        %v567 = vld [vmem:[%s300 + $0x2c0] sm:$0xff]
        %v568 = vld [vmem:[%s300 + $0x2c8] sm:$0xff]
        %v569 = vld [vmem:[%s300 + $0x2d0] sm:$0xff]
        %v570 = vld [vmem:[%s300 + $0x2d8] sm:$0xff]
        %v571 = vld [vmem:[%s300 + $0x2e0] sm:$0xff]
        %v572 = vld [vmem:[%s300 + $0x2e8] sm:$0xff]
        %v573 = vld [vmem:[%s300 + $0x2f0] sm:$0xff]
        %v574 = vld [vmem:[%s300 + $0x2f8] sm:$0xff]
        %v575 = vld [vmem:[%s309] sm:$0x7]
        %v577 = vlaneseq
        %v578 = vshrl.u32 %v577, 7
        %v579 = vsub.s32 0, %v578
        %v580 = vrot.slane %v575, %v579
        %v581 = vlaneseq
        %v582 = vshrl.u32 %v581, 7
        %v583 = vsub.s32 1, %v582
        %v584 = vrot.slane %v575, %v583
        %v585 = vlaneseq
        %v586 = vshrl.u32 %v585, 7
        %v587 = vsub.s32 2, %v586
        %v588 = vrot.slane %v575, %v587
        %592 = vmatprep.subr.mxu0 %v480
        %593 = vmatpush1.msra.mxu0 %v479
        %594 = vmatprep.subr.mxu0 %v483
        %595 = vmatpush1.msra.mxu0 %v482
        %596 = vmatprep.subr.mxu0 %v486
        %597 = vmatpush1.msra.mxu0 %v485
        %598 = vmatprep.subr.mxu0 %v489
        %599 = vmatpush1.msra.mxu0 %v488
        %600 = vmatprep.subr.mxu0 %v492
        %601 = vmatpush1.msra.mxu0 %v491
        %602 = vmatprep.subr.mxu0 %v495
        %603 = vmatpush1.msra.mxu0 %v494
        %604 = vmatprep.subr.mxu0 %v498
        %605 = vmatpush1.msra.mxu0 %v497
        %606 = vmatprep.subr.mxu0 %v501
        %607 = vmatpush1.msra.mxu0 %v500
        %608 = vmatprep.subr.mxu0 %v504
        %609 = vmatpush1.msra.mxu0 %v503
        %610 = vmatprep.subr.mxu0 %v507
        %611 = vmatpush1.msra.mxu0 %v506
        %612 = vmatprep.subr.mxu0 %v510
        %613 = vmatpush1.msra.mxu0 %v509
        %614 = vmatprep.subr.mxu0 %v513
        %615 = vmatpush1.msra.mxu0 %v512
        %616 = vmatprep.subr.mxu0 %v516
        %617 = vmatpush1.msra.mxu0 %v515
        %618 = vmatprep.subr.mxu0 %v519
        %619 = vmatpush1.msra.mxu0 %v518
        %620 = vmatprep.subr.mxu0 %v522
        %621 = vmatpush1.msra.mxu0 %v521
        %622 = vmatprep.subr.mxu0 %v525
        %623 = vmatpush1.msra.mxu0 %v524
        %624 = vmatprep.subr.mxu0 %v528
        %625 = vmatpush1.msra.mxu0 %v527
        %626 = vmatprep.subr.mxu0 %v531
        %627 = vmatpush1.msra.mxu0 %v530
        %628 = vmatprep.subr.mxu0 %v534
        %629 = vmatpush1.msra.mxu0 %v533
        %630 = vmatprep.subr.mxu0 %v537
        %631 = vmatpush1.msra.mxu0 %v536
        %632 = vmatprep.subr.mxu0 %v540
        %633 = vmatpush1.msra.mxu0 %v539
        %634 = vmatprep.subr.mxu0 %v543
        %635 = vmatpush1.msra.mxu0 %v542
        %636 = vmatprep.subr.mxu0 %v546
        %637 = vmatpush1.msra.mxu0 %v545
        %638 = vmatprep.subr.mxu0 %v549
        %639 = vmatpush1.msra.mxu0 %v548
        %640 = vmatprep.subr.mxu0 %v552
        %641 = vmatpush1.msra.mxu0 %v551
        %642 = vmatprep.subr.mxu0 %v555
        %643 = vmatpush1.msra.mxu0 %v554
        %644 = vmatprep.subr.mxu0 %v558
        %645 = vmatpush1.msra.mxu0 %v557
        %646 = vmatprep.subr.mxu0 %v561
        %647 = vmatpush1.msra.mxu0 %v560
        %648 = vmatprep.subr.mxu0 %v564
        %649 = vmatpush1.msra.mxu0 %v563
        %650 = vmatprep.subr.mxu0 %v567
        %651 = vmatpush1.msra.mxu0 %v566
        %652 = vmatprep.subr.mxu0 %v570
        %653 = vmatpush1.msra.mxu0 %v569
        %654 = vmatprep.subr.mxu0 %v573
        %655 = vmatpush1.msra.mxu0 %v572
        %656 = vmatprep.mubr.f32.mxu0 %v472
        %657 = vmatmul.mubr.f32.gmra.mrb[0].mxu0 %v471
        %v658 = vpop.f32.mrb[0].mxu0
        %v659 = vadd.f32 %v580, %v658
        %v660 = vpop.f32.mrb[0].mxu0
        %v661 = vadd.f32 %v584, %v660
        %662 = vmatprep.mubr.f32.mxu0 %v474
        %663 = vmatmul.mubr.f32.gmra.mrb[0].mxu0 %v473
        %v664 = vpop.f32.mrb[0].mxu0
        %v665 = vadd.f32 %v580, %v664
        %v666 = vpop.f32.mrb[0].mxu0
        %v667 = vadd.f32 %v584, %v666
        %668 = vmatprep.mubr.f32.mxu0 %v476
        %669 = vmatmul.mubr.f32.gmra.mrb[0].mxu0 %v475
        %v670 = vpop.f32.mrb[0].mxu0
        %v671 = vadd.f32 %v580, %v670
        %v672 = vpop.f32.mrb[0].mxu0
        %v673 = vadd.f32 %v584, %v672
        %674 = vmatprep.mubr.f32.mxu0 %v478
        %675 = vmatmul.mubr.f32.gmra.mrb[0].mxu0 %v477
        %v676 = vpop.f32.mrb[0].mxu0
        %v677 = vadd.f32 %v580, %v676
        %v678 = vpop.f32.mrb[0].mxu0
        %v679 = vadd.f32 %v584, %v678
        %680 = vdwg.mxu0
        %681 = vmatprep.subr.mxu0 0.0
        %682 = vmatpush1.msra.mxu0 %v481
        %683 = vmatprep.subr.mxu0 0.0
        %684 = vmatpush1.msra.mxu0 %v484
        %685 = vmatprep.subr.mxu0 0.0
        %686 = vmatpush1.msra.mxu0 %v487
        %687 = vmatprep.subr.mxu0 0.0
        %688 = vmatpush1.msra.mxu0 %v490
        %689 = vmatprep.subr.mxu0 0.0
        %690 = vmatpush1.msra.mxu0 %v493
        %691 = vmatprep.subr.mxu0 0.0
        %692 = vmatpush1.msra.mxu0 %v496
        %693 = vmatprep.subr.mxu0 0.0
        %694 = vmatpush1.msra.mxu0 %v499
        %695 = vmatprep.subr.mxu0 0.0
        %696 = vmatpush1.msra.mxu0 %v502
        %697 = vmatprep.subr.mxu0 0.0
        %698 = vmatpush1.msra.mxu0 %v505
        %699 = vmatprep.subr.mxu0 0.0
        %700 = vmatpush1.msra.mxu0 %v508
        %701 = vmatprep.subr.mxu0 0.0
        %702 = vmatpush1.msra.mxu0 %v511
        %703 = vmatprep.subr.mxu0 0.0
        %704 = vmatpush1.msra.mxu0 %v514
        %705 = vmatprep.subr.mxu0 0.0
        %706 = vmatpush1.msra.mxu0 %v517
        %707 = vmatprep.subr.mxu0 0.0
        %708 = vmatpush1.msra.mxu0 %v520
        %709 = vmatprep.subr.mxu0 0.0
        %710 = vmatpush1.msra.mxu0 %v523
        %711 = vmatprep.subr.mxu0 0.0
        %712 = vmatpush1.msra.mxu0 %v526
        %713 = vmatprep.subr.mxu0 0.0
        %714 = vmatpush1.msra.mxu0 %v529
        %715 = vmatprep.subr.mxu0 0.0
        %716 = vmatpush1.msra.mxu0 %v532
        %717 = vmatprep.subr.mxu0 0.0
        %718 = vmatpush1.msra.mxu0 %v535
        %719 = vmatprep.subr.mxu0 0.0
        %720 = vmatpush1.msra.mxu0 %v538
        %721 = vmatprep.subr.mxu0 0.0
        %722 = vmatpush1.msra.mxu0 %v541
        %723 = vmatprep.subr.mxu0 0.0
        %724 = vmatpush1.msra.mxu0 %v544
        %725 = vmatprep.subr.mxu0 0.0
        %726 = vmatpush1.msra.mxu0 %v547
        %727 = vmatprep.subr.mxu0 0.0
        %728 = vmatpush1.msra.mxu0 %v550
        %729 = vmatprep.subr.mxu0 0.0
        %730 = vmatpush1.msra.mxu0 %v553
        %731 = vmatprep.subr.mxu0 0.0
        %732 = vmatpush1.msra.mxu0 %v556
        %733 = vmatprep.subr.mxu0 0.0
        %734 = vmatpush1.msra.mxu0 %v559
        %735 = vmatprep.subr.mxu0 0.0
        %736 = vmatpush1.msra.mxu0 %v562
        %737 = vmatprep.subr.mxu0 0.0
        %738 = vmatpush1.msra.mxu0 %v565
        %739 = vmatprep.subr.mxu0 0.0
        %740 = vmatpush1.msra.mxu0 %v568
        %741 = vmatprep.subr.mxu0 0.0
        %742 = vmatpush1.msra.mxu0 %v571
        %743 = vmatprep.subr.mxu0 0.0
        %744 = vmatpush1.msra.mxu0 %v574
        %745 = vmatprep.mubr.f32.mxu0 %v472
        %746 = vmatmul.mubr.f32.gmra.mrb[0].mxu0 %v471
        %v747 = vpop.f32.mrb[0].mxu0
        %v748 = vadd.f32 %v588, %v747
        %v749 = vpop.f32.mrb[0].mxu0
        %750 = vmatprep.mubr.f32.mxu0 %v474
        %751 = vmatmul.mubr.f32.gmra.mrb[0].mxu0 %v473
        %v752 = vpop.f32.mrb[0].mxu0
        %v753 = vadd.f32 %v588, %v752
        %v754 = vpop.f32.mrb[0].mxu0
        %755 = vmatprep.mubr.f32.mxu0 %v476
        %756 = vmatmul.mubr.f32.gmra.mrb[0].mxu0 %v475
        %v757 = vpop.f32.mrb[0].mxu0
        %v758 = vadd.f32 %v588, %v757
        %v759 = vpop.f32.mrb[0].mxu0
        %760 = vmatprep.mubr.f32.mxu0 %v478
        %761 = vmatmul.mubr.f32.gmra.mrb[0].mxu0 %v477
        %v762 = vpop.f32.mrb[0].mxu0
        %v763 = vadd.f32 %v588, %v762
        %v764 = vpop.f32.mrb[0].mxu0
        %765 = vdwg.mxu0
        %766 = vst [vmem:[%s340] sm:$0xff] %v659
        %767 = vst [vmem:[%s340 + $0x8] sm:$0xff] %v661
        %768 = vst [vmem:[%s340 + $0x10] sm:$0xff] %v748
        %769 = vst [vmem:[%s340 + $0x18] sm:$0xff] %v665
        %770 = vst [vmem:[%s340 + $0x20] sm:$0xff] %v667
        %771 = vst [vmem:[%s340 + $0x28] sm:$0xff] %v753
        %772 = vst [vmem:[%s340 + $0x30] sm:$0xff] %v671
        %773 = vst [vmem:[%s340 + $0x38] sm:$0xff] %v673
        %774 = vst [vmem:[%s340 + $0x40] sm:$0xff] %v758
        %775 = vst [vmem:[%s340 + $0x48] sm:$0xff] %v677
        %776 = vst [vmem:[%s340 + $0x50] sm:$0xff] %v679
        %777 = vst [vmem:[%s340 + $0x58] sm:$0xff] %v763
        %s778 = sand.u32 %s166, 1
        %s779 = scalar_lea.sflag [#allocation5], %s778
        %s780 = sand.u32 %s166, 1
        %s781 = smul.addr %s780, 96
        %s782 = scalar_lea.vmem [#allocation12], %s781
        // Predicated region
        $region65: #{unified_pm_encoder_layer.4} parent=39 // pred_check
          %p783 = pneg %p176
        $region66: #{unified_pm_encoder_layer.4} parent=39 // pred_check_branch
          %785 = sbr.rel (%p783) target = $region68
        $region67: #{unified_pm_encoder_layer.4} parent=39 // pred_region
          %s786 = smul.u32 4, %s28
          %s787 = smul.u32 3, %s29
          %s789 = ssub.s32 1536, 1536
          %790 = vsyncadd %s779, %s789
          %s791 = smul.addr %s786, 6
          %s792 = sadd.s32 %s787, %s791
          %s793 = smul.addr %s792, 128
          %s794 = scalar_lea.hbm %s5, %s793
          %s795 = sshll.u32 %s782, 4
          %s796 = int_to_ptr.vmem [resolvable:$true] %s795
          %801 = dma.vmem_to_hbm [thread:$0]  %s796, 1536, %s794, %s779, 384, 768, 24
        $region68: #{unified_pm_encoder_layer.4} parent=39 // pred_fallthru
          _
      $region40: #{unified_pm_encoder_layer.4} parent=5 // pred_fallthru
        _
      %p802 = scmp.le.s32.totalorder 2, %s19
      // Predicated region
      $region69: #{unified_pm_encoder_layer.4} parent=5 // pred_check
        %p803 = pneg %p802
      $region70: #{unified_pm_encoder_layer.4} parent=5 // pred_check_branch
        %805 = sbr.rel (%p803) target = $region72
      $region71: #{unified_pm_encoder_layer.4} parent=5 // pred_region
        %s806 = ssub.s32 %s19, 2
        // Predicated region
        $region73: #{unified_pm_encoder_layer.4} parent=71 // pred_check
          %p807 = pneg %p182
        $region74: #{unified_pm_encoder_layer.4} parent=71 // pred_check_branch
          %809 = sbr.rel (%p807) target = $region76
        $region75: #{unified_pm_encoder_layer.4} parent=71 // pred_region
          %s810 = sand.u32 %s167, 1
          %s811 = scalar_lea.sflag [#allocation5], %s810
          %s812 = sand.u32 %s167, 1
          %s813 = smul.addr %s812, 96
          %s814 = scalar_lea.vmem [#allocation12], %s813
          %815 = dma.done %s811, 1536
        $region76: #{unified_pm_encoder_layer.4} parent=71 // pred_fallthru
          _
      $region72: #{unified_pm_encoder_layer.4} parent=5 // pred_fallthru
        _
    $region6: #{unified_pm_encoder_layer.4} parent=1 // loop_footer
      %s23 = sadd.s32 1, %s19
    $region7: #{unified_pm_encoder_layer.4} parent=1 // loop_footer_branch
      %18 = sbr.rel target = $region3
    $region8: #{unified_pm_encoder_layer.4} parent=1 // loop_exit
      _
    %816 = vsyncpa [#allocation4], 1
    %s817 = scalar_lea.sflag [#allocation4], 1
    %818 = vsyncpa %s817, 1
    %819 = vsyncpa [#allocation7], 1
    %820 = vsyncpa [#allocation10], 1
    %s821 = scalar_lea.sflag [#allocation10], 1
    %822 = vsyncpa %s821, 1
    %823 = vsyncpa [#allocation5], 1
    %s824 = scalar_lea.sflag [#allocation5], 1
    %825 = vsyncpa %s824, 1

// kernel: unified_pm_encoder_layer.5
$region0: #{unified_pm_encoder_layer.5}
  #allocation0 [shape = 'u32[]', space=smem, size = 0x4, offset = 0x4, fixed_abs, tag = 'smem constant byte address 0x4 - core index']
  #allocation1 [shape = 'u32[144,128]{1,0:T(1,128)}', space=vmem, size = 0x12000, scoped, tag = 'internal scratch']
  %s0 = inlined_call_operand.hbm [shape: f32[16,1536], index: 0, kind: input, shape index: {}, may-alias: {0,1,2}]
  %s1 = inlined_call_operand.hbm [shape: f32[16,1536], index: 1, kind: input, shape index: {}, may-alias: {0,1,2}]
  %s2 = inlined_call_operand.hbm [shape: f32[16,1536], index: 2, kind: input, shape index: {}, may-alias: {0,1,2}]
  %s3 = inlined_call_operand.hbm [shape: f32[16,64], index: 3, kind: input, shape index: {}, may-alias: {3,5}]
  %s4 = inlined_call_operand.hbm [shape: f32[16,64], index: 4, kind: input, shape index: {}, may-alias: {4,6}]
  %s5 = inlined_call_operand.hbm [shape: f32[16,64], index: 5, kind: input, shape index: {}, may-alias: {3,5}]
  %s6 = inlined_call_operand.hbm [shape: f32[16,64], index: 6, kind: input, shape index: {}, may-alias: {4,6}]
  %s7 = inlined_call_operand.hbm [shape: f32[2,4,16,16], index: 7, kind: input, shape index: {}]
  %s8 = inlined_call_operand.hbm [shape: f32[2,1,16], index: 8, kind: input, shape index: {}]
  %s9 = inlined_call_operand.hbm [shape: f32[16,512], index: 9, kind: output, shape index: {0}]
  %s10 = inlined_call_operand.hbm [shape: f32[2,4,16,16], index: 10, kind: output, shape index: {1}]
  %s11 = inlined_call_operand.hbm [shape: f32[2,16,16], index: 11, kind: output, shape index: {2}]
  %12 = xla_tuple %s9, %s10, %s11
  %s13 = sld [smem:[#allocation0]]
  $region125: #{unified_pm_encoder_layer.5} parent=0
    _
  %s15 = ssub.s32 1, %s13
  %s16 = scalar_select 0, %s15, %s13
  $region1: #{unified_pm_encoder_layer.5} parent=0
    #allocation2 [shape = 'u8[32768]{0}', space=vmem, size = 0x8000, scoped, tag = 'input window, operand 0']
    #allocation3 [shape = 's32[2]{0}', space=sflag, size = 0x8, scoped, tag = 'scoped memory for unified_pm_encoder_layer.5']
    #allocation4 [shape = 's32[2]{0}', space=sflag, size = 0x8, scoped, tag = 'scoped memory for unified_pm_encoder_layer.5']
    #allocation5 [shape = 'u8[32768]{0}', space=vmem, size = 0x8000, scoped, tag = 'input window, operand 1']
    #allocation6 [shape = 's32[2]{0}', space=sflag, size = 0x8, scoped, tag = 'scoped memory for unified_pm_encoder_layer.5']
    #allocation7 [shape = 'u8[32768]{0}', space=vmem, size = 0x8000, scoped, tag = 'input window, operand 2']
    #allocation8 [shape = 'u8[8192]{0}', space=vmem, size = 0x2000, scoped, tag = 'input window, operand 3, single buffered']
    #allocation9 [shape = 's32[1]{0}', space=sflag, size = 0x4, scoped, tag = 'scoped memory for unified_pm_encoder_layer.5']
    #allocation10 [shape = 'u8[8192]{0}', space=vmem, size = 0x2000, scoped, tag = 'input window, operand 4, single buffered']
    #allocation11 [shape = 'u8[8192]{0}', space=vmem, size = 0x2000, scoped, tag = 'input window, operand 5, single buffered']
    #allocation12 [shape = 's32[1]{0}', space=sflag, size = 0x4, scoped, tag = 'scoped memory for unified_pm_encoder_layer.5']
    #allocation13 [shape = 'u8[8192]{0}', space=vmem, size = 0x2000, scoped, tag = 'input window, operand 6, single buffered']
    #allocation14 [shape = 'u8[65536]{0}', space=vmem, size = 0x10000, scoped, tag = 'input window, operand 7']
    #allocation15 [shape = 's32[2]{0}', space=sflag, size = 0x8, scoped, tag = 'scoped memory for unified_pm_encoder_layer.5']
    #allocation16 [shape = 'u8[1024]{0}', space=vmem, size = 0x400, scoped, tag = 'input window, operand 8']
    #allocation17 [shape = 'u8[32768]{0}', space=vmem, size = 0x8000, scoped, tag = 'output window, operand 0']
    #allocation18 [shape = 'u8[65536]{0}', space=vmem, size = 0x10000, scoped, tag = 'output window, operand 1']
    #allocation19 [shape = 's32[2]{0}', space=sflag, size = 0x8, scoped, tag = 'scoped memory for unified_pm_encoder_layer.5']
    #allocation20 [shape = 'u8[16384]{0}', space=vmem, size = 0x4000, scoped, tag = 'output window, operand 2']
    %17 = vsyncpa [#allocation3], 0
    %s18 = scalar_lea.sflag [#allocation3], 1
    %19 = vsyncpa %s18, 0
    %20 = vsyncpa [#allocation6], 0
    %s21 = scalar_lea.sflag [#allocation6], 1
    %22 = vsyncpa %s21, 0
    %23 = vsyncpa [#allocation9], 0
    %24 = vsyncpa [#allocation12], 0
    %25 = vsyncpa [#allocation15], 0
    %s26 = scalar_lea.sflag [#allocation15], 1
    %27 = vsyncpa %s26, 0
    %28 = vsyncpa [#allocation4], 0
    %s29 = scalar_lea.sflag [#allocation4], 1
    %30 = vsyncpa %s29, 0
    %31 = vsyncpa [#allocation19], 0
    %s32 = scalar_lea.sflag [#allocation19], 1
    %33 = vsyncpa %s32, 0
    loop: start=0, step=1, limit=4
    $region2: #{unified_pm_encoder_layer.5} parent=1 // loop_pre_header
      _
    $region3: #{unified_pm_encoder_layer.5} parent=1 // loop_header
      %s35 = sphi 0, %s39
      %p36 = scmp.ge.s32.totalorder %s35, 4
      %s42 = sphi 0, %s61
      %s43 = sphi 0, %s57
      %s44 = sphi 0, %s53
      %s45 = sphi 0, %s42
      %s46 = sphi 0, %s43
      %s47 = sphi 0, %s44
      %s48 = sphi 0, %s45
      %s49 = sphi 0, %s46
      %s50 = sphi 0, %s47
      %s70 = sphi 0, %s72
      %s73 = sphi 0, %s70
      %s74 = sphi 0, %s73
      %s90 = sphi 0, %s74
      %s102 = sphi 0, %s104
      %s105 = sphi 0, %s102
      %s106 = sphi 0, %s105
      %s122 = sphi 0, %s106
      %s134 = sphi 0, %s136
      %s137 = sphi 0, %s134
      %s138 = sphi 0, %s137
      %s154 = sphi 0, %s138
      %s160 = sphi 0, %s162
      %s163 = sphi 0, %s160
      %s164 = sphi 0, %s163
      %s180 = sphi 0, %s164
      %s186 = sphi 0, %s188
      %s189 = sphi 0, %s186
      %s190 = sphi 0, %s189
      %s206 = sphi 0, %s190
      %s210 = sphi 0, %s210
      %s212 = sphi 0, %s210
      %s213 = sphi 0, %s212
      %s227 = sphi 0, %s213
      %s231 = sphi 0, %s231
      %s233 = sphi 0, %s231
      %s234 = sphi 0, %s233
      %s248 = sphi 0, %s234
      %s258 = sphi 0, %s260
      %s261 = sphi 0, %s258
      %s262 = sphi 0, %s261
      %s278 = sphi 0, %s262
      %s284 = sphi 0, %s286
      %s287 = sphi 0, %s284
      %s288 = sphi 0, %s287
      %s304 = sphi 0, %s288
      %s314 = sphi 0, %s316
      %s317 = sphi 0, %s314
      %s318 = sphi 0, %s317
      %s334 = sphi 0, %s318
      %s344 = sphi 0, %s346
      %s347 = sphi 0, %s344
      %s348 = sphi 0, %s347
      %s364 = sphi 0, %s348
      %s372 = sphi 0, %s374
      %s375 = sphi 0, %s372
      %s376 = sphi 0, %s375
      %s392 = sphi 0, %s376
    $region4: #{unified_pm_encoder_layer.5} parent=1 // loop_header_branch
      %38 = sbr.rel (%p36) target = $region8
    $region5: #{unified_pm_encoder_layer.5} parent=1 // loop_body
      %s40 = ssub.s32 %s35, 1
      %s41 = ssub.s32 %s35, 2
      %s51 = sadd.s32 1, %s44
      %p52 = scmp.ge.s32.totalorder %s51, 1
      %s53 = scalar_select %p52, 0, %s51
      %s54 = sadd.s32 1, %s43
      %s55 = scalar_select %p52, %s54, %s43
      %p56 = scmp.ge.s32.totalorder %s55, 1
      %s57 = scalar_select %p56, 0, %s55
      %s58 = sadd.s32 1, %s42
      %s59 = scalar_select %p56, %s58, %s42
      %p60 = scmp.ge.s32.totalorder %s59, 2
      %s61 = scalar_select %p60, 0, %s59
      %s62 = smul.u32 %s42, 3
      %s63 = sadd.s32 %s62, %s44
      %s64 = smul.u32 %s61, 3
      %s65 = sadd.s32 %s64, %s53
      %s66 = ssub.s32 %s43, %s57
      %s67 = ssub.s32 %s63, %s65
      %s68 = sor.u32 %s66, %s67
      %p69 = scmp.eq.s32.totalorder %s68, 0
      %s71 = sadd.s32 %s70, 1
      %s72 = scalar_select %p69, %s70, %s71
      %p75 = pneg %p69
      %p76 = scmp.eq.s32.totalorder %s35, 1
      %p77 = por %p75, %p76
      %p78 = scmp.ne.s32.totalorder %s70, %s73
      %p79 = scmp.eq.s32.totalorder %s35, 0
      %p80 = por %p78, %p79
      %p81 = scmp.ne.s32.totalorder %s70, %s73
      %p82 = scmp.eq.s32.totalorder %s40, 1
      %p83 = por %p81, %p82
      %p84 = scmp.ne.s32.totalorder %s73, %s74
      %p85 = scmp.eq.s32.totalorder %s40, 0
      %p86 = por %p84, %p85
      %p87 = scmp.ne.s32.totalorder %s73, %s74
      %p88 = scmp.eq.s32.totalorder %s41, 1
      %p89 = por %p87, %p88
      %p91 = scmp.ne.s32.totalorder %s74, %s90
      %p92 = scmp.eq.s32.totalorder %s41, 0
      %p93 = por %p91, %p92
      %s94 = smul.u32 %s42, 3
      %s95 = sadd.s32 %s94, 1
      %s96 = sadd.s32 %s95, %s44
      %s97 = smul.u32 %s61, 3
      %s98 = sadd.s32 %s97, 1
      %s99 = sadd.s32 %s98, %s53
      %s100 = ssub.s32 %s96, %s99
      %p101 = scmp.eq.s32.totalorder %s100, 0
      %s103 = sadd.s32 %s102, 1
      %s104 = scalar_select %p101, %s102, %s103
      %p107 = pneg %p101
      %p108 = scmp.eq.s32.totalorder %s35, 1
      %p109 = por %p107, %p108
      %p110 = scmp.ne.s32.totalorder %s102, %s105
      %p111 = scmp.eq.s32.totalorder %s35, 0
      %p112 = por %p110, %p111
      %p113 = scmp.ne.s32.totalorder %s102, %s105
      %p114 = scmp.eq.s32.totalorder %s40, 1
      %p115 = por %p113, %p114
      %p116 = scmp.ne.s32.totalorder %s105, %s106
      %p117 = scmp.eq.s32.totalorder %s40, 0
      %p118 = por %p116, %p117
      %p119 = scmp.ne.s32.totalorder %s105, %s106
      %p120 = scmp.eq.s32.totalorder %s41, 1
      %p121 = por %p119, %p120
      %p123 = scmp.ne.s32.totalorder %s106, %s122
      %p124 = scmp.eq.s32.totalorder %s41, 0
      %p125 = por %p123, %p124
      %s126 = smul.u32 %s42, 3
      %s127 = sadd.s32 %s126, 2
      %s128 = sadd.s32 %s127, %s44
      %s129 = smul.u32 %s61, 3
      %s130 = sadd.s32 %s129, 2
      %s131 = sadd.s32 %s130, %s53
      %s132 = ssub.s32 %s128, %s131
      %p133 = scmp.eq.s32.totalorder %s132, 0
      %s135 = sadd.s32 %s134, 1
      %s136 = scalar_select %p133, %s134, %s135
      %p139 = pneg %p133
      %p140 = scmp.eq.s32.totalorder %s35, 1
      %p141 = por %p139, %p140
      %p142 = scmp.ne.s32.totalorder %s134, %s137
      %p143 = scmp.eq.s32.totalorder %s35, 0
      %p144 = por %p142, %p143
      %p145 = scmp.ne.s32.totalorder %s134, %s137
      %p146 = scmp.eq.s32.totalorder %s40, 1
      %p147 = por %p145, %p146
      %p148 = scmp.ne.s32.totalorder %s137, %s138
      %p149 = scmp.eq.s32.totalorder %s40, 0
      %p150 = por %p148, %p149
      %p151 = scmp.ne.s32.totalorder %s137, %s138
      %p152 = scmp.eq.s32.totalorder %s41, 1
      %p153 = por %p151, %p152
      %p155 = scmp.ne.s32.totalorder %s138, %s154
      %p156 = scmp.eq.s32.totalorder %s41, 0
      %p157 = por %p155, %p156
      %s158 = ssub.s32 %s43, %s57
      %p159 = scmp.eq.s32.totalorder %s158, 0
      %s161 = sadd.s32 %s160, 1
      %s162 = scalar_select %p159, %s160, %s161
      %p165 = pneg %p159
      %p166 = scmp.eq.s32.totalorder %s35, 1
      %p167 = por %p165, %p166
      %p168 = scmp.ne.s32.totalorder %s160, %s163
      %p169 = scmp.eq.s32.totalorder %s35, 0
      %p170 = por %p168, %p169
      %p171 = scmp.ne.s32.totalorder %s160, %s163
      %p172 = scmp.eq.s32.totalorder %s40, 1
      %p173 = por %p171, %p172
      %p174 = scmp.ne.s32.totalorder %s163, %s164
      %p175 = scmp.eq.s32.totalorder %s40, 0
      %p176 = por %p174, %p175
      %p177 = scmp.ne.s32.totalorder %s163, %s164
      %p178 = scmp.eq.s32.totalorder %s41, 1
      %p179 = por %p177, %p178
      %p181 = scmp.ne.s32.totalorder %s164, %s180
      %p182 = scmp.eq.s32.totalorder %s41, 0
      %p183 = por %p181, %p182
      %s184 = ssub.s32 %s43, %s57
      %p185 = scmp.eq.s32.totalorder %s184, 0
      %s187 = sadd.s32 %s186, 1
      %s188 = scalar_select %p185, %s186, %s187
      %p191 = pneg %p185
      %p192 = scmp.eq.s32.totalorder %s35, 1
      %p193 = por %p191, %p192
      %p194 = scmp.ne.s32.totalorder %s186, %s189
      %p195 = scmp.eq.s32.totalorder %s35, 0
      %p196 = por %p194, %p195
      %p197 = scmp.ne.s32.totalorder %s186, %s189
      %p198 = scmp.eq.s32.totalorder %s40, 1
      %p199 = por %p197, %p198
      %p200 = scmp.ne.s32.totalorder %s189, %s190
      %p201 = scmp.eq.s32.totalorder %s40, 0
      %p202 = por %p200, %p201
      %p203 = scmp.ne.s32.totalorder %s189, %s190
      %p204 = scmp.eq.s32.totalorder %s41, 1
      %p205 = por %p203, %p204
      %p207 = scmp.ne.s32.totalorder %s190, %s206
      %p208 = scmp.eq.s32.totalorder %s41, 0
      %p209 = por %p207, %p208
      %s211 = sadd.s32 %s210, 1
      %p214 = scmp.eq.s32.totalorder %s35, 1
      %p215 = scmp.ne.s32.totalorder %s210, %s212
      %p216 = scmp.eq.s32.totalorder %s35, 0
      %p217 = por %p215, %p216
      %p218 = scmp.ne.s32.totalorder %s210, %s212
      %p219 = scmp.eq.s32.totalorder %s40, 1
      %p220 = por %p218, %p219
      %p221 = scmp.ne.s32.totalorder %s212, %s213
      %p222 = scmp.eq.s32.totalorder %s40, 0
      %p223 = por %p221, %p222
      %p224 = scmp.ne.s32.totalorder %s212, %s213
      %p225 = scmp.eq.s32.totalorder %s41, 1
      %p226 = por %p224, %p225
      %p228 = scmp.ne.s32.totalorder %s213, %s227
      %p229 = scmp.eq.s32.totalorder %s41, 0
      %p230 = por %p228, %p229
      %s232 = sadd.s32 %s231, 1
      %p235 = scmp.eq.s32.totalorder %s35, 1
      %p236 = scmp.ne.s32.totalorder %s231, %s233
      %p237 = scmp.eq.s32.totalorder %s35, 0
      %p238 = por %p236, %p237
      %p239 = scmp.ne.s32.totalorder %s231, %s233
      %p240 = scmp.eq.s32.totalorder %s40, 1
      %p241 = por %p239, %p240
      %p242 = scmp.ne.s32.totalorder %s233, %s234
      %p243 = scmp.eq.s32.totalorder %s40, 0
      %p244 = por %p242, %p243
      %p245 = scmp.ne.s32.totalorder %s233, %s234
      %p246 = scmp.eq.s32.totalorder %s41, 1
      %p247 = por %p245, %p246
      %p249 = scmp.ne.s32.totalorder %s234, %s248
      %p250 = scmp.eq.s32.totalorder %s41, 0
      %p251 = por %p249, %p250
      %s252 = ssub.s32 %s42, %s61
      %s253 = ssub.s32 %s44, %s53
      %s254 = sor.u32 %s252, %s253
      %s255 = ssub.s32 %s43, %s57
      %s256 = sor.u32 %s254, %s255
      %p257 = scmp.eq.s32.totalorder %s256, 0
      %s259 = sadd.s32 %s258, 1
      %s260 = scalar_select %p257, %s258, %s259
      %p263 = pneg %p257
      %p264 = scmp.eq.s32.totalorder %s35, 1
      %p265 = por %p263, %p264
      %p266 = scmp.ne.s32.totalorder %s258, %s261
      %p267 = scmp.eq.s32.totalorder %s35, 0
      %p268 = por %p266, %p267
      %p269 = scmp.ne.s32.totalorder %s258, %s261
      %p270 = scmp.eq.s32.totalorder %s40, 1
      %p271 = por %p269, %p270
      %p272 = scmp.ne.s32.totalorder %s261, %s262
      %p273 = scmp.eq.s32.totalorder %s40, 0
      %p274 = por %p272, %p273
      %p275 = scmp.ne.s32.totalorder %s261, %s262
      %p276 = scmp.eq.s32.totalorder %s41, 1
      %p277 = por %p275, %p276
      %p279 = scmp.ne.s32.totalorder %s262, %s278
      %p280 = scmp.eq.s32.totalorder %s41, 0
      %p281 = por %p279, %p280
      %s282 = ssub.s32 %s42, %s61
      %p283 = scmp.eq.s32.totalorder %s282, 0
      %s285 = sadd.s32 %s284, 1
      %s286 = scalar_select %p283, %s284, %s285
      %p289 = pneg %p283
      %p290 = scmp.eq.s32.totalorder %s35, 1
      %p291 = por %p289, %p290
      %p292 = scmp.ne.s32.totalorder %s284, %s287
      %p293 = scmp.eq.s32.totalorder %s35, 0
      %p294 = por %p292, %p293
      %p295 = scmp.ne.s32.totalorder %s284, %s287
      %p296 = scmp.eq.s32.totalorder %s40, 1
      %p297 = por %p295, %p296
      %p298 = scmp.ne.s32.totalorder %s287, %s288
      %p299 = scmp.eq.s32.totalorder %s40, 0
      %p300 = por %p298, %p299
      %p301 = scmp.ne.s32.totalorder %s287, %s288
      %p302 = scmp.eq.s32.totalorder %s41, 1
      %p303 = por %p301, %p302
      %p305 = scmp.ne.s32.totalorder %s288, %s304
      %p306 = scmp.eq.s32.totalorder %s41, 0
      %p307 = por %p305, %p306
      %s308 = sadd.s32 %s42, %s44
      %s309 = sadd.s32 %s61, %s53
      %s310 = ssub.s32 %s43, %s57
      %s311 = ssub.s32 %s308, %s309
      %s312 = sor.u32 %s310, %s311
      %p313 = scmp.eq.s32.totalorder %s312, 0
      %s315 = sadd.s32 %s314, 1
      %s316 = scalar_select %p313, %s314, %s315
      %p319 = pneg %p313
      %p320 = scmp.eq.s32.totalorder %s35, 1
      %p321 = por %p319, %p320
      %p322 = scmp.ne.s32.totalorder %s314, %s317
      %p323 = scmp.eq.s32.totalorder %s35, 0
      %p324 = por %p322, %p323
      %p325 = scmp.ne.s32.totalorder %s314, %s317
      %p326 = scmp.eq.s32.totalorder %s40, 1
      %p327 = por %p325, %p326
      %p328 = scmp.ne.s32.totalorder %s317, %s318
      %p329 = scmp.eq.s32.totalorder %s40, 0
      %p330 = por %p328, %p329
      %p331 = scmp.ne.s32.totalorder %s317, %s318
      %p332 = scmp.eq.s32.totalorder %s41, 1
      %p333 = por %p331, %p332
      %p335 = scmp.ne.s32.totalorder %s318, %s334
      %p336 = scmp.eq.s32.totalorder %s41, 0
      %p337 = por %p335, %p336
      %s338 = ssub.s32 %s42, %s61
      %s339 = ssub.s32 %s44, %s53
      %s340 = sor.u32 %s338, %s339
      %s341 = ssub.s32 %s43, %s57
      %s342 = sor.u32 %s340, %s341
      %p343 = scmp.eq.s32.totalorder %s342, 0
      %s345 = sadd.s32 %s344, 1
      %s346 = scalar_select %p343, %s344, %s345
      %p349 = pneg %p343
      %p350 = scmp.eq.s32.totalorder %s35, 1
      %p351 = por %p349, %p350
      %p352 = scmp.ne.s32.totalorder %s344, %s347
      %p353 = scmp.eq.s32.totalorder %s35, 0
      %p354 = por %p352, %p353
      %p355 = scmp.ne.s32.totalorder %s344, %s347
      %p356 = scmp.eq.s32.totalorder %s40, 1
      %p357 = por %p355, %p356
      %p358 = scmp.ne.s32.totalorder %s347, %s348
      %p359 = scmp.eq.s32.totalorder %s40, 0
      %p360 = por %p358, %p359
      %p361 = scmp.ne.s32.totalorder %s347, %s348
      %p362 = scmp.eq.s32.totalorder %s41, 1
      %p363 = por %p361, %p362
      %p365 = scmp.ne.s32.totalorder %s348, %s364
      %p366 = scmp.eq.s32.totalorder %s41, 0
      %p367 = por %p365, %p366
      %s368 = ssub.s32 %s42, %s61
      %s369 = ssub.s32 %s43, %s57
      %s370 = sor.u32 %s368, %s369
      %p371 = scmp.eq.s32.totalorder %s370, 0
      %s373 = sadd.s32 %s372, 1
      %s374 = scalar_select %p371, %s372, %s373
      %p377 = pneg %p371
      %p378 = scmp.eq.s32.totalorder %s35, 1
      %p379 = por %p377, %p378
      %p380 = scmp.ne.s32.totalorder %s372, %s375
      %p381 = scmp.eq.s32.totalorder %s35, 0
      %p382 = por %p380, %p381
      %p383 = scmp.ne.s32.totalorder %s372, %s375
      %p384 = scmp.eq.s32.totalorder %s40, 1
      %p385 = por %p383, %p384
      %p386 = scmp.ne.s32.totalorder %s375, %s376
      %p387 = scmp.eq.s32.totalorder %s40, 0
      %p388 = por %p386, %p387
      %p389 = scmp.ne.s32.totalorder %s375, %s376
      %p390 = scmp.eq.s32.totalorder %s41, 1
      %p391 = por %p389, %p390
      %p393 = scmp.ne.s32.totalorder %s376, %s392
      %p394 = scmp.eq.s32.totalorder %s41, 0
      %p395 = por %p393, %p394
      %p396 = scmp.le.s32.totalorder 1, %s35
      %p397 = scmp.lt.s32.totalorder %s35, 3
      %p398 = pnand %p396, %p397
      %p399 = pneg %p398
      // Predicated region
      $region9: #{unified_pm_encoder_layer.5} parent=5 // pred_check
        _
      $region10: #{unified_pm_encoder_layer.5} parent=5 // pred_check_branch
        %401 = sbr.rel (%p398) target = $region12
      $region11: #{unified_pm_encoder_layer.5} parent=5 // pred_region
        %s402 = ssub.s32 %s35, 1
        // Predicated region
        $region13: #{unified_pm_encoder_layer.5} parent=11 // pred_check
          %p403 = pneg %p176
        $region14: #{unified_pm_encoder_layer.5} parent=11 // pred_check_branch
          %405 = sbr.rel (%p403) target = $region16
        $region15: #{unified_pm_encoder_layer.5} parent=11 // pred_region
          %s406 = smul.u32 2, %s46
          %s408 = ssub.s32 256, 256
          %409 = vsyncadd [#allocation9], %s408
          %s410 = smul.addr %s406, 128
          %s411 = scalar_lea.hbm %s3, %s410
          %s412 = sshll.u32 [#allocation8], 4
          %s413 = int_to_ptr.vmem [resolvable:$true] %s412
          %418 = dma.hbm_to_vmem [thread:$0]  %s411, 256, %s413, [#allocation9], 128, 128, 8
        $region16: #{unified_pm_encoder_layer.5} parent=11 // pred_fallthru
          _
        // Predicated region
        $region17: #{unified_pm_encoder_layer.5} parent=11 // pred_check
          %p419 = pneg %p202
        $region18: #{unified_pm_encoder_layer.5} parent=11 // pred_check_branch
          %421 = sbr.rel (%p419) target = $region20
        $region19: #{unified_pm_encoder_layer.5} parent=11 // pred_region
          %s422 = smul.u32 2, %s46
          %s424 = ssub.s32 256, 256
          %425 = vsyncadd [#allocation9], %s424
          %s426 = smul.addr %s422, 128
          %s427 = scalar_lea.hbm %s4, %s426
          %s428 = sshll.u32 [#allocation10], 4
          %s429 = int_to_ptr.vmem [resolvable:$true] %s428
          %434 = dma.hbm_to_vmem [thread:$0]  %s427, 256, %s429, [#allocation9], 128, 128, 8
        $region20: #{unified_pm_encoder_layer.5} parent=11 // pred_fallthru
          _
        // Predicated region
        $region21: #{unified_pm_encoder_layer.5} parent=11 // pred_check
          %p435 = pneg %p223
        $region22: #{unified_pm_encoder_layer.5} parent=11 // pred_check_branch
          %437 = sbr.rel (%p435) target = $region24
        $region23: #{unified_pm_encoder_layer.5} parent=11 // pred_region
          %s439 = ssub.s32 256, 256
          %440 = vsyncadd [#allocation12], %s439
          %s441 = sshll.u32 [#allocation11], 4
          %s442 = int_to_ptr.vmem [resolvable:$true] %s441
          %447 = dma.hbm_to_vmem [thread:$0]  %s5, 256, %s442, [#allocation12], 128, 128, 8
        $region24: #{unified_pm_encoder_layer.5} parent=11 // pred_fallthru
          _
        // Predicated region
        $region25: #{unified_pm_encoder_layer.5} parent=11 // pred_check
          %p448 = pneg %p244
        $region26: #{unified_pm_encoder_layer.5} parent=11 // pred_check_branch
          %450 = sbr.rel (%p448) target = $region28
        $region27: #{unified_pm_encoder_layer.5} parent=11 // pred_region
          %s452 = ssub.s32 256, 256
          %453 = vsyncadd [#allocation12], %s452
          %s454 = sshll.u32 [#allocation13], 4
          %s455 = int_to_ptr.vmem [resolvable:$true] %s454
          %460 = dma.hbm_to_vmem [thread:$0]  %s6, 256, %s455, [#allocation12], 128, 128, 8
        $region28: #{unified_pm_encoder_layer.5} parent=11 // pred_fallthru
          _
      $region12: #{unified_pm_encoder_layer.5} parent=5 // pred_fallthru
        _
      %p461 = scmp.lt.s32.totalorder %s35, 2
      // Predicated region
      $region29: #{unified_pm_encoder_layer.5} parent=5 // pred_check
        %p462 = pneg %p461
      $region30: #{unified_pm_encoder_layer.5} parent=5 // pred_check_branch
        %464 = sbr.rel (%p462) target = $region32
      $region31: #{unified_pm_encoder_layer.5} parent=5 // pred_region
        // Predicated region
        $region33: #{unified_pm_encoder_layer.5} parent=31 // pred_check
          %p465 = pneg %p80
        $region34: #{unified_pm_encoder_layer.5} parent=31 // pred_check_branch
          %467 = sbr.rel (%p465) target = $region36
        $region35: #{unified_pm_encoder_layer.5} parent=31 // pred_region
          %s468 = sand.u32 %s70, 1
          %s469 = scalar_lea.sflag [#allocation3], %s468
          %s470 = sand.u32 %s70, 1
          %s471 = smul.addr %s470, 32
          %s472 = scalar_lea.vmem [#allocation2], %s471
          %s473 = smul.u32 %s42, 3
          %s474 = sadd.s32 %s473, %s44
          %s475 = smul.u32 2, %s43
          %s476 = smul.u32 2, %s474
          %s478 = ssub.s32 512, 512
          %479 = vsyncadd %s469, %s478
          %s480 = smul.addr %s475, 12
          %s481 = sadd.s32 %s476, %s480
          %s482 = smul.addr %s481, 128
          %s483 = scalar_lea.hbm %s0, %s482
          %s484 = sshll.u32 %s472, 4
          %s485 = int_to_ptr.vmem [resolvable:$true] %s484
          %490 = dma.hbm_to_vmem [thread:$0]  %s483, 512, %s485, %s469, 1536, 256, 16
        $region36: #{unified_pm_encoder_layer.5} parent=31 // pred_fallthru
          _
        // Predicated region
        $region37: #{unified_pm_encoder_layer.5} parent=31 // pred_check
          %p491 = pneg %p112
        $region38: #{unified_pm_encoder_layer.5} parent=31 // pred_check_branch
          %493 = sbr.rel (%p491) target = $region40
        $region39: #{unified_pm_encoder_layer.5} parent=31 // pred_region
          %s494 = sand.u32 %s35, 1
          %s495 = scalar_lea.sflag [#allocation6], %s494
          %s496 = sand.u32 %s102, 1
          %s497 = smul.addr %s496, 32
          %s498 = scalar_lea.vmem [#allocation5], %s497
          %s499 = smul.u32 %s42, 3
          %s500 = sadd.s32 %s499, 1
          %s501 = sadd.s32 %s500, %s44
          %s502 = smul.u32 2, %s501
          %s504 = ssub.s32 512, 512
          %505 = vsyncadd %s495, %s504
          %s506 = smul.addr %s502, 128
          %s507 = scalar_lea.hbm %s1, %s506
          %s508 = sshll.u32 %s498, 4
          %s509 = int_to_ptr.vmem [resolvable:$true] %s508
          %514 = dma.hbm_to_vmem [thread:$0]  %s507, 512, %s509, %s495, 1536, 256, 16
        $region40: #{unified_pm_encoder_layer.5} parent=31 // pred_fallthru
          _
        // Predicated region
        $region41: #{unified_pm_encoder_layer.5} parent=31 // pred_check
          %p515 = pneg %p144
        $region42: #{unified_pm_encoder_layer.5} parent=31 // pred_check_branch
          %517 = sbr.rel (%p515) target = $region44
        $region43: #{unified_pm_encoder_layer.5} parent=31 // pred_region
          %s518 = sand.u32 %s35, 1
          %s519 = scalar_lea.sflag [#allocation6], %s518
          %s520 = sand.u32 %s134, 1
          %s521 = smul.addr %s520, 32
          %s522 = scalar_lea.vmem [#allocation7], %s521
          %s523 = smul.u32 %s42, 3
          %s524 = sadd.s32 %s523, 2
          %s525 = sadd.s32 %s524, %s44
          %s526 = smul.u32 2, %s525
          %s528 = ssub.s32 512, 512
          %529 = vsyncadd %s519, %s528
          %s530 = smul.addr %s526, 128
          %s531 = scalar_lea.hbm %s2, %s530
          %s532 = sshll.u32 %s522, 4
          %s533 = int_to_ptr.vmem [resolvable:$true] %s532
          %538 = dma.hbm_to_vmem [thread:$0]  %s531, 512, %s533, %s519, 1536, 256, 16
        $region44: #{unified_pm_encoder_layer.5} parent=31 // pred_fallthru
          _
        // Predicated region
        $region45: #{unified_pm_encoder_layer.5} parent=31 // pred_check
          %p539 = pneg %p268
        $region46: #{unified_pm_encoder_layer.5} parent=31 // pred_check_branch
          %541 = sbr.rel (%p539) target = $region48
        $region47: #{unified_pm_encoder_layer.5} parent=31 // pred_region
          %s542 = sand.u32 %s35, 1
          %s543 = scalar_lea.sflag [#allocation15], %s542
          %s544 = sand.u32 %s258, 1
          %s545 = smul.addr %s544, 64
          %s546 = scalar_lea.vmem [#allocation14], %s545
          %s547 = smul.u32 4, %s44
          %s548 = smul.u32 2, %s43
          %s550 = ssub.s32 1024, 1024
          %551 = vsyncadd %s543, %s550
          %s552 = smul.addr %s547, 2
          %s553 = sadd.s32 %s548, %s552
          %s554 = smul.addr %s42, 8
          %s555 = sadd.s32 %s553, %s554
          %s556 = smul.addr %s555, 128
          %s557 = scalar_lea.hbm %s7, %s556
          %s558 = sshll.u32 %s546, 4
          %s559 = int_to_ptr.vmem [resolvable:$true] %s558
          %564 = dma.hbm_to_vmem [thread:$0]  %s557, 1024, %s559, %s543, 128, 128, 8
        $region48: #{unified_pm_encoder_layer.5} parent=31 // pred_fallthru
          _
        // Predicated region
        $region49: #{unified_pm_encoder_layer.5} parent=31 // pred_check
          %p565 = pneg %p294
        $region50: #{unified_pm_encoder_layer.5} parent=31 // pred_check_branch
          %567 = sbr.rel (%p565) target = $region52
        $region51: #{unified_pm_encoder_layer.5} parent=31 // pred_region
          %s568 = sand.u32 %s35, 1
          %s569 = scalar_lea.sflag [#allocation15], %s568
          %s570 = sand.u32 %s284, 1
          %s571 = scalar_lea.vmem [#allocation16], %s570
          %s573 = ssub.s32 16, 16
          %574 = vsyncadd %s569, %s573
          %s575 = smul.addr %s42, 16
          %s576 = scalar_lea.hbm %s8, %s575
          %s578 = sshll.u32 %s571, 4
          %s579 = int_to_ptr.vmem [resolvable:$true] %s578
          %581 = dma.hbm_to_vmem [thread:$0]  %s576, 16, %s579, %s569
        $region52: #{unified_pm_encoder_layer.5} parent=31 // pred_fallthru
          _
      $region32: #{unified_pm_encoder_layer.5} parent=5 // pred_fallthru
        _
      %p582 = scmp.le.s32.totalorder 1, %s35
      %p583 = scmp.lt.s32.totalorder %s35, 3
      %p584 = pnand %p582, %p583
      %p585 = pneg %p584
      // Predicated region
      $region53: #{unified_pm_encoder_layer.5} parent=5 // pred_check
        _
      $region54: #{unified_pm_encoder_layer.5} parent=5 // pred_check_branch
        %587 = sbr.rel (%p584) target = $region56
      $region55: #{unified_pm_encoder_layer.5} parent=5 // pred_region
        %s588 = ssub.s32 %s35, 1
        %s589 = sand.u32 %s73, 1
        %s590 = scalar_lea.sflag [#allocation3], %s589
        %s591 = sand.u32 %s73, 1
        %s592 = smul.addr %s591, 32
        %s593 = scalar_lea.vmem [#allocation2], %s592
        // Predicated region
        $region57: #{unified_pm_encoder_layer.5} parent=55 // pred_check
          %p594 = pneg %p86
        $region58: #{unified_pm_encoder_layer.5} parent=55 // pred_check_branch
          %596 = sbr.rel (%p594) target = $region60
        $region59: #{unified_pm_encoder_layer.5} parent=55 // pred_region
          %597 = dma.done %s590, 512
        $region60: #{unified_pm_encoder_layer.5} parent=55 // pred_fallthru
          _
        %s598 = sand.u32 %s40, 1
        %s599 = scalar_lea.sflag [#allocation6], %s598
        %s600 = sand.u32 %s105, 1
        %s601 = smul.addr %s600, 32
        %s602 = scalar_lea.vmem [#allocation5], %s601
        // Predicated region
        $region61: #{unified_pm_encoder_layer.5} parent=55 // pred_check
          %p603 = pneg %p118
        $region62: #{unified_pm_encoder_layer.5} parent=55 // pred_check_branch
          %605 = sbr.rel (%p603) target = $region64
        $region63: #{unified_pm_encoder_layer.5} parent=55 // pred_region
          %606 = dma.done %s599, 512
        $region64: #{unified_pm_encoder_layer.5} parent=55 // pred_fallthru
          _
        %s607 = sand.u32 %s40, 1
        %s608 = scalar_lea.sflag [#allocation6], %s607
        %s609 = sand.u32 %s137, 1
        %s610 = smul.addr %s609, 32
        %s611 = scalar_lea.vmem [#allocation7], %s610
        // Predicated region
        $region65: #{unified_pm_encoder_layer.5} parent=55 // pred_check
          %p612 = pneg %p150
        $region66: #{unified_pm_encoder_layer.5} parent=55 // pred_check_branch
          %614 = sbr.rel (%p612) target = $region68
        $region67: #{unified_pm_encoder_layer.5} parent=55 // pred_region
          %615 = dma.done %s608, 512
        $region68: #{unified_pm_encoder_layer.5} parent=55 // pred_fallthru
          _
        // Predicated region
        $region69: #{unified_pm_encoder_layer.5} parent=55 // pred_check
          %p616 = pneg %p176
        $region70: #{unified_pm_encoder_layer.5} parent=55 // pred_check_branch
          %618 = sbr.rel (%p616) target = $region72
        $region71: #{unified_pm_encoder_layer.5} parent=55 // pred_region
          %619 = dma.done [#allocation9], 256
        $region72: #{unified_pm_encoder_layer.5} parent=55 // pred_fallthru
          _
        // Predicated region
        $region73: #{unified_pm_encoder_layer.5} parent=55 // pred_check
          %p620 = pneg %p202
        $region74: #{unified_pm_encoder_layer.5} parent=55 // pred_check_branch
          %622 = sbr.rel (%p620) target = $region76
        $region75: #{unified_pm_encoder_layer.5} parent=55 // pred_region
          %623 = dma.done [#allocation9], 256
        $region76: #{unified_pm_encoder_layer.5} parent=55 // pred_fallthru
          _
        // Predicated region
        $region77: #{unified_pm_encoder_layer.5} parent=55 // pred_check
          %p624 = pneg %p223
        $region78: #{unified_pm_encoder_layer.5} parent=55 // pred_check_branch
          %626 = sbr.rel (%p624) target = $region80
        $region79: #{unified_pm_encoder_layer.5} parent=55 // pred_region
          %627 = dma.done [#allocation12], 256
        $region80: #{unified_pm_encoder_layer.5} parent=55 // pred_fallthru
          _
        // Predicated region
        $region81: #{unified_pm_encoder_layer.5} parent=55 // pred_check
          %p628 = pneg %p244
        $region82: #{unified_pm_encoder_layer.5} parent=55 // pred_check_branch
          %630 = sbr.rel (%p628) target = $region84
        $region83: #{unified_pm_encoder_layer.5} parent=55 // pred_region
          %631 = dma.done [#allocation12], 256
        $region84: #{unified_pm_encoder_layer.5} parent=55 // pred_fallthru
          _
        %s632 = sand.u32 %s40, 1
        %s633 = scalar_lea.sflag [#allocation15], %s632
        %s634 = sand.u32 %s261, 1
        %s635 = smul.addr %s634, 64
        %s636 = scalar_lea.vmem [#allocation14], %s635
        // Predicated region
        $region85: #{unified_pm_encoder_layer.5} parent=55 // pred_check
          %p637 = pneg %p274
        $region86: #{unified_pm_encoder_layer.5} parent=55 // pred_check_branch
          %639 = sbr.rel (%p637) target = $region88
        $region87: #{unified_pm_encoder_layer.5} parent=55 // pred_region
          %640 = dma.done %s633, 1024
        $region88: #{unified_pm_encoder_layer.5} parent=55 // pred_fallthru
          _
        %s641 = sand.u32 %s40, 1
        %s642 = scalar_lea.sflag [#allocation15], %s641
        %s643 = sand.u32 %s287, 1
        %s644 = scalar_lea.vmem [#allocation16], %s643
        // Predicated region
        $region89: #{unified_pm_encoder_layer.5} parent=55 // pred_check
          %p645 = pneg %p300
        $region90: #{unified_pm_encoder_layer.5} parent=55 // pred_check_branch
          %647 = sbr.rel (%p645) target = $region92
        $region91: #{unified_pm_encoder_layer.5} parent=55 // pred_region
          %648 = dma.done %s642, 16
        $region92: #{unified_pm_encoder_layer.5} parent=55 // pred_fallthru
          _
        %s649 = sand.u32 %s73, 1
        %s650 = scalar_lea.sflag [#allocation3], %s649
        %s651 = sand.u32 %s73, 1
        %s652 = smul.addr %s651, 32
        %s653 = scalar_lea.vmem [#allocation2], %s652
        %p654 = pneg %p86
        %p655 = pneg %p83
        %s656 = sand.u32 %s40, 1
        %s657 = scalar_lea.sflag [#allocation6], %s656
        %s658 = sand.u32 %s105, 1
        %s659 = smul.addr %s658, 32
        %s660 = scalar_lea.vmem [#allocation5], %s659
        %p661 = pneg %p118
        %p662 = pneg %p115
        %s663 = sand.u32 %s40, 1
        %s664 = scalar_lea.sflag [#allocation6], %s663
        %s665 = sand.u32 %s137, 1
        %s666 = smul.addr %s665, 32
        %s667 = scalar_lea.vmem [#allocation7], %s666
        %p668 = pneg %p150
        %p669 = pneg %p147
        %p670 = pneg %p176
        %p671 = pneg %p173
        %p672 = pneg %p202
        %p673 = pneg %p199
        %p674 = pneg %p223
        %p675 = pneg %p220
        %p676 = pneg %p244
        %p677 = pneg %p241
        %s678 = sand.u32 %s40, 1
        %s679 = scalar_lea.sflag [#allocation15], %s678
        %s680 = sand.u32 %s261, 1
        %s681 = smul.addr %s680, 64
        %s682 = scalar_lea.vmem [#allocation14], %s681
        %p683 = pneg %p274
        %p684 = pneg %p271
        %s685 = sand.u32 %s40, 1
        %s686 = scalar_lea.sflag [#allocation15], %s685
        %s687 = sand.u32 %s287, 1
        %s688 = scalar_lea.vmem [#allocation16], %s687
        %p689 = pneg %p300
        %p690 = pneg %p297
        %p691 = pneg %p330
        %p692 = pneg %p327
        %s693 = sand.u32 %s317, 1
        %s694 = scalar_lea.sflag [#allocation4], %s693
        %s695 = sand.u32 %s317, 1
        %s696 = smul.addr %s695, 32
        %s697 = scalar_lea.vmem [#allocation17], %s696
        %p698 = pneg %p360
        %p699 = pneg %p357
        %s700 = sand.u32 %s40, 1
        %s701 = scalar_lea.sflag [#allocation19], %s700
        %s702 = sand.u32 %s347, 1
        %s703 = smul.addr %s702, 64
        %s704 = scalar_lea.vmem [#allocation18], %s703
        %p705 = pneg %p388
        %p706 = pneg %p385
        %s707 = sand.u32 %s40, 1
        %s708 = scalar_lea.sflag [#allocation19], %s707
        %s709 = sand.u32 %s375, 1
        %s710 = smul.addr %s709, 16
        %s711 = scalar_lea.vmem [#allocation20], %s710
        %s712 = smul.u32 %s45, 3
        %s713 = sadd.s32 %s712, %s47
        %s714 = smul.u32 2, %s46
        %s715 = smul.u32 2, %s713
        %s716 = smul.u32 %s45, 3
        %s717 = sadd.s32 %s716, 1
        %s718 = sadd.s32 %s717, %s47
        %s719 = smul.u32 2, %s718
        %s720 = smul.u32 %s45, 3
        %s721 = sadd.s32 %s720, 2
        %s722 = sadd.s32 %s721, %s47
        %s723 = smul.u32 2, %s722
        %s724 = smul.u32 2, %s46
        %s725 = smul.u32 2, %s46
        %s726 = smul.u32 4, %s47
        %s727 = smul.u32 2, %s46
        %s728 = sadd.s32 %s45, %s47
        %s729 = smul.u32 2, %s46
        %s730 = smul.u32 2, %s728
        %s731 = smul.u32 4, %s47
        %s732 = smul.u32 2, %s46
        %s733 = smul.u32 2, %s46
        %v734 = vld [vmem:[#allocation8] sm:$0xff]
        %v735 = vld [vmem:[#allocation8 + $0x8] sm:$0xff]
        %v736 = vld [vmem:[#allocation10] sm:$0xff]
        %v737 = vld [vmem:[#allocation10 + $0x8] sm:$0xff]
        %v738 = vld [vmem:[#allocation11] sm:$0xff]
        %v739 = vld [vmem:[#allocation11 + $0x8] sm:$0xff]
        %v740 = vld [vmem:[#allocation13] sm:$0xff]
        %v741 = vld [vmem:[#allocation13 + $0x8] sm:$0xff]
        %v742 = vld [vmem:[%s644] sm:$0x1]
        %p743 = scmp.eq.s32.totalorder %s47, 0
        // Predicated region
        $region93: #{unified_pm_encoder_layer.5} parent=55 // pred_check
          %p744 = pneg %p743
        $region94: #{unified_pm_encoder_layer.5} parent=55 // pred_check_branch
          %746 = sbr.rel (%p744) target = $region96
        $region95: #{unified_pm_encoder_layer.5} parent=55 // pred_region
          %vm747 = vcmask 130048
          %748 = vst.msk [vmem:[%s711] sm:$0xff] %vm747, 0.0
          %749 = vst.msk [vmem:[%s711 + $0x8] sm:$0xff] %vm747, 0.0
        $region96: #{unified_pm_encoder_layer.5} parent=55 // pred_fallthru
          _
        %v750 = vld [vmem:[%s593] sm:$0xff]
        %v751 = vld [vmem:[%s593 + $0x10] sm:$0xff]
        %v752 = vsub.f32 0.0, %v750
        %v753 = vsub.f32 0.0, %v751
        %756 = vrot.lane.b32.xlu0 %v752, 96
        %v757 = vpop.permute.xlu0 %756
        %758 = vrot.lane.b32.xlu0 %v753, 96
        %v759 = vpop.permute.xlu0 %758
        %764 = vrot.lane.b32.xlu0 %v750, 32
        %v765 = vpop.permute.xlu0 %764
        %766 = vrot.lane.b32.xlu0 %v751, 32
        %v767 = vpop.permute.xlu0 %766
        %vm770 = vcmask 261120
        %v771 = vsel %vm770, %v757, %v765
        %v772 = vsel %vm770, %v759, %v767
        %v773 = vmul.f32 %v750, %v734
        %v774 = vmul.f32 %v751, %v735
        %v775 = vmul.f32 %v771, %v736
        %v776 = vmul.f32 %v772, %v737
        %v777 = vadd.f32 %v773, %v775
        %v778 = vadd.f32 %v774, %v776
        %v779 = vld [vmem:[%s602] sm:$0xff]
        %v780 = vld [vmem:[%s602 + $0x10] sm:$0xff]
        %v781 = vsub.f32 0.0, %v779
        %v782 = vsub.f32 0.0, %v780
        %785 = vrot.lane.b32.xlu0 %v781, 96
        %v786 = vpop.permute.xlu0 %785
        %787 = vrot.lane.b32.xlu0 %v782, 96
        %v788 = vpop.permute.xlu0 %787
        %793 = vrot.lane.b32.xlu0 %v779, 32
        %v794 = vpop.permute.xlu0 %793
        %795 = vrot.lane.b32.xlu0 %v780, 32
        %v796 = vpop.permute.xlu0 %795
        %v799 = vsel %vm770, %v786, %v794
        %v800 = vsel %vm770, %v788, %v796
        %v801 = vmul.f32 %v779, %v738
        %v802 = vmul.f32 %v780, %v739
        %v803 = vmul.f32 %v799, %v740
        %v804 = vmul.f32 %v800, %v741
        %v805 = vadd.f32 %v801, %v803
        %v806 = vadd.f32 %v802, %v804
        %v807 = vld [vmem:[%s636] sm:$0xff]
        %v808 = vld [vmem:[%s636 + $0x8] sm:$0xff]
        %vm809 = vcmask 523264
        %v811 = vsel %vm809, %v777, 0
        %v814 = vsel %vm809, %v778, 0
        %v817 = vsel %vm809, %v805, 0
        %v820 = vsel %vm809, %v806, 0
        %822 = vmatprep.subr.mxu0 0.0
        %823 = vmatpush1.xpose.msra.mxu0 %v817
        %824 = vmatprep.subr.mxu0 0.0
        %825 = vmatpush1.xpose.msra.mxu0 %v820
        %826 = vmatprep.subr.mxu0 0.0
        %827 = vmatpush1.xpose.msra.mxu0 0.0
        %828 = vmatprep.subr.mxu0 0.0
        %829 = vmatpush1.xpose.msra.mxu0 0.0
        %830 = vmatprep.subr.mxu0 0.0
        %831 = vmatpush1.xpose.msra.mxu0 0.0
        %832 = vmatprep.subr.mxu0 0.0
        %833 = vmatpush1.xpose.msra.mxu0 0.0
        %834 = vmatprep.subr.mxu0 0.0
        %835 = vmatpush1.xpose.msra.mxu0 0.0
        %836 = vmatprep.subr.mxu0 0.0
        %837 = vmatpush1.xpose.msra.mxu0 0.0
        %838 = vmatprep.subr.mxu0 0.0
        %839 = vmatpush1.xpose.msra.mxu0 0.0
        %840 = vmatprep.subr.mxu0 0.0
        %841 = vmatpush1.xpose.msra.mxu0 0.0
        %842 = vmatprep.subr.mxu0 0.0
        %843 = vmatpush1.xpose.msra.mxu0 0.0
        %844 = vmatprep.subr.mxu0 0.0
        %845 = vmatpush1.xpose.msra.mxu0 0.0
        %846 = vmatprep.subr.mxu0 0.0
        %847 = vmatpush1.xpose.msra.mxu0 0.0
        %848 = vmatprep.subr.mxu0 0.0
        %849 = vmatpush1.xpose.msra.mxu0 0.0
        %850 = vmatprep.subr.mxu0 0.0
        %851 = vmatpush1.xpose.msra.mxu0 0.0
        %852 = vmatprep.subr.mxu0 0.0
        %853 = vmatpush1.xpose.msra.mxu0 0.0
        %854 = vmatprep.subr.mxu0 0.0
        %855 = vmatpush1.xpose.msra.mxu0 0.0
        %856 = vmatprep.subr.mxu0 0.0
        %857 = vmatpush1.xpose.msra.mxu0 0.0
        %858 = vmatprep.subr.mxu0 0.0
        %859 = vmatpush1.xpose.msra.mxu0 0.0
        %860 = vmatprep.subr.mxu0 0.0
        %861 = vmatpush1.xpose.msra.mxu0 0.0
        %862 = vmatprep.subr.mxu0 0.0
        %863 = vmatpush1.xpose.msra.mxu0 0.0
        %864 = vmatprep.subr.mxu0 0.0
        %865 = vmatpush1.xpose.msra.mxu0 0.0
        %866 = vmatprep.subr.mxu0 0.0
        %867 = vmatpush1.xpose.msra.mxu0 0.0
        %868 = vmatprep.subr.mxu0 0.0
        %869 = vmatpush1.xpose.msra.mxu0 0.0
        %870 = vmatprep.subr.mxu0 0.0
        %871 = vmatpush1.xpose.msra.mxu0 0.0
        %872 = vmatprep.subr.mxu0 0.0
        %873 = vmatpush1.xpose.msra.mxu0 0.0
        %874 = vmatprep.subr.mxu0 0.0
        %875 = vmatpush1.xpose.msra.mxu0 0.0
        %876 = vmatprep.subr.mxu0 0.0
        %877 = vmatpush1.xpose.msra.mxu0 0.0
        %878 = vmatprep.subr.mxu0 0.0
        %879 = vmatpush1.xpose.msra.mxu0 0.0
        %880 = vmatprep.subr.mxu0 0.0
        %881 = vmatpush1.xpose.msra.mxu0 0.0
        %882 = vmatprep.subr.mxu0 0.0
        %883 = vmatpush1.xpose.msra.mxu0 0.0
        %884 = vmatprep.subr.mxu0 0.0
        %885 = vmatpush1.xpose.msra.mxu0 0.0
        %886 = vmatprep.mubr.f32.mxu0 0.0
        %887 = vmatmul.mubr.f32.gmra.mrb[0].mxu0 %v811
        %v888 = vpop.f32.mrb[0].mxu0
        %v889 = vadd.f32 %v807, %v888
        %v890 = vpop.f32.mrb[0].mxu0
        %891 = vmatprep.mubr.f32.mxu0 0.0
        %892 = vmatmul.mubr.f32.gmra.mrb[0].mxu0 %v814
        %v893 = vpop.f32.mrb[0].mxu0
        %v894 = vadd.f32 %v808, %v893
        %v895 = vpop.f32.mrb[0].mxu0
        %896 = vdwg.mxu0
        %v898 = vlaneseq
        %v899 = vshrl.u32 %v898, 7
        %v900 = vsub.s32 0, %v899
        %v901 = vrot.slane %v742, %v900
        %v903 = vadd.f32 %v889, %v901
        %v904 = vadd.f32 %v894, %v901
        %vm905 = vcmask 130048
        %906 = vst.msk [vmem:[%s704] sm:$0xff] %vm905, %v903
        %907 = vst.msk [vmem:[%s704 + $0x8] sm:$0xff] %vm905, %v904
        %v908 = vsel %vm905, %v903, -inf
        %909 = vmax.xlane.f32.xlu0 %v908
        %v910 = vpop.xlane.xlu0 %909
        %v911 = vsel %vm905, %v904, -inf
        %912 = vmax.xlane.f32.xlu0 %v911
        %v913 = vpop.xlane.xlu0 %912
        %v914 = vsub.f32 %v903, %v910
        %v915 = vsub.f32 %v904, %v913
        %v916 = vmul.f32 %v914, 1.442695
        %v917 = vpow.pop %v916
        %v918 = vmul.f32 %v915, 1.442695
        %v919 = vpow.pop %v918
        %v920 = vsel %vm905, %v917, 0.0
        %921 = vadd.xlane.f32.xlu0 %v920
        %v922 = vpop.xlane.xlu0 %921
        %v923 = vsel %vm905, %v919, 0.0
        %924 = vadd.xlane.f32.xlu0 %v923
        %v925 = vpop.xlane.xlu0 %924
        %v926 = vrcp.pop %v922
        %v927 = vrcp.pop %v925
        %v928 = vmul.f32 %v917, %v926
        %v929 = vmul.f32 %v919, %v927
        %v930 = vmul.f32 %v928, 0.25
        %v931 = vmul.f32 %v929, 0.25
        %v932 = vld [vmem:[%s611] sm:$0xff]
        %v933 = vld [vmem:[%s611 + $0x10] sm:$0xff]
        %v935 = vsel %vm905, %v928, 0
        %v938 = vsel %vm905, %v929, 0
        %940 = vmatprep.subr.mxu0 0.0
        %941 = vmatpush1.msra.mxu0 %v932
        %942 = vmatprep.subr.mxu0 0.0
        %943 = vmatpush1.msra.mxu0 %v933
        %944 = vmatprep.subr.mxu0 0.0
        %945 = vmatpush1.msra.mxu0 0.0
        %946 = vmatprep.subr.mxu0 0.0
        %947 = vmatpush1.msra.mxu0 0.0
        %948 = vmatprep.subr.mxu0 0.0
        %949 = vmatpush1.msra.mxu0 0.0
        %950 = vmatprep.subr.mxu0 0.0
        %951 = vmatpush1.msra.mxu0 0.0
        %952 = vmatprep.subr.mxu0 0.0
        %953 = vmatpush1.msra.mxu0 0.0
        %954 = vmatprep.subr.mxu0 0.0
        %955 = vmatpush1.msra.mxu0 0.0
        %956 = vmatprep.subr.mxu0 0.0
        %957 = vmatpush1.msra.mxu0 0.0
        %958 = vmatprep.subr.mxu0 0.0
        %959 = vmatpush1.msra.mxu0 0.0
        %960 = vmatprep.subr.mxu0 0.0
        %961 = vmatpush1.msra.mxu0 0.0
        %962 = vmatprep.subr.mxu0 0.0
        %963 = vmatpush1.msra.mxu0 0.0
        %964 = vmatprep.subr.mxu0 0.0
        %965 = vmatpush1.msra.mxu0 0.0
        %966 = vmatprep.subr.mxu0 0.0
        %967 = vmatpush1.msra.mxu0 0.0
        %968 = vmatprep.subr.mxu0 0.0
        %969 = vmatpush1.msra.mxu0 0.0
        %970 = vmatprep.subr.mxu0 0.0
        %971 = vmatpush1.msra.mxu0 0.0
        %972 = vmatprep.subr.mxu0 0.0
        %973 = vmatpush1.msra.mxu0 0.0
        %974 = vmatprep.subr.mxu0 0.0
        %975 = vmatpush1.msra.mxu0 0.0
        %976 = vmatprep.subr.mxu0 0.0
        %977 = vmatpush1.msra.mxu0 0.0
        %978 = vmatprep.subr.mxu0 0.0
        %979 = vmatpush1.msra.mxu0 0.0
        %980 = vmatprep.subr.mxu0 0.0
        %981 = vmatpush1.msra.mxu0 0.0
        %982 = vmatprep.subr.mxu0 0.0
        %983 = vmatpush1.msra.mxu0 0.0
        %984 = vmatprep.subr.mxu0 0.0
        %985 = vmatpush1.msra.mxu0 0.0
        %986 = vmatprep.subr.mxu0 0.0
        %987 = vmatpush1.msra.mxu0 0.0
        %988 = vmatprep.subr.mxu0 0.0
        %989 = vmatpush1.msra.mxu0 0.0
        %990 = vmatprep.subr.mxu0 0.0
        %991 = vmatpush1.msra.mxu0 0.0
        %992 = vmatprep.subr.mxu0 0.0
        %993 = vmatpush1.msra.mxu0 0.0
        %994 = vmatprep.subr.mxu0 0.0
        %995 = vmatpush1.msra.mxu0 0.0
        %996 = vmatprep.subr.mxu0 0.0
        %997 = vmatpush1.msra.mxu0 0.0
        %998 = vmatprep.subr.mxu0 0.0
        %999 = vmatpush1.msra.mxu0 0.0
        %1000 = vmatprep.subr.mxu0 0.0
        %1001 = vmatpush1.msra.mxu0 0.0
        %1002 = vmatprep.subr.mxu0 0.0
        %1003 = vmatpush1.msra.mxu0 0.0
        %1004 = vmatprep.mubr.f32.mxu0 0.0
        %1005 = vmatmul.mubr.f32.gmra.mrb[0].mxu0 %v935
        %v1006 = vpop.f32.mrb[0].mxu0
        %v1007 = vadd.f32 0.0, %v1006
        %v1008 = vpop.f32.mrb[0].mxu0
        %1009 = vmatprep.mubr.f32.mxu0 0.0
        %1010 = vmatmul.mubr.f32.gmra.mrb[0].mxu0 %v938
        %v1011 = vpop.f32.mrb[0].mxu0
        %v1012 = vadd.f32 0.0, %v1011
        %v1013 = vpop.f32.mrb[0].mxu0
        %1014 = vdwg.mxu0
        %v1015 = vld [vmem:[%s593] sm:$0xff]
        %v1016 = vld [vmem:[%s593 + $0x10] sm:$0xff]
        %v1017 = vsub.f32 0.0, %v1015
        %v1018 = vsub.f32 0.0, %v1016
        %1021 = vrot.lane.b32.xlu0 %v1017, 32
        %v1022 = vpop.permute.xlu0 %1021
        %1023 = vrot.lane.b32.xlu0 %v1018, 32
        %v1024 = vpop.permute.xlu0 %1023
        %1029 = vrot.lane.b32.xlu0 %v1015, 96
        %v1030 = vpop.permute.xlu0 %1029
        %1031 = vrot.lane.b32.xlu0 %v1016, 96
        %v1032 = vpop.permute.xlu0 %1031
        %v1035 = vsel %vm770, %v1022, %v1030
        %v1036 = vsel %vm770, %v1024, %v1032
        %1039 = vrot.lane.b32.xlu0 %v734, 64
        %v1040 = vpop.permute.xlu0 %1039
        %1041 = vrot.lane.b32.xlu0 %v735, 64
        %v1042 = vpop.permute.xlu0 %1041
        %v1045 = vmul.f32 %v1015, %v1040
        %v1046 = vmul.f32 %v1016, %v1042
        %v1047 = vmul.f32 %v1035, %v736
        %v1048 = vmul.f32 %v1036, %v737
        %1051 = vrot.lane.b32.xlu0 %v1047, 64
        %v1052 = vpop.permute.xlu0 %1051
        %1053 = vrot.lane.b32.xlu0 %v1048, 64
        %v1054 = vpop.permute.xlu0 %1053
        %v1057 = vadd.f32 %v1045, %v1052
        %v1058 = vadd.f32 %v1046, %v1054
        %v1059 = vld [vmem:[%s602] sm:$0xff]
        %v1060 = vld [vmem:[%s602 + $0x10] sm:$0xff]
        %v1061 = vsub.f32 0.0, %v1059
        %v1062 = vsub.f32 0.0, %v1060
        %1065 = vrot.lane.b32.xlu0 %v1061, 32
        %v1066 = vpop.permute.xlu0 %1065
        %1067 = vrot.lane.b32.xlu0 %v1062, 32
        %v1068 = vpop.permute.xlu0 %1067
        %1073 = vrot.lane.b32.xlu0 %v1059, 96
        %v1074 = vpop.permute.xlu0 %1073
        %1075 = vrot.lane.b32.xlu0 %v1060, 96
        %v1076 = vpop.permute.xlu0 %1075
        %v1079 = vsel %vm770, %v1066, %v1074
        %v1080 = vsel %vm770, %v1068, %v1076
        %1083 = vrot.lane.b32.xlu0 %v738, 64
        %v1084 = vpop.permute.xlu0 %1083
        %1085 = vrot.lane.b32.xlu0 %v739, 64
        %v1086 = vpop.permute.xlu0 %1085
        %v1089 = vmul.f32 %v1059, %v1084
        %v1090 = vmul.f32 %v1060, %v1086
        %v1091 = vmul.f32 %v1079, %v740
        %v1092 = vmul.f32 %v1080, %v741
        %1095 = vrot.lane.b32.xlu0 %v1091, 64
        %v1096 = vpop.permute.xlu0 %1095
        %1097 = vrot.lane.b32.xlu0 %v1092, 64
        %v1098 = vpop.permute.xlu0 %1097
        %v1101 = vadd.f32 %v1089, %v1096
        %v1102 = vadd.f32 %v1090, %v1098
        %s1103 = scalar_lea.vmem %s636, 16 [#allocation14]
        %v1104 = vld [vmem:[%s1103] sm:$0xff]
        %v1105 = vld [vmem:[%s1103 + $0x8] sm:$0xff]
        %1108 = vrot.lane.b32.xlu0 %v1057, 64
        %v1109 = vpop.permute.xlu0 %1108
        %1110 = vrot.lane.b32.xlu0 %v1058, 64
        %v1111 = vpop.permute.xlu0 %1110
        %1114 = vrot.lane.b32.xlu0 %v1101, 64
        %v1115 = vpop.permute.xlu0 %1114
        %1116 = vrot.lane.b32.xlu0 %v1102, 64
        %v1117 = vpop.permute.xlu0 %1116
        %v1118 = vsel %vm809, %v1109, 0
        %v1120 = vsel %vm809, %v1111, 0
        %v1122 = vsel %vm809, %v1115, 0
        %v1124 = vsel %vm809, %v1117, 0
        %1126 = vmatprep.subr.mxu0 0.0
        %1127 = vmatpush1.xpose.msra.mxu0 %v1122
        %1128 = vmatprep.subr.mxu0 0.0
        %1129 = vmatpush1.xpose.msra.mxu0 %v1124
        %1130 = vmatprep.subr.mxu0 0.0
        %1131 = vmatpush1.xpose.msra.mxu0 0.0
        %1132 = vmatprep.subr.mxu0 0.0
        %1133 = vmatpush1.xpose.msra.mxu0 0.0
        %1134 = vmatprep.subr.mxu0 0.0
        %1135 = vmatpush1.xpose.msra.mxu0 0.0
        %1136 = vmatprep.subr.mxu0 0.0
        %1137 = vmatpush1.xpose.msra.mxu0 0.0
        %1138 = vmatprep.subr.mxu0 0.0
        %1139 = vmatpush1.xpose.msra.mxu0 0.0
        %1140 = vmatprep.subr.mxu0 0.0
        %1141 = vmatpush1.xpose.msra.mxu0 0.0
        %1142 = vmatprep.subr.mxu0 0.0
        %1143 = vmatpush1.xpose.msra.mxu0 0.0
        %1144 = vmatprep.subr.mxu0 0.0
        %1145 = vmatpush1.xpose.msra.mxu0 0.0
        %1146 = vmatprep.subr.mxu0 0.0
        %1147 = vmatpush1.xpose.msra.mxu0 0.0
        %1148 = vmatprep.subr.mxu0 0.0
        %1149 = vmatpush1.xpose.msra.mxu0 0.0
        %1150 = vmatprep.subr.mxu0 0.0
        %1151 = vmatpush1.xpose.msra.mxu0 0.0
        %1152 = vmatprep.subr.mxu0 0.0
        %1153 = vmatpush1.xpose.msra.mxu0 0.0
        %1154 = vmatprep.subr.mxu0 0.0
        %1155 = vmatpush1.xpose.msra.mxu0 0.0
        %1156 = vmatprep.subr.mxu0 0.0
        %1157 = vmatpush1.xpose.msra.mxu0 0.0
        %1158 = vmatprep.subr.mxu0 0.0
        %1159 = vmatpush1.xpose.msra.mxu0 0.0
        %1160 = vmatprep.subr.mxu0 0.0
        %1161 = vmatpush1.xpose.msra.mxu0 0.0
        %1162 = vmatprep.subr.mxu0 0.0
        %1163 = vmatpush1.xpose.msra.mxu0 0.0
        %1164 = vmatprep.subr.mxu0 0.0
        %1165 = vmatpush1.xpose.msra.mxu0 0.0
        %1166 = vmatprep.subr.mxu0 0.0
        %1167 = vmatpush1.xpose.msra.mxu0 0.0
        %1168 = vmatprep.subr.mxu0 0.0
        %1169 = vmatpush1.xpose.msra.mxu0 0.0
        %1170 = vmatprep.subr.mxu0 0.0
        %1171 = vmatpush1.xpose.msra.mxu0 0.0
        %1172 = vmatprep.subr.mxu0 0.0
        %1173 = vmatpush1.xpose.msra.mxu0 0.0
        %1174 = vmatprep.subr.mxu0 0.0
        %1175 = vmatpush1.xpose.msra.mxu0 0.0
        %1176 = vmatprep.subr.mxu0 0.0
        %1177 = vmatpush1.xpose.msra.mxu0 0.0
        %1178 = vmatprep.subr.mxu0 0.0
        %1179 = vmatpush1.xpose.msra.mxu0 0.0
        %1180 = vmatprep.subr.mxu0 0.0
        %1181 = vmatpush1.xpose.msra.mxu0 0.0
        %1182 = vmatprep.subr.mxu0 0.0
        %1183 = vmatpush1.xpose.msra.mxu0 0.0
        %1184 = vmatprep.subr.mxu0 0.0
        %1185 = vmatpush1.xpose.msra.mxu0 0.0
        %1186 = vmatprep.subr.mxu0 0.0
        %1187 = vmatpush1.xpose.msra.mxu0 0.0
        %1188 = vmatprep.subr.mxu0 0.0
        %1189 = vmatpush1.xpose.msra.mxu0 0.0
        %1190 = vmatprep.mubr.f32.mxu0 0.0
        %1191 = vmatmul.mubr.f32.gmra.mrb[0].mxu0 %v1118
        %v1192 = vpop.f32.mrb[0].mxu0
        %v1193 = vadd.f32 %v1104, %v1192
        %v1194 = vpop.f32.mrb[0].mxu0
        %1195 = vmatprep.mubr.f32.mxu0 0.0
        %1196 = vmatmul.mubr.f32.gmra.mrb[0].mxu0 %v1120
        %v1197 = vpop.f32.mrb[0].mxu0
        %v1198 = vadd.f32 %v1105, %v1197
        %v1199 = vpop.f32.mrb[0].mxu0
        %1200 = vdwg.mxu0
        %v1201 = vadd.f32 %v1193, %v901
        %v1202 = vadd.f32 %v1198, %v901
        %s1203 = scalar_lea.vmem %s704, 16 [#allocation18]
        %1204 = vst.msk [vmem:[%s1203] sm:$0xff] %vm905, %v1201
        %1205 = vst.msk [vmem:[%s1203 + $0x8] sm:$0xff] %vm905, %v1202
        %v1206 = vsel %vm905, %v1201, -inf
        %1207 = vmax.xlane.f32.xlu0 %v1206
        %v1208 = vpop.xlane.xlu0 %1207
        %v1209 = vsel %vm905, %v1202, -inf
        %1210 = vmax.xlane.f32.xlu0 %v1209
        %v1211 = vpop.xlane.xlu0 %1210
        %v1212 = vsub.f32 %v1201, %v1208
        %v1213 = vsub.f32 %v1202, %v1211
        %v1214 = vmul.f32 %v1212, 1.442695
        %v1215 = vpow.pop %v1214
        %v1216 = vmul.f32 %v1213, 1.442695
        %v1217 = vpow.pop %v1216
        %v1218 = vsel %vm905, %v1215, 0.0
        %1219 = vadd.xlane.f32.xlu0 %v1218
        %v1220 = vpop.xlane.xlu0 %1219
        %v1221 = vsel %vm905, %v1217, 0.0
        %1222 = vadd.xlane.f32.xlu0 %v1221
        %v1223 = vpop.xlane.xlu0 %1222
        %v1224 = vrcp.pop %v1220
        %v1225 = vrcp.pop %v1223
        %v1226 = vmul.f32 %v1215, %v1224
        %v1227 = vmul.f32 %v1217, %v1225
        %v1228 = vmul.f32 %v1226, 0.25
        %v1229 = vmul.f32 %v1227, 0.25
        %v1230 = vadd.f32 %v930, %v1228
        %v1231 = vadd.f32 %v931, %v1229
        %v1232 = vld [vmem:[%s611] sm:$0xff]
        %v1233 = vld [vmem:[%s611 + $0x10] sm:$0xff]
        %1236 = vrot.lane.b32.xlu0 %v1232, 64
        %v1237 = vpop.permute.xlu0 %1236
        %1238 = vrot.lane.b32.xlu0 %v1233, 64
        %v1239 = vpop.permute.xlu0 %1238
        %v1243 = vsel %vm905, %v1226, 0
        %v1246 = vsel %vm905, %v1227, 0
        %1248 = vmatprep.subr.mxu0 0.0
        %1249 = vmatpush1.msra.mxu0 %v1237
        %1250 = vmatprep.subr.mxu0 0.0
        %1251 = vmatpush1.msra.mxu0 %v1239
        %1252 = vmatprep.subr.mxu0 0.0
        %1253 = vmatpush1.msra.mxu0 0.0
        %1254 = vmatprep.subr.mxu0 0.0
        %1255 = vmatpush1.msra.mxu0 0.0
        %1256 = vmatprep.subr.mxu0 0.0
        %1257 = vmatpush1.msra.mxu0 0.0
        %1258 = vmatprep.subr.mxu0 0.0
        %1259 = vmatpush1.msra.mxu0 0.0
        %1260 = vmatprep.subr.mxu0 0.0
        %1261 = vmatpush1.msra.mxu0 0.0
        %1262 = vmatprep.subr.mxu0 0.0
        %1263 = vmatpush1.msra.mxu0 0.0
        %1264 = vmatprep.subr.mxu0 0.0
        %1265 = vmatpush1.msra.mxu0 0.0
        %1266 = vmatprep.subr.mxu0 0.0
        %1267 = vmatpush1.msra.mxu0 0.0
        %1268 = vmatprep.subr.mxu0 0.0
        %1269 = vmatpush1.msra.mxu0 0.0
        %1270 = vmatprep.subr.mxu0 0.0
        %1271 = vmatpush1.msra.mxu0 0.0
        %1272 = vmatprep.subr.mxu0 0.0
        %1273 = vmatpush1.msra.mxu0 0.0
        %1274 = vmatprep.subr.mxu0 0.0
        %1275 = vmatpush1.msra.mxu0 0.0
        %1276 = vmatprep.subr.mxu0 0.0
        %1277 = vmatpush1.msra.mxu0 0.0
        %1278 = vmatprep.subr.mxu0 0.0
        %1279 = vmatpush1.msra.mxu0 0.0
        %1280 = vmatprep.subr.mxu0 0.0
        %1281 = vmatpush1.msra.mxu0 0.0
        %1282 = vmatprep.subr.mxu0 0.0
        %1283 = vmatpush1.msra.mxu0 0.0
        %1284 = vmatprep.subr.mxu0 0.0
        %1285 = vmatpush1.msra.mxu0 0.0
        %1286 = vmatprep.subr.mxu0 0.0
        %1287 = vmatpush1.msra.mxu0 0.0
        %1288 = vmatprep.subr.mxu0 0.0
        %1289 = vmatpush1.msra.mxu0 0.0
        %1290 = vmatprep.subr.mxu0 0.0
        %1291 = vmatpush1.msra.mxu0 0.0
        %1292 = vmatprep.subr.mxu0 0.0
        %1293 = vmatpush1.msra.mxu0 0.0
        %1294 = vmatprep.subr.mxu0 0.0
        %1295 = vmatpush1.msra.mxu0 0.0
        %1296 = vmatprep.subr.mxu0 0.0
        %1297 = vmatpush1.msra.mxu0 0.0
        %1298 = vmatprep.subr.mxu0 0.0
        %1299 = vmatpush1.msra.mxu0 0.0
        %1300 = vmatprep.subr.mxu0 0.0
        %1301 = vmatpush1.msra.mxu0 0.0
        %1302 = vmatprep.subr.mxu0 0.0
        %1303 = vmatpush1.msra.mxu0 0.0
        %1304 = vmatprep.subr.mxu0 0.0
        %1305 = vmatpush1.msra.mxu0 0.0
        %1306 = vmatprep.subr.mxu0 0.0
        %1307 = vmatpush1.msra.mxu0 0.0
        %1308 = vmatprep.subr.mxu0 0.0
        %1309 = vmatpush1.msra.mxu0 0.0
        %1310 = vmatprep.subr.mxu0 0.0
        %1311 = vmatpush1.msra.mxu0 0.0
        %1312 = vmatprep.mubr.f32.mxu0 0.0
        %1313 = vmatmul.mubr.f32.gmra.mrb[0].mxu0 %v1243
        %v1314 = vpop.f32.mrb[0].mxu0
        %v1315 = vadd.f32 0.0, %v1314
        %v1316 = vpop.f32.mrb[0].mxu0
        %1317 = vmatprep.mubr.f32.mxu0 0.0
        %1318 = vmatmul.mubr.f32.gmra.mrb[0].mxu0 %v1246
        %v1319 = vpop.f32.mrb[0].mxu0
        %v1320 = vadd.f32 0.0, %v1319
        %v1321 = vpop.f32.mrb[0].mxu0
        %1322 = vdwg.mxu0
        %v1323 = vld [vmem:[%s593 + $0x8] sm:$0xff]
        %v1324 = vld [vmem:[%s593 + $0x18] sm:$0xff]
        %v1325 = vsub.f32 0.0, %v1323
        %v1326 = vsub.f32 0.0, %v1324
        %1329 = vrot.lane.b32.xlu0 %v1325, 96
        %v1330 = vpop.permute.xlu0 %1329
        %1331 = vrot.lane.b32.xlu0 %v1326, 96
        %v1332 = vpop.permute.xlu0 %1331
        %1337 = vrot.lane.b32.xlu0 %v1323, 32
        %v1338 = vpop.permute.xlu0 %1337
        %1339 = vrot.lane.b32.xlu0 %v1324, 32
        %v1340 = vpop.permute.xlu0 %1339
        %v1343 = vsel %vm770, %v1330, %v1338
        %v1344 = vsel %vm770, %v1332, %v1340
        %v1345 = vmul.f32 %v1323, %v734
        %v1346 = vmul.f32 %v1324, %v735
        %v1347 = vmul.f32 %v1343, %v736
        %v1348 = vmul.f32 %v1344, %v737
        %v1349 = vadd.f32 %v1345, %v1347
        %v1350 = vadd.f32 %v1346, %v1348
        %v1351 = vld [vmem:[%s602 + $0x8] sm:$0xff]
        %v1352 = vld [vmem:[%s602 + $0x18] sm:$0xff]
        %v1353 = vsub.f32 0.0, %v1351
        %v1354 = vsub.f32 0.0, %v1352
        %1357 = vrot.lane.b32.xlu0 %v1353, 96
        %v1358 = vpop.permute.xlu0 %1357
        %1359 = vrot.lane.b32.xlu0 %v1354, 96
        %v1360 = vpop.permute.xlu0 %1359
        %1365 = vrot.lane.b32.xlu0 %v1351, 32
        %v1366 = vpop.permute.xlu0 %1365
        %1367 = vrot.lane.b32.xlu0 %v1352, 32
        %v1368 = vpop.permute.xlu0 %1367
        %v1371 = vsel %vm770, %v1358, %v1366
        %v1372 = vsel %vm770, %v1360, %v1368
        %v1373 = vmul.f32 %v1351, %v738
        %v1374 = vmul.f32 %v1352, %v739
        %v1375 = vmul.f32 %v1371, %v740
        %v1376 = vmul.f32 %v1372, %v741
        %v1377 = vadd.f32 %v1373, %v1375
        %v1378 = vadd.f32 %v1374, %v1376
        %s1379 = scalar_lea.vmem %s636, 32 [#allocation14]
        %v1380 = vld [vmem:[%s1379] sm:$0xff]
        %v1381 = vld [vmem:[%s1379 + $0x8] sm:$0xff]
        %v1383 = vsel %vm809, %v1349, 0
        %v1386 = vsel %vm809, %v1350, 0
        %v1389 = vsel %vm809, %v1377, 0
        %v1392 = vsel %vm809, %v1378, 0
        %1394 = vmatprep.subr.mxu0 0.0
        %1395 = vmatpush1.xpose.msra.mxu0 %v1389
        %1396 = vmatprep.subr.mxu0 0.0
        %1397 = vmatpush1.xpose.msra.mxu0 %v1392
        %1398 = vmatprep.subr.mxu0 0.0
        %1399 = vmatpush1.xpose.msra.mxu0 0.0
        %1400 = vmatprep.subr.mxu0 0.0
        %1401 = vmatpush1.xpose.msra.mxu0 0.0
        %1402 = vmatprep.subr.mxu0 0.0
        %1403 = vmatpush1.xpose.msra.mxu0 0.0
        %1404 = vmatprep.subr.mxu0 0.0
        %1405 = vmatpush1.xpose.msra.mxu0 0.0
        %1406 = vmatprep.subr.mxu0 0.0
        %1407 = vmatpush1.xpose.msra.mxu0 0.0
        %1408 = vmatprep.subr.mxu0 0.0
        %1409 = vmatpush1.xpose.msra.mxu0 0.0
        %1410 = vmatprep.subr.mxu0 0.0
        %1411 = vmatpush1.xpose.msra.mxu0 0.0
        %1412 = vmatprep.subr.mxu0 0.0
        %1413 = vmatpush1.xpose.msra.mxu0 0.0
        %1414 = vmatprep.subr.mxu0 0.0
        %1415 = vmatpush1.xpose.msra.mxu0 0.0
        %1416 = vmatprep.subr.mxu0 0.0
        %1417 = vmatpush1.xpose.msra.mxu0 0.0
        %1418 = vmatprep.subr.mxu0 0.0
        %1419 = vmatpush1.xpose.msra.mxu0 0.0
        %1420 = vmatprep.subr.mxu0 0.0
        %1421 = vmatpush1.xpose.msra.mxu0 0.0
        %1422 = vmatprep.subr.mxu0 0.0
        %1423 = vmatpush1.xpose.msra.mxu0 0.0
        %1424 = vmatprep.subr.mxu0 0.0
        %1425 = vmatpush1.xpose.msra.mxu0 0.0
        %1426 = vmatprep.subr.mxu0 0.0
        %1427 = vmatpush1.xpose.msra.mxu0 0.0
        %1428 = vmatprep.subr.mxu0 0.0
        %1429 = vmatpush1.xpose.msra.mxu0 0.0
        %1430 = vmatprep.subr.mxu0 0.0
        %1431 = vmatpush1.xpose.msra.mxu0 0.0
        %1432 = vmatprep.subr.mxu0 0.0
        %1433 = vmatpush1.xpose.msra.mxu0 0.0
        %1434 = vmatprep.subr.mxu0 0.0
        %1435 = vmatpush1.xpose.msra.mxu0 0.0
        %1436 = vmatprep.subr.mxu0 0.0
        %1437 = vmatpush1.xpose.msra.mxu0 0.0
        %1438 = vmatprep.subr.mxu0 0.0
        %1439 = vmatpush1.xpose.msra.mxu0 0.0
        %1440 = vmatprep.subr.mxu0 0.0
        %1441 = vmatpush1.xpose.msra.mxu0 0.0
        %1442 = vmatprep.subr.mxu0 0.0
        %1443 = vmatpush1.xpose.msra.mxu0 0.0
        %1444 = vmatprep.subr.mxu0 0.0
        %1445 = vmatpush1.xpose.msra.mxu0 0.0
        %1446 = vmatprep.subr.mxu0 0.0
        %1447 = vmatpush1.xpose.msra.mxu0 0.0
        %1448 = vmatprep.subr.mxu0 0.0
        %1449 = vmatpush1.xpose.msra.mxu0 0.0
        %1450 = vmatprep.subr.mxu0 0.0
        %1451 = vmatpush1.xpose.msra.mxu0 0.0
        %1452 = vmatprep.subr.mxu0 0.0
        %1453 = vmatpush1.xpose.msra.mxu0 0.0
        %1454 = vmatprep.subr.mxu0 0.0
        %1455 = vmatpush1.xpose.msra.mxu0 0.0
        %1456 = vmatprep.subr.mxu0 0.0
        %1457 = vmatpush1.xpose.msra.mxu0 0.0
        %1458 = vmatprep.mubr.f32.mxu0 0.0
        %1459 = vmatmul.mubr.f32.gmra.mrb[0].mxu0 %v1383
        %v1460 = vpop.f32.mrb[0].mxu0
        %v1461 = vadd.f32 %v1380, %v1460
        %v1462 = vpop.f32.mrb[0].mxu0
        %1463 = vmatprep.mubr.f32.mxu0 0.0
        %1464 = vmatmul.mubr.f32.gmra.mrb[0].mxu0 %v1386
        %v1465 = vpop.f32.mrb[0].mxu0
        %v1466 = vadd.f32 %v1381, %v1465
        %v1467 = vpop.f32.mrb[0].mxu0
        %1468 = vdwg.mxu0
        %v1469 = vadd.f32 %v1461, %v901
        %v1470 = vadd.f32 %v1466, %v901
        %s1471 = scalar_lea.vmem %s704, 32 [#allocation18]
        %1472 = vst.msk [vmem:[%s1471] sm:$0xff] %vm905, %v1469
        %1473 = vst.msk [vmem:[%s1471 + $0x8] sm:$0xff] %vm905, %v1470
        %v1474 = vsel %vm905, %v1469, -inf
        %1475 = vmax.xlane.f32.xlu0 %v1474
        %v1476 = vpop.xlane.xlu0 %1475
        %v1477 = vsel %vm905, %v1470, -inf
        %1478 = vmax.xlane.f32.xlu0 %v1477
        %v1479 = vpop.xlane.xlu0 %1478
        %v1480 = vsub.f32 %v1469, %v1476
        %v1481 = vsub.f32 %v1470, %v1479
        %v1482 = vmul.f32 %v1480, 1.442695
        %v1483 = vpow.pop %v1482
        %v1484 = vmul.f32 %v1481, 1.442695
        %v1485 = vpow.pop %v1484
        %v1486 = vsel %vm905, %v1483, 0.0
        %1487 = vadd.xlane.f32.xlu0 %v1486
        %v1488 = vpop.xlane.xlu0 %1487
        %v1489 = vsel %vm905, %v1485, 0.0
        %1490 = vadd.xlane.f32.xlu0 %v1489
        %v1491 = vpop.xlane.xlu0 %1490
        %v1492 = vrcp.pop %v1488
        %v1493 = vrcp.pop %v1491
        %v1494 = vmul.f32 %v1483, %v1492
        %v1495 = vmul.f32 %v1485, %v1493
        %v1496 = vmul.f32 %v1494, 0.25
        %v1497 = vmul.f32 %v1495, 0.25
        %v1498 = vadd.f32 %v1230, %v1496
        %v1499 = vadd.f32 %v1231, %v1497
        %v1500 = vld [vmem:[%s611 + $0x8] sm:$0xff]
        %v1501 = vld [vmem:[%s611 + $0x18] sm:$0xff]
        %v1503 = vsel %vm905, %v1494, 0
        %v1506 = vsel %vm905, %v1495, 0
        %1508 = vmatprep.subr.mxu0 0.0
        %1509 = vmatpush1.msra.mxu0 %v1500
        %1510 = vmatprep.subr.mxu0 0.0
        %1511 = vmatpush1.msra.mxu0 %v1501
        %1512 = vmatprep.subr.mxu0 0.0
        %1513 = vmatpush1.msra.mxu0 0.0
        %1514 = vmatprep.subr.mxu0 0.0
        %1515 = vmatpush1.msra.mxu0 0.0
        %1516 = vmatprep.subr.mxu0 0.0
        %1517 = vmatpush1.msra.mxu0 0.0
        %1518 = vmatprep.subr.mxu0 0.0
        %1519 = vmatpush1.msra.mxu0 0.0
        %1520 = vmatprep.subr.mxu0 0.0
        %1521 = vmatpush1.msra.mxu0 0.0
        %1522 = vmatprep.subr.mxu0 0.0
        %1523 = vmatpush1.msra.mxu0 0.0
        %1524 = vmatprep.subr.mxu0 0.0
        %1525 = vmatpush1.msra.mxu0 0.0
        %1526 = vmatprep.subr.mxu0 0.0
        %1527 = vmatpush1.msra.mxu0 0.0
        %1528 = vmatprep.subr.mxu0 0.0
        %1529 = vmatpush1.msra.mxu0 0.0
        %1530 = vmatprep.subr.mxu0 0.0
        %1531 = vmatpush1.msra.mxu0 0.0
        %1532 = vmatprep.subr.mxu0 0.0
        %1533 = vmatpush1.msra.mxu0 0.0
        %1534 = vmatprep.subr.mxu0 0.0
        %1535 = vmatpush1.msra.mxu0 0.0
        %1536 = vmatprep.subr.mxu0 0.0
        %1537 = vmatpush1.msra.mxu0 0.0
        %1538 = vmatprep.subr.mxu0 0.0
        %1539 = vmatpush1.msra.mxu0 0.0
        %1540 = vmatprep.subr.mxu0 0.0
        %1541 = vmatpush1.msra.mxu0 0.0
        %1542 = vmatprep.subr.mxu0 0.0
        %1543 = vmatpush1.msra.mxu0 0.0
        %1544 = vmatprep.subr.mxu0 0.0
        %1545 = vmatpush1.msra.mxu0 0.0
        %1546 = vmatprep.subr.mxu0 0.0
        %1547 = vmatpush1.msra.mxu0 0.0
        %1548 = vmatprep.subr.mxu0 0.0
        %1549 = vmatpush1.msra.mxu0 0.0
        %1550 = vmatprep.subr.mxu0 0.0
        %1551 = vmatpush1.msra.mxu0 0.0
        %1552 = vmatprep.subr.mxu0 0.0
        %1553 = vmatpush1.msra.mxu0 0.0
        %1554 = vmatprep.subr.mxu0 0.0
        %1555 = vmatpush1.msra.mxu0 0.0
        %1556 = vmatprep.subr.mxu0 0.0
        %1557 = vmatpush1.msra.mxu0 0.0
        %1558 = vmatprep.subr.mxu0 0.0
        %1559 = vmatpush1.msra.mxu0 0.0
        %1560 = vmatprep.subr.mxu0 0.0
        %1561 = vmatpush1.msra.mxu0 0.0
        %1562 = vmatprep.subr.mxu0 0.0
        %1563 = vmatpush1.msra.mxu0 0.0
        %1564 = vmatprep.subr.mxu0 0.0
        %1565 = vmatpush1.msra.mxu0 0.0
        %1566 = vmatprep.subr.mxu0 0.0
        %1567 = vmatpush1.msra.mxu0 0.0
        %1568 = vmatprep.subr.mxu0 0.0
        %1569 = vmatpush1.msra.mxu0 0.0
        %1570 = vmatprep.subr.mxu0 0.0
        %1571 = vmatpush1.msra.mxu0 0.0
        %1572 = vmatprep.mubr.f32.mxu0 0.0
        %1573 = vmatmul.mubr.f32.gmra.mrb[0].mxu0 %v1503
        %v1574 = vpop.f32.mrb[0].mxu0
        %v1575 = vadd.f32 0.0, %v1574
        %v1576 = vpop.f32.mrb[0].mxu0
        %1577 = vmatprep.mubr.f32.mxu0 0.0
        %1578 = vmatmul.mubr.f32.gmra.mrb[0].mxu0 %v1506
        %v1579 = vpop.f32.mrb[0].mxu0
        %v1580 = vadd.f32 0.0, %v1579
        %v1581 = vpop.f32.mrb[0].mxu0
        %1582 = vdwg.mxu0
        %v1583 = vld [vmem:[%s593 + $0x8] sm:$0xff]
        %v1584 = vld [vmem:[%s593 + $0x18] sm:$0xff]
        %v1585 = vsub.f32 0.0, %v1583
        %v1586 = vsub.f32 0.0, %v1584
        %1589 = vrot.lane.b32.xlu0 %v1585, 32
        %v1590 = vpop.permute.xlu0 %1589
        %1591 = vrot.lane.b32.xlu0 %v1586, 32
        %v1592 = vpop.permute.xlu0 %1591
        %1597 = vrot.lane.b32.xlu0 %v1583, 96
        %v1598 = vpop.permute.xlu0 %1597
        %1599 = vrot.lane.b32.xlu0 %v1584, 96
        %v1600 = vpop.permute.xlu0 %1599
        %v1603 = vsel %vm770, %v1590, %v1598
        %v1604 = vsel %vm770, %v1592, %v1600
        %v1605 = vmul.f32 %v1583, %v1040
        %v1606 = vmul.f32 %v1584, %v1042
        %v1607 = vmul.f32 %v1603, %v736
        %v1608 = vmul.f32 %v1604, %v737
        %1611 = vrot.lane.b32.xlu0 %v1607, 64
        %v1612 = vpop.permute.xlu0 %1611
        %1613 = vrot.lane.b32.xlu0 %v1608, 64
        %v1614 = vpop.permute.xlu0 %1613
        %v1617 = vadd.f32 %v1605, %v1612
        %v1618 = vadd.f32 %v1606, %v1614
        %v1619 = vld [vmem:[%s602 + $0x8] sm:$0xff]
        %v1620 = vld [vmem:[%s602 + $0x18] sm:$0xff]
        %v1621 = vsub.f32 0.0, %v1619
        %v1622 = vsub.f32 0.0, %v1620
        %1625 = vrot.lane.b32.xlu0 %v1621, 32
        %v1626 = vpop.permute.xlu0 %1625
        %1627 = vrot.lane.b32.xlu0 %v1622, 32
        %v1628 = vpop.permute.xlu0 %1627
        %1633 = vrot.lane.b32.xlu0 %v1619, 96
        %v1634 = vpop.permute.xlu0 %1633
        %1635 = vrot.lane.b32.xlu0 %v1620, 96
        %v1636 = vpop.permute.xlu0 %1635
        %v1639 = vsel %vm770, %v1626, %v1634
        %v1640 = vsel %vm770, %v1628, %v1636
        %v1641 = vmul.f32 %v1619, %v1084
        %v1642 = vmul.f32 %v1620, %v1086
        %v1643 = vmul.f32 %v1639, %v740
        %v1644 = vmul.f32 %v1640, %v741
        %1647 = vrot.lane.b32.xlu0 %v1643, 64
        %v1648 = vpop.permute.xlu0 %1647
        %1649 = vrot.lane.b32.xlu0 %v1644, 64
        %v1650 = vpop.permute.xlu0 %1649
        %v1653 = vadd.f32 %v1641, %v1648
        %v1654 = vadd.f32 %v1642, %v1650
        %s1655 = scalar_lea.vmem %s636, 48 [#allocation14]
        %v1656 = vld [vmem:[%s1655] sm:$0xff]
        %v1657 = vld [vmem:[%s1655 + $0x8] sm:$0xff]
        %1660 = vrot.lane.b32.xlu0 %v1617, 64
        %v1661 = vpop.permute.xlu0 %1660
        %1662 = vrot.lane.b32.xlu0 %v1618, 64
        %v1663 = vpop.permute.xlu0 %1662
        %1666 = vrot.lane.b32.xlu0 %v1653, 64
        %v1667 = vpop.permute.xlu0 %1666
        %1668 = vrot.lane.b32.xlu0 %v1654, 64
        %v1669 = vpop.permute.xlu0 %1668
        %v1670 = vsel %vm809, %v1661, 0
        %v1672 = vsel %vm809, %v1663, 0
        %v1674 = vsel %vm809, %v1667, 0
        %v1676 = vsel %vm809, %v1669, 0
        %1678 = vmatprep.subr.mxu0 0.0
        %1679 = vmatpush1.xpose.msra.mxu0 %v1674
        %1680 = vmatprep.subr.mxu0 0.0
        %1681 = vmatpush1.xpose.msra.mxu0 %v1676
        %1682 = vmatprep.subr.mxu0 0.0
        %1683 = vmatpush1.xpose.msra.mxu0 0.0
        %1684 = vmatprep.subr.mxu0 0.0
        %1685 = vmatpush1.xpose.msra.mxu0 0.0
        %1686 = vmatprep.subr.mxu0 0.0
        %1687 = vmatpush1.xpose.msra.mxu0 0.0
        %1688 = vmatprep.subr.mxu0 0.0
        %1689 = vmatpush1.xpose.msra.mxu0 0.0
        %1690 = vmatprep.subr.mxu0 0.0
        %1691 = vmatpush1.xpose.msra.mxu0 0.0
        %1692 = vmatprep.subr.mxu0 0.0
        %1693 = vmatpush1.xpose.msra.mxu0 0.0
        %1694 = vmatprep.subr.mxu0 0.0
        %1695 = vmatpush1.xpose.msra.mxu0 0.0
        %1696 = vmatprep.subr.mxu0 0.0
        %1697 = vmatpush1.xpose.msra.mxu0 0.0
        %1698 = vmatprep.subr.mxu0 0.0
        %1699 = vmatpush1.xpose.msra.mxu0 0.0
        %1700 = vmatprep.subr.mxu0 0.0
        %1701 = vmatpush1.xpose.msra.mxu0 0.0
        %1702 = vmatprep.subr.mxu0 0.0
        %1703 = vmatpush1.xpose.msra.mxu0 0.0
        %1704 = vmatprep.subr.mxu0 0.0
        %1705 = vmatpush1.xpose.msra.mxu0 0.0
        %1706 = vmatprep.subr.mxu0 0.0
        %1707 = vmatpush1.xpose.msra.mxu0 0.0
        %1708 = vmatprep.subr.mxu0 0.0
        %1709 = vmatpush1.xpose.msra.mxu0 0.0
        %1710 = vmatprep.subr.mxu0 0.0
        %1711 = vmatpush1.xpose.msra.mxu0 0.0
        %1712 = vmatprep.subr.mxu0 0.0
        %1713 = vmatpush1.xpose.msra.mxu0 0.0
        %1714 = vmatprep.subr.mxu0 0.0
        %1715 = vmatpush1.xpose.msra.mxu0 0.0
        %1716 = vmatprep.subr.mxu0 0.0
        %1717 = vmatpush1.xpose.msra.mxu0 0.0
        %1718 = vmatprep.subr.mxu0 0.0
        %1719 = vmatpush1.xpose.msra.mxu0 0.0
        %1720 = vmatprep.subr.mxu0 0.0
        %1721 = vmatpush1.xpose.msra.mxu0 0.0
        %1722 = vmatprep.subr.mxu0 0.0
        %1723 = vmatpush1.xpose.msra.mxu0 0.0
        %1724 = vmatprep.subr.mxu0 0.0
        %1725 = vmatpush1.xpose.msra.mxu0 0.0
        %1726 = vmatprep.subr.mxu0 0.0
        %1727 = vmatpush1.xpose.msra.mxu0 0.0
        %1728 = vmatprep.subr.mxu0 0.0
        %1729 = vmatpush1.xpose.msra.mxu0 0.0
        %1730 = vmatprep.subr.mxu0 0.0
        %1731 = vmatpush1.xpose.msra.mxu0 0.0
        %1732 = vmatprep.subr.mxu0 0.0
        %1733 = vmatpush1.xpose.msra.mxu0 0.0
        %1734 = vmatprep.subr.mxu0 0.0
        %1735 = vmatpush1.xpose.msra.mxu0 0.0
        %1736 = vmatprep.subr.mxu0 0.0
        %1737 = vmatpush1.xpose.msra.mxu0 0.0
        %1738 = vmatprep.subr.mxu0 0.0
        %1739 = vmatpush1.xpose.msra.mxu0 0.0
        %1740 = vmatprep.subr.mxu0 0.0
        %1741 = vmatpush1.xpose.msra.mxu0 0.0
        %1742 = vmatprep.mubr.f32.mxu0 0.0
        %1743 = vmatmul.mubr.f32.gmra.mrb[0].mxu0 %v1670
        %v1744 = vpop.f32.mrb[0].mxu0
        %v1745 = vadd.f32 %v1656, %v1744
        %v1746 = vpop.f32.mrb[0].mxu0
        %1747 = vmatprep.mubr.f32.mxu0 0.0
        %1748 = vmatmul.mubr.f32.gmra.mrb[0].mxu0 %v1672
        %v1749 = vpop.f32.mrb[0].mxu0
        %v1750 = vadd.f32 %v1657, %v1749
        %v1751 = vpop.f32.mrb[0].mxu0
        %1752 = vdwg.mxu0
        %v1753 = vadd.f32 %v1745, %v901
        %v1754 = vadd.f32 %v1750, %v901
        %s1755 = scalar_lea.vmem %s704, 48 [#allocation18]
        %1756 = vst.msk [vmem:[%s1755] sm:$0xff] %vm905, %v1753
        %1757 = vst.msk [vmem:[%s1755 + $0x8] sm:$0xff] %vm905, %v1754
        %v1758 = vsel %vm905, %v1753, -inf
        %1759 = vmax.xlane.f32.xlu0 %v1758
        %v1760 = vpop.xlane.xlu0 %1759
        %v1761 = vsel %vm905, %v1754, -inf
        %1762 = vmax.xlane.f32.xlu0 %v1761
        %v1763 = vpop.xlane.xlu0 %1762
        %v1764 = vsub.f32 %v1753, %v1760
        %v1765 = vsub.f32 %v1754, %v1763
        %v1766 = vmul.f32 %v1764, 1.442695
        %v1767 = vpow.pop %v1766
        %v1768 = vmul.f32 %v1765, 1.442695
        %v1769 = vpow.pop %v1768
        %v1770 = vsel %vm905, %v1767, 0.0
        %1771 = vadd.xlane.f32.xlu0 %v1770
        %v1772 = vpop.xlane.xlu0 %1771
        %v1773 = vsel %vm905, %v1769, 0.0
        %1774 = vadd.xlane.f32.xlu0 %v1773
        %v1775 = vpop.xlane.xlu0 %1774
        %v1776 = vrcp.pop %v1772
        %v1777 = vrcp.pop %v1775
        %v1778 = vmul.f32 %v1767, %v1776
        %v1779 = vmul.f32 %v1769, %v1777
        %v1780 = vmul.f32 %v1778, 0.25
        %v1781 = vmul.f32 %v1779, 0.25
        %v1782 = vadd.f32 %v1498, %v1780
        %v1783 = vadd.f32 %v1499, %v1781
        %v1784 = vld [vmem:[%s611 + $0x8] sm:$0xff]
        %v1785 = vld [vmem:[%s611 + $0x18] sm:$0xff]
        %1788 = vrot.lane.b32.xlu0 %v1784, 64
        %v1789 = vpop.permute.xlu0 %1788
        %1790 = vrot.lane.b32.xlu0 %v1785, 64
        %v1791 = vpop.permute.xlu0 %1790
        %v1795 = vsel %vm905, %v1778, 0
        %v1798 = vsel %vm905, %v1779, 0
        %1800 = vmatprep.subr.mxu0 0.0
        %1801 = vmatpush1.msra.mxu0 %v1789
        %1802 = vmatprep.subr.mxu0 0.0
        %1803 = vmatpush1.msra.mxu0 %v1791
        %1804 = vmatprep.subr.mxu0 0.0
        %1805 = vmatpush1.msra.mxu0 0.0
        %1806 = vmatprep.subr.mxu0 0.0
        %1807 = vmatpush1.msra.mxu0 0.0
        %1808 = vmatprep.subr.mxu0 0.0
        %1809 = vmatpush1.msra.mxu0 0.0
        %1810 = vmatprep.subr.mxu0 0.0
        %1811 = vmatpush1.msra.mxu0 0.0
        %1812 = vmatprep.subr.mxu0 0.0
        %1813 = vmatpush1.msra.mxu0 0.0
        %1814 = vmatprep.subr.mxu0 0.0
        %1815 = vmatpush1.msra.mxu0 0.0
        %1816 = vmatprep.subr.mxu0 0.0
        %1817 = vmatpush1.msra.mxu0 0.0
        %1818 = vmatprep.subr.mxu0 0.0
        %1819 = vmatpush1.msra.mxu0 0.0
        %1820 = vmatprep.subr.mxu0 0.0
        %1821 = vmatpush1.msra.mxu0 0.0
        %1822 = vmatprep.subr.mxu0 0.0
        %1823 = vmatpush1.msra.mxu0 0.0
        %1824 = vmatprep.subr.mxu0 0.0
        %1825 = vmatpush1.msra.mxu0 0.0
        %1826 = vmatprep.subr.mxu0 0.0
        %1827 = vmatpush1.msra.mxu0 0.0
        %1828 = vmatprep.subr.mxu0 0.0
        %1829 = vmatpush1.msra.mxu0 0.0
        %1830 = vmatprep.subr.mxu0 0.0
        %1831 = vmatpush1.msra.mxu0 0.0
        %1832 = vmatprep.subr.mxu0 0.0
        %1833 = vmatpush1.msra.mxu0 0.0
        %1834 = vmatprep.subr.mxu0 0.0
        %1835 = vmatpush1.msra.mxu0 0.0
        %1836 = vmatprep.subr.mxu0 0.0
        %1837 = vmatpush1.msra.mxu0 0.0
        %1838 = vmatprep.subr.mxu0 0.0
        %1839 = vmatpush1.msra.mxu0 0.0
        %1840 = vmatprep.subr.mxu0 0.0
        %1841 = vmatpush1.msra.mxu0 0.0
        %1842 = vmatprep.subr.mxu0 0.0
        %1843 = vmatpush1.msra.mxu0 0.0
        %1844 = vmatprep.subr.mxu0 0.0
        %1845 = vmatpush1.msra.mxu0 0.0
        %1846 = vmatprep.subr.mxu0 0.0
        %1847 = vmatpush1.msra.mxu0 0.0
        %1848 = vmatprep.subr.mxu0 0.0
        %1849 = vmatpush1.msra.mxu0 0.0
        %1850 = vmatprep.subr.mxu0 0.0
        %1851 = vmatpush1.msra.mxu0 0.0
        %1852 = vmatprep.subr.mxu0 0.0
        %1853 = vmatpush1.msra.mxu0 0.0
        %1854 = vmatprep.subr.mxu0 0.0
        %1855 = vmatpush1.msra.mxu0 0.0
        %1856 = vmatprep.subr.mxu0 0.0
        %1857 = vmatpush1.msra.mxu0 0.0
        %1858 = vmatprep.subr.mxu0 0.0
        %1859 = vmatpush1.msra.mxu0 0.0
        %1860 = vmatprep.subr.mxu0 0.0
        %1861 = vmatpush1.msra.mxu0 0.0
        %1862 = vmatprep.subr.mxu0 0.0
        %1863 = vmatpush1.msra.mxu0 0.0
        %1864 = vmatprep.mubr.f32.mxu0 0.0
        %1865 = vmatmul.mubr.f32.gmra.mrb[0].mxu0 %v1795
        %v1866 = vpop.f32.mrb[0].mxu0
        %v1867 = vadd.f32 0.0, %v1866
        %v1868 = vpop.f32.mrb[0].mxu0
        %1869 = vmatprep.mubr.f32.mxu0 0.0
        %1870 = vmatmul.mubr.f32.gmra.mrb[0].mxu0 %v1798
        %v1871 = vpop.f32.mrb[0].mxu0
        %v1872 = vadd.f32 0.0, %v1871
        %v1873 = vpop.f32.mrb[0].mxu0
        %1874 = vdwg.mxu0
        %v1875 = vld [vmem:[%s711] sm:$0xff]
        %v1876 = vld [vmem:[%s711 + $0x8] sm:$0xff]
        %v1877 = vadd.f32 %v1875, %v1782
        %v1878 = vadd.f32 %v1876, %v1783
        %1879 = vst.msk [vmem:[%s711] sm:$0xff] %vm905, %v1877
        %1880 = vst.msk [vmem:[%s711 + $0x8] sm:$0xff] %vm905, %v1878
        %1883 = vrot.lane.b32.xlu0 %v1315, 64
        %v1884 = vpop.permute.xlu0 %1883
        %1885 = vrot.lane.b32.xlu0 %v1320, 64
        %v1886 = vpop.permute.xlu0 %1885
        %1891 = vrot.lane.b32.xlu0 %v1867, 64
        %v1892 = vpop.permute.xlu0 %1891
        %1893 = vrot.lane.b32.xlu0 %v1872, 64
        %v1894 = vpop.permute.xlu0 %1893
        %v1897 = vsel %vm809, %v1007, %v1884
        %v1898 = vsel %vm809, %v1012, %v1886
        %v1899 = vsel %vm809, %v1575, %v1892
        %v1900 = vsel %vm809, %v1580, %v1894
        %1901 = vst [vmem:[%s697] sm:$0xff] %v1897
        %1902 = vst [vmem:[%s697 + $0x8] sm:$0xff] %v1899
        %1903 = vst [vmem:[%s697 + $0x10] sm:$0xff] %v1898
        %1904 = vst [vmem:[%s697 + $0x18] sm:$0xff] %v1900
        %s1905 = sand.u32 %s317, 1
        %s1906 = scalar_lea.sflag [#allocation4], %s1905
        %s1907 = sand.u32 %s317, 1
        %s1908 = smul.addr %s1907, 32
        %s1909 = scalar_lea.vmem [#allocation17], %s1908
        %s1910 = sand.u32 %s40, 1
        %s1911 = scalar_lea.sflag [#allocation19], %s1910
        %s1912 = sand.u32 %s347, 1
        %s1913 = smul.addr %s1912, 64
        %s1914 = scalar_lea.vmem [#allocation18], %s1913
        %s1915 = sand.u32 %s40, 1
        %s1916 = scalar_lea.sflag [#allocation19], %s1915
        %s1917 = sand.u32 %s375, 1
        %s1918 = smul.addr %s1917, 16
        %s1919 = scalar_lea.vmem [#allocation20], %s1918
        // Predicated region
        $region97: #{unified_pm_encoder_layer.5} parent=55 // pred_check
          %p1920 = pneg %p327
        $region98: #{unified_pm_encoder_layer.5} parent=55 // pred_check_branch
          %1922 = sbr.rel (%p1920) target = $region100
        $region99: #{unified_pm_encoder_layer.5} parent=55 // pred_region
          %s1923 = sadd.s32 %s45, %s47
          %s1924 = smul.u32 2, %s46
          %s1925 = smul.u32 2, %s1923
          %s1927 = ssub.s32 512, 512
          %1928 = vsyncadd %s1906, %s1927
          %s1929 = smul.addr %s1924, 4
          %s1930 = sadd.s32 %s1925, %s1929
          %s1931 = smul.addr %s1930, 128
          %s1932 = scalar_lea.hbm %s9, %s1931
          %s1933 = sshll.u32 %s1909, 4
          %s1934 = int_to_ptr.vmem [resolvable:$true] %s1933
          %1939 = dma.vmem_to_hbm [thread:$0]  %s1934, 512, %s1932, %s1906, 256, 512, 16
        $region100: #{unified_pm_encoder_layer.5} parent=55 // pred_fallthru
          _
        // Predicated region
        $region101: #{unified_pm_encoder_layer.5} parent=55 // pred_check
          %p1940 = pneg %p357
        $region102: #{unified_pm_encoder_layer.5} parent=55 // pred_check_branch
          %1942 = sbr.rel (%p1940) target = $region104
        $region103: #{unified_pm_encoder_layer.5} parent=55 // pred_region
          %s1943 = smul.u32 4, %s47
          %s1944 = smul.u32 2, %s46
          %s1946 = ssub.s32 1024, 1024
          %1947 = vsyncadd %s1911, %s1946
          %s1948 = smul.addr %s1943, 2
          %s1949 = sadd.s32 %s1944, %s1948
          %s1950 = smul.addr %s45, 8
          %s1951 = sadd.s32 %s1949, %s1950
          %s1952 = smul.addr %s1951, 128
          %s1953 = scalar_lea.hbm %s10, %s1952
          %s1954 = sshll.u32 %s1914, 4
          %s1955 = int_to_ptr.vmem [resolvable:$true] %s1954
          %1960 = dma.vmem_to_hbm [thread:$0]  %s1955, 1024, %s1953, %s1911, 128, 128, 8
        $region104: #{unified_pm_encoder_layer.5} parent=55 // pred_fallthru
          _
        // Predicated region
        $region105: #{unified_pm_encoder_layer.5} parent=55 // pred_check
          %p1961 = pneg %p385
        $region106: #{unified_pm_encoder_layer.5} parent=55 // pred_check_branch
          %1963 = sbr.rel (%p1961) target = $region108
        $region107: #{unified_pm_encoder_layer.5} parent=55 // pred_region
          %s1964 = smul.u32 2, %s46
          %s1966 = ssub.s32 256, 256
          %1967 = vsyncadd %s1916, %s1966
          %s1968 = smul.addr %s45, 2
          %s1969 = sadd.s32 %s1964, %s1968
          %s1970 = smul.addr %s1969, 128
          %s1971 = scalar_lea.hbm %s11, %s1970
          %s1972 = sshll.u32 %s1919, 4
          %s1973 = int_to_ptr.vmem [resolvable:$true] %s1972
          %1978 = dma.vmem_to_hbm [thread:$0]  %s1973, 256, %s1971, %s1916, 128, 128, 8
        $region108: #{unified_pm_encoder_layer.5} parent=55 // pred_fallthru
          _
      $region56: #{unified_pm_encoder_layer.5} parent=5 // pred_fallthru
        _
      %p1979 = scmp.le.s32.totalorder 2, %s35
      // Predicated region
      $region109: #{unified_pm_encoder_layer.5} parent=5 // pred_check
        %p1980 = pneg %p1979
      $region110: #{unified_pm_encoder_layer.5} parent=5 // pred_check_branch
        %1982 = sbr.rel (%p1980) target = $region112
      $region111: #{unified_pm_encoder_layer.5} parent=5 // pred_region
        %s1983 = ssub.s32 %s35, 2
        // Predicated region
        $region113: #{unified_pm_encoder_layer.5} parent=111 // pred_check
          %p1984 = pneg %p333
        $region114: #{unified_pm_encoder_layer.5} parent=111 // pred_check_branch
          %1986 = sbr.rel (%p1984) target = $region116
        $region115: #{unified_pm_encoder_layer.5} parent=111 // pred_region
          %s1987 = sand.u32 %s318, 1
          %s1988 = scalar_lea.sflag [#allocation4], %s1987
          %s1989 = sand.u32 %s318, 1
          %s1990 = smul.addr %s1989, 32
          %s1991 = scalar_lea.vmem [#allocation17], %s1990
          %1992 = dma.done %s1988, 512
        $region116: #{unified_pm_encoder_layer.5} parent=111 // pred_fallthru
          _
        // Predicated region
        $region117: #{unified_pm_encoder_layer.5} parent=111 // pred_check
          %p1993 = pneg %p363
        $region118: #{unified_pm_encoder_layer.5} parent=111 // pred_check_branch
          %1995 = sbr.rel (%p1993) target = $region120
        $region119: #{unified_pm_encoder_layer.5} parent=111 // pred_region
          %s1996 = sand.u32 %s41, 1
          %s1997 = scalar_lea.sflag [#allocation19], %s1996
          %s1998 = sand.u32 %s348, 1
          %s1999 = smul.addr %s1998, 64
          %s2000 = scalar_lea.vmem [#allocation18], %s1999
          %2001 = dma.done %s1997, 1024
        $region120: #{unified_pm_encoder_layer.5} parent=111 // pred_fallthru
          _
        // Predicated region
        $region121: #{unified_pm_encoder_layer.5} parent=111 // pred_check
          %p2002 = pneg %p391
        $region122: #{unified_pm_encoder_layer.5} parent=111 // pred_check_branch
          %2004 = sbr.rel (%p2002) target = $region124
        $region123: #{unified_pm_encoder_layer.5} parent=111 // pred_region
          %s2005 = sand.u32 %s41, 1
          %s2006 = scalar_lea.sflag [#allocation19], %s2005
          %s2007 = sand.u32 %s376, 1
          %s2008 = smul.addr %s2007, 16
          %s2009 = scalar_lea.vmem [#allocation20], %s2008
          %2010 = dma.done %s2006, 256
        $region124: #{unified_pm_encoder_layer.5} parent=111 // pred_fallthru
          _
      $region112: #{unified_pm_encoder_layer.5} parent=5 // pred_fallthru
        _
    $region6: #{unified_pm_encoder_layer.5} parent=1 // loop_footer
      %s39 = sadd.s32 1, %s35
    $region7: #{unified_pm_encoder_layer.5} parent=1 // loop_footer_branch
      %34 = sbr.rel target = $region3
    $region8: #{unified_pm_encoder_layer.5} parent=1 // loop_exit
      _
    %2011 = vsyncpa [#allocation3], 1
    %s2012 = scalar_lea.sflag [#allocation3], 1
    %2013 = vsyncpa %s2012, 1
    %2014 = vsyncpa [#allocation6], 1
    %s2015 = scalar_lea.sflag [#allocation6], 1
    %2016 = vsyncpa %s2015, 1
    %2017 = vsyncpa [#allocation9], 1
    %2018 = vsyncpa [#allocation12], 1
    %2019 = vsyncpa [#allocation15], 1
    %s2020 = scalar_lea.sflag [#allocation15], 1
    %2021 = vsyncpa %s2020, 1
    %2022 = vsyncpa [#allocation4], 1
    %s2023 = scalar_lea.sflag [#allocation4], 1
    %2024 = vsyncpa %s2023, 1
    %2025 = vsyncpa [#allocation19], 1
    %s2026 = scalar_lea.sflag [#allocation19], 1
    %2027 = vsyncpa %s2026, 1

// kernel: unified_pm_encoder_layer.7
$region0: #{unified_pm_encoder_layer.7}
  #allocation0 [shape = 'u32[]', space=smem, size = 0x4, offset = 0x4, fixed_abs, tag = 'smem constant byte address 0x4 - core index']
  #allocation1 [shape = 'u32[144,128]{1,0:T(1,128)}', space=vmem, size = 0x12000, scoped, tag = 'internal scratch']
  #allocation2 [shape = 'f32[32,256]{1,0:T(8,128)}', space=vmem, size = 0x8000, scoped, tag = 'scratch operand']
  #allocation3 [shape = 'f32[32,256]{1,0:T(8,128)}', space=vmem, size = 0x8000, scoped, tag = 'scratch operand']
  %s0 = inlined_call_operand.hbm [shape: f32[32,256], index: 0, kind: input, shape index: {}, may-alias: {0,7}]
  %s1 = inlined_call_operand.hbm [shape: f32[1,256], index: 1, kind: input, shape index: {}]
  %s2 = inlined_call_operand.hbm [shape: f32[1,256], index: 2, kind: input, shape index: {}]
  %s3 = inlined_call_operand.hbm [shape: f32[256,512], index: 3, kind: input, shape index: {}]
  %s4 = inlined_call_operand.hbm [shape: f32[1,512], index: 4, kind: input, shape index: {}]
  %s5 = inlined_call_operand.hbm [shape: f32[512,256], index: 5, kind: input, shape index: {}]
  %s6 = inlined_call_operand.hbm [shape: f32[1,256], index: 6, kind: input, shape index: {}]
  %s7 = inlined_call_operand.hbm [shape: f32[32,256], index: 7, kind: input, shape index: {}, may-alias: {0,7}]
  %s8 = inlined_call_operand.hbm [shape: f32[32,256], index: 8, kind: output, shape index: {}]
  %s9 = sld [smem:[#allocation0]]
  $region82: #{unified_pm_encoder_layer.7} parent=0
    _
  %s11 = ssub.s32 1, %s9
  %s12 = scalar_select 0, %s11, %s9
  $region1: #{unified_pm_encoder_layer.7} parent=0
    #allocation4 [shape = 'u8[32768]{0}', space=vmem, size = 0x8000, scoped, tag = 'input window, operand 0, single buffered']
    #allocation5 [shape = 's32[1]{0}', space=sflag, size = 0x4, scoped, tag = 'scoped memory for unified_pm_encoder_layer.7']
    #allocation6 [shape = 's32[1]{0}', space=sflag, size = 0x4, scoped, tag = 'scoped memory for unified_pm_encoder_layer.7']
    #allocation7 [shape = 'u8[1024]{0}', space=vmem, size = 0x400, scoped, tag = 'input window, operand 1, single buffered']
    #allocation8 [shape = 's32[1]{0}', space=sflag, size = 0x4, scoped, tag = 'scoped memory for unified_pm_encoder_layer.7']
    #allocation9 [shape = 'u8[1024]{0}', space=vmem, size = 0x400, scoped, tag = 'input window, operand 2, single buffered']
    #allocation10 [shape = 'u8[524288]{0}', space=vmem, size = 0x80000, scoped, tag = 'input window, operand 3, single buffered']
    #allocation11 [shape = 's32[1]{0}', space=sflag, size = 0x4, scoped, tag = 'scoped memory for unified_pm_encoder_layer.7']
    #allocation12 [shape = 'u8[2048]{0}', space=vmem, size = 0x800, scoped, tag = 'input window, operand 4, single buffered']
    #allocation13 [shape = 'u8[524288]{0}', space=vmem, size = 0x80000, scoped, tag = 'input window, operand 5, single buffered']
    #allocation14 [shape = 's32[1]{0}', space=sflag, size = 0x4, scoped, tag = 'scoped memory for unified_pm_encoder_layer.7']
    #allocation15 [shape = 'u8[1024]{0}', space=vmem, size = 0x400, scoped, tag = 'input window, operand 6, single buffered']
    #allocation16 [shape = 'u8[32768]{0}', space=vmem, size = 0x8000, scoped, tag = 'input window, operand 7, single buffered']
    #allocation17 [shape = 's32[1]{0}', space=sflag, size = 0x4, scoped, tag = 'scoped memory for unified_pm_encoder_layer.7']
    #allocation18 [shape = 'u8[32768]{0}', space=vmem, size = 0x8000, scoped, tag = 'output window, operand 0, single buffered']
    %13 = vsyncpa [#allocation5], 0
    %14 = vsyncpa [#allocation8], 0
    %15 = vsyncpa [#allocation11], 0
    %16 = vsyncpa [#allocation14], 0
    %17 = vsyncpa [#allocation17], 0
    %18 = vsyncpa [#allocation6], 0
    // Predicated region
    $region2: #{unified_pm_encoder_layer.7} parent=1 // pred_check
      _
    $region3: #{unified_pm_encoder_layer.7} parent=1 // pred_check_branch
      %20 = sbr.rel (0) target = $region5
    $region4: #{unified_pm_encoder_layer.7} parent=1 // pred_region
      %s22 = ssub.s32 1024, 1024
      %23 = vsyncadd [#allocation5], %s22
      %s24 = sshll.u32 [#allocation4], 4
      %s25 = int_to_ptr.vmem [resolvable:$true] %s24
      %30 = dma.hbm_to_vmem [thread:$0]  %s0, 1024, %s25, [#allocation5], 256, 256, 16
    $region5: #{unified_pm_encoder_layer.7} parent=1 // pred_fallthru
      _
    // Predicated region
    $region6: #{unified_pm_encoder_layer.7} parent=1 // pred_check
      _
    $region7: #{unified_pm_encoder_layer.7} parent=1 // pred_check_branch
      %32 = sbr.rel (0) target = $region9
    $region8: #{unified_pm_encoder_layer.7} parent=1 // pred_region
      %s34 = ssub.s32 32, 32
      %35 = vsyncadd [#allocation8], %s34
      %s37 = sshll.u32 [#allocation7], 4
      %s38 = int_to_ptr.vmem [resolvable:$true] %s37
      %40 = dma.hbm_to_vmem [thread:$0]  %s1, 32, %s38, [#allocation8]
    $region9: #{unified_pm_encoder_layer.7} parent=1 // pred_fallthru
      _
    // Predicated region
    $region10: #{unified_pm_encoder_layer.7} parent=1 // pred_check
      _
    $region11: #{unified_pm_encoder_layer.7} parent=1 // pred_check_branch
      %42 = sbr.rel (0) target = $region13
    $region12: #{unified_pm_encoder_layer.7} parent=1 // pred_region
      %s44 = ssub.s32 32, 32
      %45 = vsyncadd [#allocation8], %s44
      %s47 = sshll.u32 [#allocation9], 4
      %s48 = int_to_ptr.vmem [resolvable:$true] %s47
      %50 = dma.hbm_to_vmem [thread:$0]  %s2, 32, %s48, [#allocation8]
    $region13: #{unified_pm_encoder_layer.7} parent=1 // pred_fallthru
      _
    // Predicated region
    $region14: #{unified_pm_encoder_layer.7} parent=1 // pred_check
      _
    $region15: #{unified_pm_encoder_layer.7} parent=1 // pred_check_branch
      %52 = sbr.rel (0) target = $region17
    $region16: #{unified_pm_encoder_layer.7} parent=1 // pred_region
      %s54 = ssub.s32 16384, 16384
      %55 = vsyncadd [#allocation11], %s54
      %s56 = sshll.u32 [#allocation10], 4
      %s57 = int_to_ptr.vmem [resolvable:$true] %s56
      %62 = dma.hbm_to_vmem [thread:$0]  %s3, 16384, %s57, [#allocation11], 512, 512, 32
    $region17: #{unified_pm_encoder_layer.7} parent=1 // pred_fallthru
      _
    // Predicated region
    $region18: #{unified_pm_encoder_layer.7} parent=1 // pred_check
      _
    $region19: #{unified_pm_encoder_layer.7} parent=1 // pred_check_branch
      %64 = sbr.rel (0) target = $region21
    $region20: #{unified_pm_encoder_layer.7} parent=1 // pred_region
      %s66 = ssub.s32 64, 64
      %67 = vsyncadd [#allocation11], %s66
      %s69 = sshll.u32 [#allocation12], 4
      %s70 = int_to_ptr.vmem [resolvable:$true] %s69
      %72 = dma.hbm_to_vmem [thread:$0]  %s4, 64, %s70, [#allocation11]
    $region21: #{unified_pm_encoder_layer.7} parent=1 // pred_fallthru
      _
    // Predicated region
    $region22: #{unified_pm_encoder_layer.7} parent=1 // pred_check
      _
    $region23: #{unified_pm_encoder_layer.7} parent=1 // pred_check_branch
      %74 = sbr.rel (0) target = $region25
    $region24: #{unified_pm_encoder_layer.7} parent=1 // pred_region
      %s76 = ssub.s32 16384, 16384
      %77 = vsyncadd [#allocation14], %s76
      %s78 = sshll.u32 [#allocation13], 4
      %s79 = int_to_ptr.vmem [resolvable:$true] %s78
      %84 = dma.hbm_to_vmem [thread:$0]  %s5, 16384, %s79, [#allocation14], 256, 256, 16
    $region25: #{unified_pm_encoder_layer.7} parent=1 // pred_fallthru
      _
    // Predicated region
    $region26: #{unified_pm_encoder_layer.7} parent=1 // pred_check
      _
    $region27: #{unified_pm_encoder_layer.7} parent=1 // pred_check_branch
      %86 = sbr.rel (0) target = $region29
    $region28: #{unified_pm_encoder_layer.7} parent=1 // pred_region
      %s88 = ssub.s32 32, 32
      %89 = vsyncadd [#allocation14], %s88
      %s91 = sshll.u32 [#allocation15], 4
      %s92 = int_to_ptr.vmem [resolvable:$true] %s91
      %94 = dma.hbm_to_vmem [thread:$0]  %s6, 32, %s92, [#allocation14]
    $region29: #{unified_pm_encoder_layer.7} parent=1 // pred_fallthru
      _
    // Predicated region
    $region30: #{unified_pm_encoder_layer.7} parent=1 // pred_check
      _
    $region31: #{unified_pm_encoder_layer.7} parent=1 // pred_check_branch
      %96 = sbr.rel (0) target = $region33
    $region32: #{unified_pm_encoder_layer.7} parent=1 // pred_region
      %s98 = ssub.s32 1024, 1024
      %99 = vsyncadd [#allocation17], %s98
      %s100 = sshll.u32 [#allocation16], 4
      %s101 = int_to_ptr.vmem [resolvable:$true] %s100
      %106 = dma.hbm_to_vmem [thread:$0]  %s7, 1024, %s101, [#allocation17], 256, 256, 16
    $region33: #{unified_pm_encoder_layer.7} parent=1 // pred_fallthru
      _
    // Predicated region
    $region34: #{unified_pm_encoder_layer.7} parent=1 // pred_check
      _
    $region35: #{unified_pm_encoder_layer.7} parent=1 // pred_check_branch
      %108 = sbr.rel (0) target = $region37
    $region36: #{unified_pm_encoder_layer.7} parent=1 // pred_region
      %109 = dma.done [#allocation5], 1024
    $region37: #{unified_pm_encoder_layer.7} parent=1 // pred_fallthru
      _
    // Predicated region
    $region38: #{unified_pm_encoder_layer.7} parent=1 // pred_check
      _
    $region39: #{unified_pm_encoder_layer.7} parent=1 // pred_check_branch
      %111 = sbr.rel (0) target = $region41
    $region40: #{unified_pm_encoder_layer.7} parent=1 // pred_region
      %112 = dma.done [#allocation8], 32
    $region41: #{unified_pm_encoder_layer.7} parent=1 // pred_fallthru
      _
    // Predicated region
    $region42: #{unified_pm_encoder_layer.7} parent=1 // pred_check
      _
    $region43: #{unified_pm_encoder_layer.7} parent=1 // pred_check_branch
      %114 = sbr.rel (0) target = $region45
    $region44: #{unified_pm_encoder_layer.7} parent=1 // pred_region
      %115 = dma.done [#allocation8], 32
    $region45: #{unified_pm_encoder_layer.7} parent=1 // pred_fallthru
      _
    // Predicated region
    $region46: #{unified_pm_encoder_layer.7} parent=1 // pred_check
      _
    $region47: #{unified_pm_encoder_layer.7} parent=1 // pred_check_branch
      %117 = sbr.rel (0) target = $region49
    $region48: #{unified_pm_encoder_layer.7} parent=1 // pred_region
      %118 = dma.done [#allocation11], 16384
    $region49: #{unified_pm_encoder_layer.7} parent=1 // pred_fallthru
      _
    // Predicated region
    $region50: #{unified_pm_encoder_layer.7} parent=1 // pred_check
      _
    $region51: #{unified_pm_encoder_layer.7} parent=1 // pred_check_branch
      %120 = sbr.rel (0) target = $region53
    $region52: #{unified_pm_encoder_layer.7} parent=1 // pred_region
      %121 = dma.done [#allocation11], 64
    $region53: #{unified_pm_encoder_layer.7} parent=1 // pred_fallthru
      _
    // Predicated region
    $region54: #{unified_pm_encoder_layer.7} parent=1 // pred_check
      _
    $region55: #{unified_pm_encoder_layer.7} parent=1 // pred_check_branch
      %123 = sbr.rel (0) target = $region57
    $region56: #{unified_pm_encoder_layer.7} parent=1 // pred_region
      %124 = dma.done [#allocation14], 16384
    $region57: #{unified_pm_encoder_layer.7} parent=1 // pred_fallthru
      _
    // Predicated region
    $region58: #{unified_pm_encoder_layer.7} parent=1 // pred_check
      _
    $region59: #{unified_pm_encoder_layer.7} parent=1 // pred_check_branch
      %126 = sbr.rel (0) target = $region61
    $region60: #{unified_pm_encoder_layer.7} parent=1 // pred_region
      %127 = dma.done [#allocation14], 32
    $region61: #{unified_pm_encoder_layer.7} parent=1 // pred_fallthru
      _
    // Predicated region
    $region62: #{unified_pm_encoder_layer.7} parent=1 // pred_check
      _
    $region63: #{unified_pm_encoder_layer.7} parent=1 // pred_check_branch
      %129 = sbr.rel (0) target = $region65
    $region64: #{unified_pm_encoder_layer.7} parent=1 // pred_region
      %130 = dma.done [#allocation17], 1024
    $region65: #{unified_pm_encoder_layer.7} parent=1 // pred_fallthru
      _
    %p131 = scmp.eq.s32.totalorder 0, 0
    // Predicated region
    $region66: #{unified_pm_encoder_layer.7} parent=1 // pred_check
      %p132 = pneg %p131
    $region67: #{unified_pm_encoder_layer.7} parent=1 // pred_check_branch
      %134 = sbr.rel (%p132) target = $region69
    $region68: #{unified_pm_encoder_layer.7} parent=1 // pred_region
      %v135 = vld [vmem:[#allocation4] sm:$0xff]
      %v136 = vld [vmem:[#allocation4 + $0x8] sm:$0xff]
      %v137 = vld [vmem:[#allocation4 + $0x10] sm:$0xff]
      %v138 = vld [vmem:[#allocation4 + $0x18] sm:$0xff]
      %v139 = vld [vmem:[#allocation4 + $0x20] sm:$0xff]
      %v140 = vld [vmem:[#allocation4 + $0x28] sm:$0xff]
      %v141 = vld [vmem:[#allocation4 + $0x30] sm:$0xff]
      %v142 = vld [vmem:[#allocation4 + $0x38] sm:$0xff]
      %v143 = vld [vmem:[#allocation7] sm:$0x3]
      %v144 = vld [vmem:[#allocation9] sm:$0x3]
      %v145 = vadd.f32 %v135, %v136
      %146 = vadd.xlane.f32.xlu0 %v145
      %v147 = vpop.xlane.xlu0 %146
      %v148 = vadd.f32 %v137, %v138
      %149 = vadd.xlane.f32.xlu0 %v148
      %v150 = vpop.xlane.xlu0 %149
      %v151 = vadd.f32 %v139, %v140
      %152 = vadd.xlane.f32.xlu0 %v151
      %v153 = vpop.xlane.xlu0 %152
      %v154 = vadd.f32 %v141, %v142
      %155 = vadd.xlane.f32.xlu0 %v154
      %v156 = vpop.xlane.xlu0 %155
      %v157 = vrcp.pop 256.0
      %v158 = vmul.f32 %v147, %v157
      %v159 = vmul.f32 %v150, %v157
      %v160 = vmul.f32 %v153, %v157
      %v161 = vmul.f32 %v156, %v157
      %v162 = vsub.f32 %v135, %v158
      %v163 = vsub.f32 %v136, %v158
      %v164 = vsub.f32 %v137, %v159
      %v165 = vsub.f32 %v138, %v159
      %v166 = vsub.f32 %v139, %v160
      %v167 = vsub.f32 %v140, %v160
      %v168 = vsub.f32 %v141, %v161
      %v169 = vsub.f32 %v142, %v161
      %v170 = vmul.f32 %v162, %v162
      %v171 = vmul.f32 %v163, %v163
      %v172 = vmul.f32 %v164, %v164
      %v173 = vmul.f32 %v165, %v165
      %v174 = vmul.f32 %v166, %v166
      %v175 = vmul.f32 %v167, %v167
      %v176 = vmul.f32 %v168, %v168
      %v177 = vmul.f32 %v169, %v169
      %v178 = vadd.f32 %v170, %v171
      %179 = vadd.xlane.f32.xlu0 %v178
      %v180 = vpop.xlane.xlu0 %179
      %v181 = vadd.f32 %v172, %v173
      %182 = vadd.xlane.f32.xlu0 %v181
      %v183 = vpop.xlane.xlu0 %182
      %v184 = vadd.f32 %v174, %v175
      %185 = vadd.xlane.f32.xlu0 %v184
      %v186 = vpop.xlane.xlu0 %185
      %v187 = vadd.f32 %v176, %v177
      %188 = vadd.xlane.f32.xlu0 %v187
      %v189 = vpop.xlane.xlu0 %188
      %v190 = vmul.f32 %v180, %v157
      %v191 = vmul.f32 %v183, %v157
      %v192 = vmul.f32 %v186, %v157
      %v193 = vmul.f32 %v189, %v157
      %v194 = vadd.f32 %v190, 1e-05
      %v195 = vadd.f32 %v191, 1e-05
      %v196 = vadd.f32 %v192, 1e-05
      %v197 = vadd.f32 %v193, 1e-05
      %v198 = vrsqrt.pop %v194
      %v199 = vrsqrt.pop %v195
      %v200 = vrsqrt.pop %v196
      %v201 = vrsqrt.pop %v197
      %v202 = vmul.f32 %v162, %v198
      %v203 = vmul.f32 %v163, %v198
      %v204 = vmul.f32 %v164, %v199
      %v205 = vmul.f32 %v165, %v199
      %v206 = vmul.f32 %v166, %v200
      %v207 = vmul.f32 %v167, %v200
      %v208 = vmul.f32 %v168, %v201
      %v209 = vmul.f32 %v169, %v201
      %v211 = vlaneseq
      %v212 = vshrl.u32 %v211, 7
      %v213 = vsub.s32 0, %v212
      %v214 = vrot.slane %v143, %v213
      %v215 = vlaneseq
      %v216 = vshrl.u32 %v215, 7
      %v217 = vsub.s32 1, %v216
      %v218 = vrot.slane %v143, %v217
      %v221 = vmul.f32 %v202, %v214
      %v222 = vmul.f32 %v203, %v218
      %v223 = vmul.f32 %v204, %v214
      %v224 = vmul.f32 %v205, %v218
      %v225 = vmul.f32 %v206, %v214
      %v226 = vmul.f32 %v207, %v218
      %v227 = vmul.f32 %v208, %v214
      %v228 = vmul.f32 %v209, %v218
      %v230 = vlaneseq
      %v231 = vshrl.u32 %v230, 7
      %v232 = vsub.s32 0, %v231
      %v233 = vrot.slane %v144, %v232
      %v234 = vlaneseq
      %v235 = vshrl.u32 %v234, 7
      %v236 = vsub.s32 1, %v235
      %v237 = vrot.slane %v144, %v236
      %v240 = vadd.f32 %v221, %v233
      %v241 = vadd.f32 %v222, %v237
      %v242 = vadd.f32 %v223, %v233
      %v243 = vadd.f32 %v224, %v237
      %v244 = vadd.f32 %v225, %v233
      %v245 = vadd.f32 %v226, %v237
      %v246 = vadd.f32 %v227, %v233
      %v247 = vadd.f32 %v228, %v237
      %248 = vst [vmem:[#allocation2] sm:$0xff] %v240
      %249 = vst [vmem:[#allocation2 + $0x8] sm:$0xff] %v241
      %250 = vst [vmem:[#allocation2 + $0x10] sm:$0xff] %v242
      %251 = vst [vmem:[#allocation2 + $0x18] sm:$0xff] %v243
      %252 = vst [vmem:[#allocation2 + $0x20] sm:$0xff] %v244
      %253 = vst [vmem:[#allocation2 + $0x28] sm:$0xff] %v245
      %254 = vst [vmem:[#allocation2 + $0x30] sm:$0xff] %v246
      %255 = vst [vmem:[#allocation2 + $0x38] sm:$0xff] %v247
      %256 = vst [vmem:[#allocation3] sm:$0xff] 0.0
      %257 = vst [vmem:[#allocation3 + $0x8] sm:$0xff] 0.0
      %258 = vst [vmem:[#allocation3 + $0x10] sm:$0xff] 0.0
      %259 = vst [vmem:[#allocation3 + $0x18] sm:$0xff] 0.0
      %260 = vst [vmem:[#allocation3 + $0x20] sm:$0xff] 0.0
      %261 = vst [vmem:[#allocation3 + $0x28] sm:$0xff] 0.0
      %262 = vst [vmem:[#allocation3 + $0x30] sm:$0xff] 0.0
      %263 = vst [vmem:[#allocation3 + $0x38] sm:$0xff] 0.0
    $region69: #{unified_pm_encoder_layer.7} parent=1 // pred_fallthru
      _
    %v264 = vld [vmem:[#allocation2] sm:$0xff]
    %v265 = vld [vmem:[#allocation2 + $0x8] sm:$0xff]
    %v266 = vld [vmem:[#allocation2 + $0x10] sm:$0xff]
    %v267 = vld [vmem:[#allocation2 + $0x18] sm:$0xff]
    %v268 = vld [vmem:[#allocation2 + $0x20] sm:$0xff]
    %v269 = vld [vmem:[#allocation2 + $0x28] sm:$0xff]
    %v270 = vld [vmem:[#allocation2 + $0x30] sm:$0xff]
    %v271 = vld [vmem:[#allocation2 + $0x38] sm:$0xff]
    %v272 = vld [vmem:[#allocation10] sm:$0xff]
    %v273 = vld [vmem:[#allocation10 + $0x8] sm:$0xff]
    %v274 = vld [vmem:[#allocation10 + $0x10] sm:$0xff]
    %v275 = vld [vmem:[#allocation10 + $0x18] sm:$0xff]
    %v276 = vld [vmem:[#allocation10 + $0x20] sm:$0xff]
    %v277 = vld [vmem:[#allocation10 + $0x28] sm:$0xff]
    %v278 = vld [vmem:[#allocation10 + $0x30] sm:$0xff]
    %v279 = vld [vmem:[#allocation10 + $0x38] sm:$0xff]
    %v280 = vld [vmem:[#allocation10 + $0x40] sm:$0xff]
    %v281 = vld [vmem:[#allocation10 + $0x48] sm:$0xff]
    %v282 = vld [vmem:[#allocation10 + $0x50] sm:$0xff]
    %v283 = vld [vmem:[#allocation10 + $0x58] sm:$0xff]
    %v284 = vld [vmem:[#allocation10 + $0x60] sm:$0xff]
    %v285 = vld [vmem:[#allocation10 + $0x68] sm:$0xff]
    %v286 = vld [vmem:[#allocation10 + $0x70] sm:$0xff]
    %v287 = vld [vmem:[#allocation10 + $0x78] sm:$0xff]
    %v288 = vld [vmem:[#allocation10 + $0x80] sm:$0xff]
    %v289 = vld [vmem:[#allocation10 + $0x88] sm:$0xff]
    %v290 = vld [vmem:[#allocation10 + $0x90] sm:$0xff]
    %v291 = vld [vmem:[#allocation10 + $0x98] sm:$0xff]
    %v292 = vld [vmem:[#allocation10 + $0xa0] sm:$0xff]
    %v293 = vld [vmem:[#allocation10 + $0xa8] sm:$0xff]
    %v294 = vld [vmem:[#allocation10 + $0xb0] sm:$0xff]
    %v295 = vld [vmem:[#allocation10 + $0xb8] sm:$0xff]
    %v296 = vld [vmem:[#allocation10 + $0xc0] sm:$0xff]
    %v297 = vld [vmem:[#allocation10 + $0xc8] sm:$0xff]
    %v298 = vld [vmem:[#allocation10 + $0xd0] sm:$0xff]
    %v299 = vld [vmem:[#allocation10 + $0xd8] sm:$0xff]
    %v300 = vld [vmem:[#allocation10 + $0xe0] sm:$0xff]
    %v301 = vld [vmem:[#allocation10 + $0xe8] sm:$0xff]
    %v302 = vld [vmem:[#allocation10 + $0xf0] sm:$0xff]
    %v303 = vld [vmem:[#allocation10 + $0xf8] sm:$0xff]
    %v304 = vld [vmem:[#allocation10 + $0x100] sm:$0xff]
    %v305 = vld [vmem:[#allocation10 + $0x108] sm:$0xff]
    %v306 = vld [vmem:[#allocation10 + $0x110] sm:$0xff]
    %v307 = vld [vmem:[#allocation10 + $0x118] sm:$0xff]
    %v308 = vld [vmem:[#allocation10 + $0x120] sm:$0xff]
    %v309 = vld [vmem:[#allocation10 + $0x128] sm:$0xff]
    %v310 = vld [vmem:[#allocation10 + $0x130] sm:$0xff]
    %v311 = vld [vmem:[#allocation10 + $0x138] sm:$0xff]
    %v312 = vld [vmem:[#allocation10 + $0x140] sm:$0xff]
    %v313 = vld [vmem:[#allocation10 + $0x148] sm:$0xff]
    %v314 = vld [vmem:[#allocation10 + $0x150] sm:$0xff]
    %v315 = vld [vmem:[#allocation10 + $0x158] sm:$0xff]
    %v316 = vld [vmem:[#allocation10 + $0x160] sm:$0xff]
    %v317 = vld [vmem:[#allocation10 + $0x168] sm:$0xff]
    %v318 = vld [vmem:[#allocation10 + $0x170] sm:$0xff]
    %v319 = vld [vmem:[#allocation10 + $0x178] sm:$0xff]
    %v320 = vld [vmem:[#allocation10 + $0x180] sm:$0xff]
    %v321 = vld [vmem:[#allocation10 + $0x188] sm:$0xff]
    %v322 = vld [vmem:[#allocation10 + $0x190] sm:$0xff]
    %v323 = vld [vmem:[#allocation10 + $0x198] sm:$0xff]
    %v324 = vld [vmem:[#allocation10 + $0x1a0] sm:$0xff]
    %v325 = vld [vmem:[#allocation10 + $0x1a8] sm:$0xff]
    %v326 = vld [vmem:[#allocation10 + $0x1b0] sm:$0xff]
    %v327 = vld [vmem:[#allocation10 + $0x1b8] sm:$0xff]
    %v328 = vld [vmem:[#allocation10 + $0x1c0] sm:$0xff]
    %v329 = vld [vmem:[#allocation10 + $0x1c8] sm:$0xff]
    %v330 = vld [vmem:[#allocation10 + $0x1d0] sm:$0xff]
    %v331 = vld [vmem:[#allocation10 + $0x1d8] sm:$0xff]
    %v332 = vld [vmem:[#allocation10 + $0x1e0] sm:$0xff]
    %v333 = vld [vmem:[#allocation10 + $0x1e8] sm:$0xff]
    %v334 = vld [vmem:[#allocation10 + $0x1f0] sm:$0xff]
    %v335 = vld [vmem:[#allocation10 + $0x1f8] sm:$0xff]
    %v336 = vld [vmem:[#allocation10 + $0x200] sm:$0xff]
    %v337 = vld [vmem:[#allocation10 + $0x208] sm:$0xff]
    %v338 = vld [vmem:[#allocation10 + $0x210] sm:$0xff]
    %v339 = vld [vmem:[#allocation10 + $0x218] sm:$0xff]
    %v340 = vld [vmem:[#allocation10 + $0x220] sm:$0xff]
    %v341 = vld [vmem:[#allocation10 + $0x228] sm:$0xff]
    %v342 = vld [vmem:[#allocation10 + $0x230] sm:$0xff]
    %v343 = vld [vmem:[#allocation10 + $0x238] sm:$0xff]
    %v344 = vld [vmem:[#allocation10 + $0x240] sm:$0xff]
    %v345 = vld [vmem:[#allocation10 + $0x248] sm:$0xff]
    %v346 = vld [vmem:[#allocation10 + $0x250] sm:$0xff]
    %v347 = vld [vmem:[#allocation10 + $0x258] sm:$0xff]
    %v348 = vld [vmem:[#allocation10 + $0x260] sm:$0xff]
    %v349 = vld [vmem:[#allocation10 + $0x268] sm:$0xff]
    %v350 = vld [vmem:[#allocation10 + $0x270] sm:$0xff]
    %v351 = vld [vmem:[#allocation10 + $0x278] sm:$0xff]
    %v352 = vld [vmem:[#allocation10 + $0x280] sm:$0xff]
    %v353 = vld [vmem:[#allocation10 + $0x288] sm:$0xff]
    %v354 = vld [vmem:[#allocation10 + $0x290] sm:$0xff]
    %v355 = vld [vmem:[#allocation10 + $0x298] sm:$0xff]
    %v356 = vld [vmem:[#allocation10 + $0x2a0] sm:$0xff]
    %v357 = vld [vmem:[#allocation10 + $0x2a8] sm:$0xff]
    %v358 = vld [vmem:[#allocation10 + $0x2b0] sm:$0xff]
    %v359 = vld [vmem:[#allocation10 + $0x2b8] sm:$0xff]
    %v360 = vld [vmem:[#allocation10 + $0x2c0] sm:$0xff]
    %v361 = vld [vmem:[#allocation10 + $0x2c8] sm:$0xff]
    %v362 = vld [vmem:[#allocation10 + $0x2d0] sm:$0xff]
    %v363 = vld [vmem:[#allocation10 + $0x2d8] sm:$0xff]
    %v364 = vld [vmem:[#allocation10 + $0x2e0] sm:$0xff]
    %v365 = vld [vmem:[#allocation10 + $0x2e8] sm:$0xff]
    %v366 = vld [vmem:[#allocation10 + $0x2f0] sm:$0xff]
    %v367 = vld [vmem:[#allocation10 + $0x2f8] sm:$0xff]
    %v368 = vld [vmem:[#allocation10 + $0x300] sm:$0xff]
    %v369 = vld [vmem:[#allocation10 + $0x308] sm:$0xff]
    %v370 = vld [vmem:[#allocation10 + $0x310] sm:$0xff]
    %v371 = vld [vmem:[#allocation10 + $0x318] sm:$0xff]
    %v372 = vld [vmem:[#allocation10 + $0x320] sm:$0xff]
    %v373 = vld [vmem:[#allocation10 + $0x328] sm:$0xff]
    %v374 = vld [vmem:[#allocation10 + $0x330] sm:$0xff]
    %v375 = vld [vmem:[#allocation10 + $0x338] sm:$0xff]
    %v376 = vld [vmem:[#allocation10 + $0x340] sm:$0xff]
    %v377 = vld [vmem:[#allocation10 + $0x348] sm:$0xff]
    %v378 = vld [vmem:[#allocation10 + $0x350] sm:$0xff]
    %v379 = vld [vmem:[#allocation10 + $0x358] sm:$0xff]
    %v380 = vld [vmem:[#allocation10 + $0x360] sm:$0xff]
    %v381 = vld [vmem:[#allocation10 + $0x368] sm:$0xff]
    %v382 = vld [vmem:[#allocation10 + $0x370] sm:$0xff]
    %v383 = vld [vmem:[#allocation10 + $0x378] sm:$0xff]
    %v384 = vld [vmem:[#allocation10 + $0x380] sm:$0xff]
    %v385 = vld [vmem:[#allocation10 + $0x388] sm:$0xff]
    %v386 = vld [vmem:[#allocation10 + $0x390] sm:$0xff]
    %v387 = vld [vmem:[#allocation10 + $0x398] sm:$0xff]
    %v388 = vld [vmem:[#allocation10 + $0x3a0] sm:$0xff]
    %v389 = vld [vmem:[#allocation10 + $0x3a8] sm:$0xff]
    %v390 = vld [vmem:[#allocation10 + $0x3b0] sm:$0xff]
    %v391 = vld [vmem:[#allocation10 + $0x3b8] sm:$0xff]
    %v392 = vld [vmem:[#allocation10 + $0x3c0] sm:$0xff]
    %v393 = vld [vmem:[#allocation10 + $0x3c8] sm:$0xff]
    %v394 = vld [vmem:[#allocation10 + $0x3d0] sm:$0xff]
    %v395 = vld [vmem:[#allocation10 + $0x3d8] sm:$0xff]
    %v396 = vld [vmem:[#allocation10 + $0x3e0] sm:$0xff]
    %v397 = vld [vmem:[#allocation10 + $0x3e8] sm:$0xff]
    %v398 = vld [vmem:[#allocation10 + $0x3f0] sm:$0xff]
    %v399 = vld [vmem:[#allocation10 + $0x3f8] sm:$0xff]
    %v400 = vld [vmem:[#allocation12] sm:$0xf]
    %v402 = vlaneseq
    %v403 = vshrl.u32 %v402, 7
    %v404 = vsub.s32 0, %v403
    %v405 = vrot.slane %v400, %v404
    %v406 = vlaneseq
    %v407 = vshrl.u32 %v406, 7
    %v408 = vsub.s32 1, %v407
    %v409 = vrot.slane %v400, %v408
    %v410 = vlaneseq
    %v411 = vshrl.u32 %v410, 7
    %v412 = vsub.s32 2, %v411
    %v413 = vrot.slane %v400, %v412
    %v414 = vlaneseq
    %v415 = vshrl.u32 %v414, 7
    %v416 = vsub.s32 3, %v415
    %v417 = vrot.slane %v400, %v416
    %422 = vmatprep.subr.mxu0 %v273
    %423 = vmatpush1.msra.mxu0 %v272
    %424 = vmatprep.subr.mxu0 %v277
    %425 = vmatpush1.msra.mxu0 %v276
    %426 = vmatprep.subr.mxu0 %v281
    %427 = vmatpush1.msra.mxu0 %v280
    %428 = vmatprep.subr.mxu0 %v285
    %429 = vmatpush1.msra.mxu0 %v284
    %430 = vmatprep.subr.mxu0 %v289
    %431 = vmatpush1.msra.mxu0 %v288
    %432 = vmatprep.subr.mxu0 %v293
    %433 = vmatpush1.msra.mxu0 %v292
    %434 = vmatprep.subr.mxu0 %v297
    %435 = vmatpush1.msra.mxu0 %v296
    %436 = vmatprep.subr.mxu0 %v301
    %437 = vmatpush1.msra.mxu0 %v300
    %438 = vmatprep.subr.mxu0 %v305
    %439 = vmatpush1.msra.mxu0 %v304
    %440 = vmatprep.subr.mxu0 %v309
    %441 = vmatpush1.msra.mxu0 %v308
    %442 = vmatprep.subr.mxu0 %v313
    %443 = vmatpush1.msra.mxu0 %v312
    %444 = vmatprep.subr.mxu0 %v317
    %445 = vmatpush1.msra.mxu0 %v316
    %446 = vmatprep.subr.mxu0 %v321
    %447 = vmatpush1.msra.mxu0 %v320
    %448 = vmatprep.subr.mxu0 %v325
    %449 = vmatpush1.msra.mxu0 %v324
    %450 = vmatprep.subr.mxu0 %v329
    %451 = vmatpush1.msra.mxu0 %v328
    %452 = vmatprep.subr.mxu0 %v333
    %453 = vmatpush1.msra.mxu0 %v332
    %454 = vmatprep.subr.mxu0 %v337
    %455 = vmatpush1.msra.mxu0 %v336
    %456 = vmatprep.subr.mxu0 %v341
    %457 = vmatpush1.msra.mxu0 %v340
    %458 = vmatprep.subr.mxu0 %v345
    %459 = vmatpush1.msra.mxu0 %v344
    %460 = vmatprep.subr.mxu0 %v349
    %461 = vmatpush1.msra.mxu0 %v348
    %462 = vmatprep.subr.mxu0 %v353
    %463 = vmatpush1.msra.mxu0 %v352
    %464 = vmatprep.subr.mxu0 %v357
    %465 = vmatpush1.msra.mxu0 %v356
    %466 = vmatprep.subr.mxu0 %v361
    %467 = vmatpush1.msra.mxu0 %v360
    %468 = vmatprep.subr.mxu0 %v365
    %469 = vmatpush1.msra.mxu0 %v364
    %470 = vmatprep.subr.mxu0 %v369
    %471 = vmatpush1.msra.mxu0 %v368
    %472 = vmatprep.subr.mxu0 %v373
    %473 = vmatpush1.msra.mxu0 %v372
    %474 = vmatprep.subr.mxu0 %v377
    %475 = vmatpush1.msra.mxu0 %v376
    %476 = vmatprep.subr.mxu0 %v381
    %477 = vmatpush1.msra.mxu0 %v380
    %478 = vmatprep.subr.mxu0 %v385
    %479 = vmatpush1.msra.mxu0 %v384
    %480 = vmatprep.subr.mxu0 %v389
    %481 = vmatpush1.msra.mxu0 %v388
    %482 = vmatprep.subr.mxu0 %v393
    %483 = vmatpush1.msra.mxu0 %v392
    %484 = vmatprep.subr.mxu0 %v397
    %485 = vmatpush1.msra.mxu0 %v396
    %486 = vmatprep.mubr.f32.mxu0 %v265
    %487 = vmatmul.mubr.f32.gmra.mrb[0].mxu0 %v264
    %v488 = vpop.f32.mrb[0].mxu0
    %v489 = vadd.f32 %v405, %v488
    %v490 = vpop.f32.mrb[0].mxu0
    %v491 = vadd.f32 %v409, %v490
    %492 = vmatprep.mubr.f32.mxu0 %v267
    %493 = vmatmul.mubr.f32.gmra.mrb[0].mxu0 %v266
    %v494 = vpop.f32.mrb[0].mxu0
    %v495 = vadd.f32 %v405, %v494
    %v496 = vpop.f32.mrb[0].mxu0
    %v497 = vadd.f32 %v409, %v496
    %498 = vmatprep.mubr.f32.mxu0 %v269
    %499 = vmatmul.mubr.f32.gmra.mrb[0].mxu0 %v268
    %v500 = vpop.f32.mrb[0].mxu0
    %v501 = vadd.f32 %v405, %v500
    %v502 = vpop.f32.mrb[0].mxu0
    %v503 = vadd.f32 %v409, %v502
    %504 = vmatprep.mubr.f32.mxu0 %v271
    %505 = vmatmul.mubr.f32.gmra.mrb[0].mxu0 %v270
    %v506 = vpop.f32.mrb[0].mxu0
    %v507 = vadd.f32 %v405, %v506
    %v508 = vpop.f32.mrb[0].mxu0
    %v509 = vadd.f32 %v409, %v508
    %510 = vdwg.mxu0
    %511 = vmatprep.subr.mxu0 %v275
    %512 = vmatpush1.msra.mxu0 %v274
    %513 = vmatprep.subr.mxu0 %v279
    %514 = vmatpush1.msra.mxu0 %v278
    %515 = vmatprep.subr.mxu0 %v283
    %516 = vmatpush1.msra.mxu0 %v282
    %517 = vmatprep.subr.mxu0 %v287
    %518 = vmatpush1.msra.mxu0 %v286
    %519 = vmatprep.subr.mxu0 %v291
    %520 = vmatpush1.msra.mxu0 %v290
    %521 = vmatprep.subr.mxu0 %v295
    %522 = vmatpush1.msra.mxu0 %v294
    %523 = vmatprep.subr.mxu0 %v299
    %524 = vmatpush1.msra.mxu0 %v298
    %525 = vmatprep.subr.mxu0 %v303
    %526 = vmatpush1.msra.mxu0 %v302
    %527 = vmatprep.subr.mxu0 %v307
    %528 = vmatpush1.msra.mxu0 %v306
    %529 = vmatprep.subr.mxu0 %v311
    %530 = vmatpush1.msra.mxu0 %v310
    %531 = vmatprep.subr.mxu0 %v315
    %532 = vmatpush1.msra.mxu0 %v314
    %533 = vmatprep.subr.mxu0 %v319
    %534 = vmatpush1.msra.mxu0 %v318
    %535 = vmatprep.subr.mxu0 %v323
    %536 = vmatpush1.msra.mxu0 %v322
    %537 = vmatprep.subr.mxu0 %v327
    %538 = vmatpush1.msra.mxu0 %v326
    %539 = vmatprep.subr.mxu0 %v331
    %540 = vmatpush1.msra.mxu0 %v330
    %541 = vmatprep.subr.mxu0 %v335
    %542 = vmatpush1.msra.mxu0 %v334
    %543 = vmatprep.subr.mxu0 %v339
    %544 = vmatpush1.msra.mxu0 %v338
    %545 = vmatprep.subr.mxu0 %v343
    %546 = vmatpush1.msra.mxu0 %v342
    %547 = vmatprep.subr.mxu0 %v347
    %548 = vmatpush1.msra.mxu0 %v346
    %549 = vmatprep.subr.mxu0 %v351
    %550 = vmatpush1.msra.mxu0 %v350
    %551 = vmatprep.subr.mxu0 %v355
    %552 = vmatpush1.msra.mxu0 %v354
    %553 = vmatprep.subr.mxu0 %v359
    %554 = vmatpush1.msra.mxu0 %v358
    %555 = vmatprep.subr.mxu0 %v363
    %556 = vmatpush1.msra.mxu0 %v362
    %557 = vmatprep.subr.mxu0 %v367
    %558 = vmatpush1.msra.mxu0 %v366
    %559 = vmatprep.subr.mxu0 %v371
    %560 = vmatpush1.msra.mxu0 %v370
    %561 = vmatprep.subr.mxu0 %v375
    %562 = vmatpush1.msra.mxu0 %v374
    %563 = vmatprep.subr.mxu0 %v379
    %564 = vmatpush1.msra.mxu0 %v378
    %565 = vmatprep.subr.mxu0 %v383
    %566 = vmatpush1.msra.mxu0 %v382
    %567 = vmatprep.subr.mxu0 %v387
    %568 = vmatpush1.msra.mxu0 %v386
    %569 = vmatprep.subr.mxu0 %v391
    %570 = vmatpush1.msra.mxu0 %v390
    %571 = vmatprep.subr.mxu0 %v395
    %572 = vmatpush1.msra.mxu0 %v394
    %573 = vmatprep.subr.mxu0 %v399
    %574 = vmatpush1.msra.mxu0 %v398
    %575 = vmatprep.mubr.f32.mxu0 %v265
    %576 = vmatmul.mubr.f32.gmra.mrb[0].mxu0 %v264
    %v577 = vpop.f32.mrb[0].mxu0
    %v578 = vadd.f32 %v413, %v577
    %v579 = vpop.f32.mrb[0].mxu0
    %v580 = vadd.f32 %v417, %v579
    %581 = vmatprep.mubr.f32.mxu0 %v267
    %582 = vmatmul.mubr.f32.gmra.mrb[0].mxu0 %v266
    %v583 = vpop.f32.mrb[0].mxu0
    %v584 = vadd.f32 %v413, %v583
    %v585 = vpop.f32.mrb[0].mxu0
    %v586 = vadd.f32 %v417, %v585
    %587 = vmatprep.mubr.f32.mxu0 %v269
    %588 = vmatmul.mubr.f32.gmra.mrb[0].mxu0 %v268
    %v589 = vpop.f32.mrb[0].mxu0
    %v590 = vadd.f32 %v413, %v589
    %v591 = vpop.f32.mrb[0].mxu0
    %v592 = vadd.f32 %v417, %v591
    %593 = vmatprep.mubr.f32.mxu0 %v271
    %594 = vmatmul.mubr.f32.gmra.mrb[0].mxu0 %v270
    %v595 = vpop.f32.mrb[0].mxu0
    %v596 = vadd.f32 %v413, %v595
    %v597 = vpop.f32.mrb[0].mxu0
    %v598 = vadd.f32 %v417, %v597
    %599 = vdwg.mxu0
    %v600 = vmul.f32 %v489, 0.5
    %v601 = vmul.f32 %v491, 0.5
    %v602 = vmul.f32 %v578, 0.5
    %v603 = vmul.f32 %v580, 0.5
    %v604 = vmul.f32 %v495, 0.5
    %v605 = vmul.f32 %v497, 0.5
    %v606 = vmul.f32 %v584, 0.5
    %v607 = vmul.f32 %v586, 0.5
    %v608 = vmul.f32 %v501, 0.5
    %v609 = vmul.f32 %v503, 0.5
    %v610 = vmul.f32 %v590, 0.5
    %v611 = vmul.f32 %v592, 0.5
    %v612 = vmul.f32 %v507, 0.5
    %v613 = vmul.f32 %v509, 0.5
    %v614 = vmul.f32 %v596, 0.5
    %v615 = vmul.f32 %v598, 0.5
    %v616 = vmul.f32 %v489, 0.70710677
    %v617 = vmul.f32 %v491, 0.70710677
    %v618 = vmul.f32 %v578, 0.70710677
    %v619 = vmul.f32 %v580, 0.70710677
    %v620 = vmul.f32 %v495, 0.70710677
    %v621 = vmul.f32 %v497, 0.70710677
    %v622 = vmul.f32 %v584, 0.70710677
    %v623 = vmul.f32 %v586, 0.70710677
    %v624 = vmul.f32 %v501, 0.70710677
    %v625 = vmul.f32 %v503, 0.70710677
    %v626 = vmul.f32 %v590, 0.70710677
    %v627 = vmul.f32 %v592, 0.70710677
    %v628 = vmul.f32 %v507, 0.70710677
    %v629 = vmul.f32 %v509, 0.70710677
    %v630 = vmul.f32 %v596, 0.70710677
    %v631 = vmul.f32 %v598, 0.70710677
    %v632 = verf.f32.pop %v616
    %v633 = verf.f32.pop %v617
    %v634 = verf.f32.pop %v618
    %v635 = verf.f32.pop %v619
    %v636 = verf.f32.pop %v620
    %v637 = verf.f32.pop %v621
    %v638 = verf.f32.pop %v622
    %v639 = verf.f32.pop %v623
    %v640 = verf.f32.pop %v624
    %v641 = verf.f32.pop %v625
    %v642 = verf.f32.pop %v626
    %v643 = verf.f32.pop %v627
    %v644 = verf.f32.pop %v628
    %v645 = verf.f32.pop %v629
    %v646 = verf.f32.pop %v630
    %v647 = verf.f32.pop %v631
    %v648 = vadd.f32 %v632, 1.0
    %v649 = vadd.f32 %v633, 1.0
    %v650 = vadd.f32 %v634, 1.0
    %v651 = vadd.f32 %v635, 1.0
    %v652 = vadd.f32 %v636, 1.0
    %v653 = vadd.f32 %v637, 1.0
    %v654 = vadd.f32 %v638, 1.0
    %v655 = vadd.f32 %v639, 1.0
    %v656 = vadd.f32 %v640, 1.0
    %v657 = vadd.f32 %v641, 1.0
    %v658 = vadd.f32 %v642, 1.0
    %v659 = vadd.f32 %v643, 1.0
    %v660 = vadd.f32 %v644, 1.0
    %v661 = vadd.f32 %v645, 1.0
    %v662 = vadd.f32 %v646, 1.0
    %v663 = vadd.f32 %v647, 1.0
    %v664 = vmul.f32 %v600, %v648
    %v665 = vmul.f32 %v601, %v649
    %v666 = vmul.f32 %v602, %v650
    %v667 = vmul.f32 %v603, %v651
    %v668 = vmul.f32 %v604, %v652
    %v669 = vmul.f32 %v605, %v653
    %v670 = vmul.f32 %v606, %v654
    %v671 = vmul.f32 %v607, %v655
    %v672 = vmul.f32 %v608, %v656
    %v673 = vmul.f32 %v609, %v657
    %v674 = vmul.f32 %v610, %v658
    %v675 = vmul.f32 %v611, %v659
    %v676 = vmul.f32 %v612, %v660
    %v677 = vmul.f32 %v613, %v661
    %v678 = vmul.f32 %v614, %v662
    %v679 = vmul.f32 %v615, %v663
    %v680 = vld [vmem:[#allocation3] sm:$0xff]
    %v681 = vld [vmem:[#allocation3 + $0x8] sm:$0xff]
    %v682 = vld [vmem:[#allocation3 + $0x10] sm:$0xff]
    %v683 = vld [vmem:[#allocation3 + $0x18] sm:$0xff]
    %v684 = vld [vmem:[#allocation3 + $0x20] sm:$0xff]
    %v685 = vld [vmem:[#allocation3 + $0x28] sm:$0xff]
    %v686 = vld [vmem:[#allocation3 + $0x30] sm:$0xff]
    %v687 = vld [vmem:[#allocation3 + $0x38] sm:$0xff]
    %v688 = vld [vmem:[#allocation13] sm:$0xff]
    %v689 = vld [vmem:[#allocation13 + $0x8] sm:$0xff]
    %v690 = vld [vmem:[#allocation13 + $0x10] sm:$0xff]
    %v691 = vld [vmem:[#allocation13 + $0x18] sm:$0xff]
    %v692 = vld [vmem:[#allocation13 + $0x20] sm:$0xff]
    %v693 = vld [vmem:[#allocation13 + $0x28] sm:$0xff]
    %v694 = vld [vmem:[#allocation13 + $0x30] sm:$0xff]
    %v695 = vld [vmem:[#allocation13 + $0x38] sm:$0xff]
    %v696 = vld [vmem:[#allocation13 + $0x40] sm:$0xff]
    %v697 = vld [vmem:[#allocation13 + $0x48] sm:$0xff]
    %v698 = vld [vmem:[#allocation13 + $0x50] sm:$0xff]
    %v699 = vld [vmem:[#allocation13 + $0x58] sm:$0xff]
    %v700 = vld [vmem:[#allocation13 + $0x60] sm:$0xff]
    %v701 = vld [vmem:[#allocation13 + $0x68] sm:$0xff]
    %v702 = vld [vmem:[#allocation13 + $0x70] sm:$0xff]
    %v703 = vld [vmem:[#allocation13 + $0x78] sm:$0xff]
    %v704 = vld [vmem:[#allocation13 + $0x80] sm:$0xff]
    %v705 = vld [vmem:[#allocation13 + $0x88] sm:$0xff]
    %v706 = vld [vmem:[#allocation13 + $0x90] sm:$0xff]
    %v707 = vld [vmem:[#allocation13 + $0x98] sm:$0xff]
    %v708 = vld [vmem:[#allocation13 + $0xa0] sm:$0xff]
    %v709 = vld [vmem:[#allocation13 + $0xa8] sm:$0xff]
    %v710 = vld [vmem:[#allocation13 + $0xb0] sm:$0xff]
    %v711 = vld [vmem:[#allocation13 + $0xb8] sm:$0xff]
    %v712 = vld [vmem:[#allocation13 + $0xc0] sm:$0xff]
    %v713 = vld [vmem:[#allocation13 + $0xc8] sm:$0xff]
    %v714 = vld [vmem:[#allocation13 + $0xd0] sm:$0xff]
    %v715 = vld [vmem:[#allocation13 + $0xd8] sm:$0xff]
    %v716 = vld [vmem:[#allocation13 + $0xe0] sm:$0xff]
    %v717 = vld [vmem:[#allocation13 + $0xe8] sm:$0xff]
    %v718 = vld [vmem:[#allocation13 + $0xf0] sm:$0xff]
    %v719 = vld [vmem:[#allocation13 + $0xf8] sm:$0xff]
    %v720 = vld [vmem:[#allocation13 + $0x100] sm:$0xff]
    %v721 = vld [vmem:[#allocation13 + $0x108] sm:$0xff]
    %v722 = vld [vmem:[#allocation13 + $0x110] sm:$0xff]
    %v723 = vld [vmem:[#allocation13 + $0x118] sm:$0xff]
    %v724 = vld [vmem:[#allocation13 + $0x120] sm:$0xff]
    %v725 = vld [vmem:[#allocation13 + $0x128] sm:$0xff]
    %v726 = vld [vmem:[#allocation13 + $0x130] sm:$0xff]
    %v727 = vld [vmem:[#allocation13 + $0x138] sm:$0xff]
    %v728 = vld [vmem:[#allocation13 + $0x140] sm:$0xff]
    %v729 = vld [vmem:[#allocation13 + $0x148] sm:$0xff]
    %v730 = vld [vmem:[#allocation13 + $0x150] sm:$0xff]
    %v731 = vld [vmem:[#allocation13 + $0x158] sm:$0xff]
    %v732 = vld [vmem:[#allocation13 + $0x160] sm:$0xff]
    %v733 = vld [vmem:[#allocation13 + $0x168] sm:$0xff]
    %v734 = vld [vmem:[#allocation13 + $0x170] sm:$0xff]
    %v735 = vld [vmem:[#allocation13 + $0x178] sm:$0xff]
    %v736 = vld [vmem:[#allocation13 + $0x180] sm:$0xff]
    %v737 = vld [vmem:[#allocation13 + $0x188] sm:$0xff]
    %v738 = vld [vmem:[#allocation13 + $0x190] sm:$0xff]
    %v739 = vld [vmem:[#allocation13 + $0x198] sm:$0xff]
    %v740 = vld [vmem:[#allocation13 + $0x1a0] sm:$0xff]
    %v741 = vld [vmem:[#allocation13 + $0x1a8] sm:$0xff]
    %v742 = vld [vmem:[#allocation13 + $0x1b0] sm:$0xff]
    %v743 = vld [vmem:[#allocation13 + $0x1b8] sm:$0xff]
    %v744 = vld [vmem:[#allocation13 + $0x1c0] sm:$0xff]
    %v745 = vld [vmem:[#allocation13 + $0x1c8] sm:$0xff]
    %v746 = vld [vmem:[#allocation13 + $0x1d0] sm:$0xff]
    %v747 = vld [vmem:[#allocation13 + $0x1d8] sm:$0xff]
    %v748 = vld [vmem:[#allocation13 + $0x1e0] sm:$0xff]
    %v749 = vld [vmem:[#allocation13 + $0x1e8] sm:$0xff]
    %v750 = vld [vmem:[#allocation13 + $0x1f0] sm:$0xff]
    %v751 = vld [vmem:[#allocation13 + $0x1f8] sm:$0xff]
    %v752 = vld [vmem:[#allocation13 + $0x200] sm:$0xff]
    %v753 = vld [vmem:[#allocation13 + $0x208] sm:$0xff]
    %v754 = vld [vmem:[#allocation13 + $0x210] sm:$0xff]
    %v755 = vld [vmem:[#allocation13 + $0x218] sm:$0xff]
    %v756 = vld [vmem:[#allocation13 + $0x220] sm:$0xff]
    %v757 = vld [vmem:[#allocation13 + $0x228] sm:$0xff]
    %v758 = vld [vmem:[#allocation13 + $0x230] sm:$0xff]
    %v759 = vld [vmem:[#allocation13 + $0x238] sm:$0xff]
    %v760 = vld [vmem:[#allocation13 + $0x240] sm:$0xff]
    %v761 = vld [vmem:[#allocation13 + $0x248] sm:$0xff]
    %v762 = vld [vmem:[#allocation13 + $0x250] sm:$0xff]
    %v763 = vld [vmem:[#allocation13 + $0x258] sm:$0xff]
    %v764 = vld [vmem:[#allocation13 + $0x260] sm:$0xff]
    %v765 = vld [vmem:[#allocation13 + $0x268] sm:$0xff]
    %v766 = vld [vmem:[#allocation13 + $0x270] sm:$0xff]
    %v767 = vld [vmem:[#allocation13 + $0x278] sm:$0xff]
    %v768 = vld [vmem:[#allocation13 + $0x280] sm:$0xff]
    %v769 = vld [vmem:[#allocation13 + $0x288] sm:$0xff]
    %v770 = vld [vmem:[#allocation13 + $0x290] sm:$0xff]
    %v771 = vld [vmem:[#allocation13 + $0x298] sm:$0xff]
    %v772 = vld [vmem:[#allocation13 + $0x2a0] sm:$0xff]
    %v773 = vld [vmem:[#allocation13 + $0x2a8] sm:$0xff]
    %v774 = vld [vmem:[#allocation13 + $0x2b0] sm:$0xff]
    %v775 = vld [vmem:[#allocation13 + $0x2b8] sm:$0xff]
    %v776 = vld [vmem:[#allocation13 + $0x2c0] sm:$0xff]
    %v777 = vld [vmem:[#allocation13 + $0x2c8] sm:$0xff]
    %v778 = vld [vmem:[#allocation13 + $0x2d0] sm:$0xff]
    %v779 = vld [vmem:[#allocation13 + $0x2d8] sm:$0xff]
    %v780 = vld [vmem:[#allocation13 + $0x2e0] sm:$0xff]
    %v781 = vld [vmem:[#allocation13 + $0x2e8] sm:$0xff]
    %v782 = vld [vmem:[#allocation13 + $0x2f0] sm:$0xff]
    %v783 = vld [vmem:[#allocation13 + $0x2f8] sm:$0xff]
    %v784 = vld [vmem:[#allocation13 + $0x300] sm:$0xff]
    %v785 = vld [vmem:[#allocation13 + $0x308] sm:$0xff]
    %v786 = vld [vmem:[#allocation13 + $0x310] sm:$0xff]
    %v787 = vld [vmem:[#allocation13 + $0x318] sm:$0xff]
    %v788 = vld [vmem:[#allocation13 + $0x320] sm:$0xff]
    %v789 = vld [vmem:[#allocation13 + $0x328] sm:$0xff]
    %v790 = vld [vmem:[#allocation13 + $0x330] sm:$0xff]
    %v791 = vld [vmem:[#allocation13 + $0x338] sm:$0xff]
    %v792 = vld [vmem:[#allocation13 + $0x340] sm:$0xff]
    %v793 = vld [vmem:[#allocation13 + $0x348] sm:$0xff]
    %v794 = vld [vmem:[#allocation13 + $0x350] sm:$0xff]
    %v795 = vld [vmem:[#allocation13 + $0x358] sm:$0xff]
    %v796 = vld [vmem:[#allocation13 + $0x360] sm:$0xff]
    %v797 = vld [vmem:[#allocation13 + $0x368] sm:$0xff]
    %v798 = vld [vmem:[#allocation13 + $0x370] sm:$0xff]
    %v799 = vld [vmem:[#allocation13 + $0x378] sm:$0xff]
    %v800 = vld [vmem:[#allocation13 + $0x380] sm:$0xff]
    %v801 = vld [vmem:[#allocation13 + $0x388] sm:$0xff]
    %v802 = vld [vmem:[#allocation13 + $0x390] sm:$0xff]
    %v803 = vld [vmem:[#allocation13 + $0x398] sm:$0xff]
    %v804 = vld [vmem:[#allocation13 + $0x3a0] sm:$0xff]
    %v805 = vld [vmem:[#allocation13 + $0x3a8] sm:$0xff]
    %v806 = vld [vmem:[#allocation13 + $0x3b0] sm:$0xff]
    %v807 = vld [vmem:[#allocation13 + $0x3b8] sm:$0xff]
    %v808 = vld [vmem:[#allocation13 + $0x3c0] sm:$0xff]
    %v809 = vld [vmem:[#allocation13 + $0x3c8] sm:$0xff]
    %v810 = vld [vmem:[#allocation13 + $0x3d0] sm:$0xff]
    %v811 = vld [vmem:[#allocation13 + $0x3d8] sm:$0xff]
    %v812 = vld [vmem:[#allocation13 + $0x3e0] sm:$0xff]
    %v813 = vld [vmem:[#allocation13 + $0x3e8] sm:$0xff]
    %v814 = vld [vmem:[#allocation13 + $0x3f0] sm:$0xff]
    %v815 = vld [vmem:[#allocation13 + $0x3f8] sm:$0xff]
    %816 = vmatprep.subr.mxu0 %v689
    %817 = vmatpush1.msra.mxu0 %v688
    %818 = vmatprep.subr.mxu0 %v691
    %819 = vmatpush1.msra.mxu0 %v690
    %820 = vmatprep.subr.mxu0 %v693
    %821 = vmatpush1.msra.mxu0 %v692
    %822 = vmatprep.subr.mxu0 %v695
    %823 = vmatpush1.msra.mxu0 %v694
    %824 = vmatprep.subr.mxu0 %v697
    %825 = vmatpush1.msra.mxu0 %v696
    %826 = vmatprep.subr.mxu0 %v699
    %827 = vmatpush1.msra.mxu0 %v698
    %828 = vmatprep.subr.mxu0 %v701
    %829 = vmatpush1.msra.mxu0 %v700
    %830 = vmatprep.subr.mxu0 %v703
    %831 = vmatpush1.msra.mxu0 %v702
    %832 = vmatprep.subr.mxu0 %v705
    %833 = vmatpush1.msra.mxu0 %v704
    %834 = vmatprep.subr.mxu0 %v707
    %835 = vmatpush1.msra.mxu0 %v706
    %836 = vmatprep.subr.mxu0 %v709
    %837 = vmatpush1.msra.mxu0 %v708
    %838 = vmatprep.subr.mxu0 %v711
    %839 = vmatpush1.msra.mxu0 %v710
    %840 = vmatprep.subr.mxu0 %v713
    %841 = vmatpush1.msra.mxu0 %v712
    %842 = vmatprep.subr.mxu0 %v715
    %843 = vmatpush1.msra.mxu0 %v714
    %844 = vmatprep.subr.mxu0 %v717
    %845 = vmatpush1.msra.mxu0 %v716
    %846 = vmatprep.subr.mxu0 %v719
    %847 = vmatpush1.msra.mxu0 %v718
    %848 = vmatprep.subr.mxu0 %v721
    %849 = vmatpush1.msra.mxu0 %v720
    %850 = vmatprep.subr.mxu0 %v723
    %851 = vmatpush1.msra.mxu0 %v722
    %852 = vmatprep.subr.mxu0 %v725
    %853 = vmatpush1.msra.mxu0 %v724
    %854 = vmatprep.subr.mxu0 %v727
    %855 = vmatpush1.msra.mxu0 %v726
    %856 = vmatprep.subr.mxu0 %v729
    %857 = vmatpush1.msra.mxu0 %v728
    %858 = vmatprep.subr.mxu0 %v731
    %859 = vmatpush1.msra.mxu0 %v730
    %860 = vmatprep.subr.mxu0 %v733
    %861 = vmatpush1.msra.mxu0 %v732
    %862 = vmatprep.subr.mxu0 %v735
    %863 = vmatpush1.msra.mxu0 %v734
    %864 = vmatprep.subr.mxu0 %v737
    %865 = vmatpush1.msra.mxu0 %v736
    %866 = vmatprep.subr.mxu0 %v739
    %867 = vmatpush1.msra.mxu0 %v738
    %868 = vmatprep.subr.mxu0 %v741
    %869 = vmatpush1.msra.mxu0 %v740
    %870 = vmatprep.subr.mxu0 %v743
    %871 = vmatpush1.msra.mxu0 %v742
    %872 = vmatprep.subr.mxu0 %v745
    %873 = vmatpush1.msra.mxu0 %v744
    %874 = vmatprep.subr.mxu0 %v747
    %875 = vmatpush1.msra.mxu0 %v746
    %876 = vmatprep.subr.mxu0 %v749
    %877 = vmatpush1.msra.mxu0 %v748
    %878 = vmatprep.subr.mxu0 %v751
    %879 = vmatpush1.msra.mxu0 %v750
    %880 = vmatprep.mubr.f32.mxu0 %v665
    %881 = vmatmul.mubr.f32.gmra.mrb[0].mxu0 %v664
    %v882 = vpop.f32.mrb[0].mxu0
    %v883 = vadd.f32 0.0, %v882
    %v884 = vpop.f32.mrb[0].mxu0
    %v885 = vadd.f32 0.0, %v884
    %886 = vmatprep.mubr.f32.mxu0 %v669
    %887 = vmatmul.mubr.f32.gmra.mrb[0].mxu0 %v668
    %v888 = vpop.f32.mrb[0].mxu0
    %v889 = vadd.f32 0.0, %v888
    %v890 = vpop.f32.mrb[0].mxu0
    %v891 = vadd.f32 0.0, %v890
    %892 = vmatprep.mubr.f32.mxu0 %v673
    %893 = vmatmul.mubr.f32.gmra.mrb[0].mxu0 %v672
    %v894 = vpop.f32.mrb[0].mxu0
    %v895 = vadd.f32 0.0, %v894
    %v896 = vpop.f32.mrb[0].mxu0
    %v897 = vadd.f32 0.0, %v896
    %898 = vmatprep.mubr.f32.mxu0 %v677
    %899 = vmatmul.mubr.f32.gmra.mrb[0].mxu0 %v676
    %v900 = vpop.f32.mrb[0].mxu0
    %v901 = vadd.f32 0.0, %v900
    %v902 = vpop.f32.mrb[0].mxu0
    %v903 = vadd.f32 0.0, %v902
    %904 = vdwg.mxu0
    %905 = vmatprep.subr.mxu0 %v753
    %906 = vmatpush1.msra.mxu0 %v752
    %907 = vmatprep.subr.mxu0 %v755
    %908 = vmatpush1.msra.mxu0 %v754
    %909 = vmatprep.subr.mxu0 %v757
    %910 = vmatpush1.msra.mxu0 %v756
    %911 = vmatprep.subr.mxu0 %v759
    %912 = vmatpush1.msra.mxu0 %v758
    %913 = vmatprep.subr.mxu0 %v761
    %914 = vmatpush1.msra.mxu0 %v760
    %915 = vmatprep.subr.mxu0 %v763
    %916 = vmatpush1.msra.mxu0 %v762
    %917 = vmatprep.subr.mxu0 %v765
    %918 = vmatpush1.msra.mxu0 %v764
    %919 = vmatprep.subr.mxu0 %v767
    %920 = vmatpush1.msra.mxu0 %v766
    %921 = vmatprep.subr.mxu0 %v769
    %922 = vmatpush1.msra.mxu0 %v768
    %923 = vmatprep.subr.mxu0 %v771
    %924 = vmatpush1.msra.mxu0 %v770
    %925 = vmatprep.subr.mxu0 %v773
    %926 = vmatpush1.msra.mxu0 %v772
    %927 = vmatprep.subr.mxu0 %v775
    %928 = vmatpush1.msra.mxu0 %v774
    %929 = vmatprep.subr.mxu0 %v777
    %930 = vmatpush1.msra.mxu0 %v776
    %931 = vmatprep.subr.mxu0 %v779
    %932 = vmatpush1.msra.mxu0 %v778
    %933 = vmatprep.subr.mxu0 %v781
    %934 = vmatpush1.msra.mxu0 %v780
    %935 = vmatprep.subr.mxu0 %v783
    %936 = vmatpush1.msra.mxu0 %v782
    %937 = vmatprep.subr.mxu0 %v785
    %938 = vmatpush1.msra.mxu0 %v784
    %939 = vmatprep.subr.mxu0 %v787
    %940 = vmatpush1.msra.mxu0 %v786
    %941 = vmatprep.subr.mxu0 %v789
    %942 = vmatpush1.msra.mxu0 %v788
    %943 = vmatprep.subr.mxu0 %v791
    %944 = vmatpush1.msra.mxu0 %v790
    %945 = vmatprep.subr.mxu0 %v793
    %946 = vmatpush1.msra.mxu0 %v792
    %947 = vmatprep.subr.mxu0 %v795
    %948 = vmatpush1.msra.mxu0 %v794
    %949 = vmatprep.subr.mxu0 %v797
    %950 = vmatpush1.msra.mxu0 %v796
    %951 = vmatprep.subr.mxu0 %v799
    %952 = vmatpush1.msra.mxu0 %v798
    %953 = vmatprep.subr.mxu0 %v801
    %954 = vmatpush1.msra.mxu0 %v800
    %955 = vmatprep.subr.mxu0 %v803
    %956 = vmatpush1.msra.mxu0 %v802
    %957 = vmatprep.subr.mxu0 %v805
    %958 = vmatpush1.msra.mxu0 %v804
    %959 = vmatprep.subr.mxu0 %v807
    %960 = vmatpush1.msra.mxu0 %v806
    %961 = vmatprep.subr.mxu0 %v809
    %962 = vmatpush1.msra.mxu0 %v808
    %963 = vmatprep.subr.mxu0 %v811
    %964 = vmatpush1.msra.mxu0 %v810
    %965 = vmatprep.subr.mxu0 %v813
    %966 = vmatpush1.msra.mxu0 %v812
    %967 = vmatprep.subr.mxu0 %v815
    %968 = vmatpush1.msra.mxu0 %v814
    %969 = vmatprep.mubr.f32.mxu0 %v667
    %970 = vmatmul.mubr.f32.gmra.mrb[0].mxu0 %v666
    %v971 = vpop.f32.mrb[0].mxu0
    %v972 = vadd.f32 %v883, %v971
    %v973 = vpop.f32.mrb[0].mxu0
    %v974 = vadd.f32 %v885, %v973
    %975 = vmatprep.mubr.f32.mxu0 %v671
    %976 = vmatmul.mubr.f32.gmra.mrb[0].mxu0 %v670
    %v977 = vpop.f32.mrb[0].mxu0
    %v978 = vadd.f32 %v889, %v977
    %v979 = vpop.f32.mrb[0].mxu0
    %v980 = vadd.f32 %v891, %v979
    %981 = vmatprep.mubr.f32.mxu0 %v675
    %982 = vmatmul.mubr.f32.gmra.mrb[0].mxu0 %v674
    %v983 = vpop.f32.mrb[0].mxu0
    %v984 = vadd.f32 %v895, %v983
    %v985 = vpop.f32.mrb[0].mxu0
    %v986 = vadd.f32 %v897, %v985
    %987 = vmatprep.mubr.f32.mxu0 %v679
    %988 = vmatmul.mubr.f32.gmra.mrb[0].mxu0 %v678
    %v989 = vpop.f32.mrb[0].mxu0
    %v990 = vadd.f32 %v901, %v989
    %v991 = vpop.f32.mrb[0].mxu0
    %v992 = vadd.f32 %v903, %v991
    %993 = vdwg.mxu0
    %v994 = vadd.f32 %v680, %v972
    %v995 = vadd.f32 %v681, %v974
    %v996 = vadd.f32 %v682, %v978
    %v997 = vadd.f32 %v683, %v980
    %v998 = vadd.f32 %v684, %v984
    %v999 = vadd.f32 %v685, %v986
    %v1000 = vadd.f32 %v686, %v990
    %v1001 = vadd.f32 %v687, %v992
    %1002 = vst [vmem:[#allocation3] sm:$0xff] %v994
    %1003 = vst [vmem:[#allocation3 + $0x8] sm:$0xff] %v995
    %1004 = vst [vmem:[#allocation3 + $0x10] sm:$0xff] %v996
    %1005 = vst [vmem:[#allocation3 + $0x18] sm:$0xff] %v997
    %1006 = vst [vmem:[#allocation3 + $0x20] sm:$0xff] %v998
    %1007 = vst [vmem:[#allocation3 + $0x28] sm:$0xff] %v999
    %1008 = vst [vmem:[#allocation3 + $0x30] sm:$0xff] %v1000
    %1009 = vst [vmem:[#allocation3 + $0x38] sm:$0xff] %v1001
    // Predicated region
    $region70: #{unified_pm_encoder_layer.7} parent=1 // pred_check
      %p1010 = pneg %p131
    $region71: #{unified_pm_encoder_layer.7} parent=1 // pred_check_branch
      %1012 = sbr.rel (%p1010) target = $region73
    $region72: #{unified_pm_encoder_layer.7} parent=1 // pred_region
      %v1013 = vld [vmem:[#allocation3] sm:$0xff]
      %v1014 = vld [vmem:[#allocation3 + $0x8] sm:$0xff]
      %v1015 = vld [vmem:[#allocation3 + $0x10] sm:$0xff]
      %v1016 = vld [vmem:[#allocation3 + $0x18] sm:$0xff]
      %v1017 = vld [vmem:[#allocation3 + $0x20] sm:$0xff]
      %v1018 = vld [vmem:[#allocation3 + $0x28] sm:$0xff]
      %v1019 = vld [vmem:[#allocation3 + $0x30] sm:$0xff]
      %v1020 = vld [vmem:[#allocation3 + $0x38] sm:$0xff]
      %v1021 = vld [vmem:[#allocation15] sm:$0x3]
      %v1023 = vlaneseq
      %v1024 = vshrl.u32 %v1023, 7
      %v1025 = vsub.s32 0, %v1024
      %v1026 = vrot.slane %v1021, %v1025
      %v1027 = vlaneseq
      %v1028 = vshrl.u32 %v1027, 7
      %v1029 = vsub.s32 1, %v1028
      %v1030 = vrot.slane %v1021, %v1029
      %v1033 = vadd.f32 %v1013, %v1026
      %v1034 = vadd.f32 %v1014, %v1030
      %v1035 = vadd.f32 %v1015, %v1026
      %v1036 = vadd.f32 %v1016, %v1030
      %v1037 = vadd.f32 %v1017, %v1026
      %v1038 = vadd.f32 %v1018, %v1030
      %v1039 = vadd.f32 %v1019, %v1026
      %v1040 = vadd.f32 %v1020, %v1030
      %v1041 = vld [vmem:[#allocation16] sm:$0xff]
      %v1042 = vld [vmem:[#allocation16 + $0x8] sm:$0xff]
      %v1043 = vld [vmem:[#allocation16 + $0x10] sm:$0xff]
      %v1044 = vld [vmem:[#allocation16 + $0x18] sm:$0xff]
      %v1045 = vld [vmem:[#allocation16 + $0x20] sm:$0xff]
      %v1046 = vld [vmem:[#allocation16 + $0x28] sm:$0xff]
      %v1047 = vld [vmem:[#allocation16 + $0x30] sm:$0xff]
      %v1048 = vld [vmem:[#allocation16 + $0x38] sm:$0xff]
      %v1049 = vadd.f32 %v1033, %v1041
      %v1050 = vadd.f32 %v1034, %v1042
      %v1051 = vadd.f32 %v1035, %v1043
      %v1052 = vadd.f32 %v1036, %v1044
      %v1053 = vadd.f32 %v1037, %v1045
      %v1054 = vadd.f32 %v1038, %v1046
      %v1055 = vadd.f32 %v1039, %v1047
      %v1056 = vadd.f32 %v1040, %v1048
      %1057 = vst [vmem:[#allocation18] sm:$0xff] %v1049
      %1058 = vst [vmem:[#allocation18 + $0x8] sm:$0xff] %v1050
      %1059 = vst [vmem:[#allocation18 + $0x10] sm:$0xff] %v1051
      %1060 = vst [vmem:[#allocation18 + $0x18] sm:$0xff] %v1052
      %1061 = vst [vmem:[#allocation18 + $0x20] sm:$0xff] %v1053
      %1062 = vst [vmem:[#allocation18 + $0x28] sm:$0xff] %v1054
      %1063 = vst [vmem:[#allocation18 + $0x30] sm:$0xff] %v1055
      %1064 = vst [vmem:[#allocation18 + $0x38] sm:$0xff] %v1056
    $region73: #{unified_pm_encoder_layer.7} parent=1 // pred_fallthru
      _
    // Predicated region
    $region74: #{unified_pm_encoder_layer.7} parent=1 // pred_check
      _
    $region75: #{unified_pm_encoder_layer.7} parent=1 // pred_check_branch
      %1066 = sbr.rel (0) target = $region77
    $region76: #{unified_pm_encoder_layer.7} parent=1 // pred_region
      %s1068 = ssub.s32 1024, 1024
      %1069 = vsyncadd [#allocation6], %s1068
      %s1070 = sshll.u32 [#allocation18], 4
      %s1071 = int_to_ptr.vmem [resolvable:$true] %s1070
      %1076 = dma.vmem_to_hbm [thread:$0]  %s1071, 1024, %s8, [#allocation6], 256, 256, 16
    $region77: #{unified_pm_encoder_layer.7} parent=1 // pred_fallthru
      _
    // Predicated region
    $region78: #{unified_pm_encoder_layer.7} parent=1 // pred_check
      _
    $region79: #{unified_pm_encoder_layer.7} parent=1 // pred_check_branch
      %1078 = sbr.rel (0) target = $region81
    $region80: #{unified_pm_encoder_layer.7} parent=1 // pred_region
      %1079 = dma.done [#allocation6], 1024
    $region81: #{unified_pm_encoder_layer.7} parent=1 // pred_fallthru
      _
    %1080 = vsyncpa [#allocation5], 1
    %1081 = vsyncpa [#allocation8], 1
    %1082 = vsyncpa [#allocation11], 1
    %1083 = vsyncpa [#allocation14], 1
    %1084 = vsyncpa [#allocation17], 1
    %1085 = vsyncpa [#allocation6], 1

</llo_original>
